<compile_context>
chip_gen: v6e
topology: v6e:2x2x1
jax: 0.10.0
libtpu: 0.0.40
codegen_flags: <defaults>
</compile_context>

<pallas_src>
import functools

import jax
import jax.numpy as jnp
from jax import lax
from jax.experimental import pallas as pl
from jax.experimental.pallas import tpu as pltpu

LANE = 128      # TPU lane width: matmul N-dims padded to multiples of this
SUBLANE = 8     # sublane tile: W and the matmul K-dim are padded to this


def _round_up(x, m):
    return (x + m - 1) // m * m


def _block_kernel(x_ref, w1_ref, b1_ref, w2_ref, b2_ref, out_ref,
                  h1_ref, acc1_ref, acc2_ref, *, H, Wp):
    """One image per grid step.

    x_ref   : (1, H*Wp + 8, Cin_k)        bf16  flattened (H, Wp) + 8 slack rows
    w1_ref  : (9, Cin_k,  Cmid_p)         bf16  per-tap weight slabs (ky, kx) order
    b1_ref  : (1, Cmid_p)                 f32
    w2_ref  : (9, Cmid_p, Cout_p)         bf16
    b2_ref  : (1, Cout_p)                 f32
    out_ref : (1, H2*Wp, Cout_p)          bf16  lane/sublane-dense padded output
    h1_ref  : (H1*Wp + 8, Cmid_p)         bf16  scratch: conv1 output + slack rows
    acc1_ref: (H1*Wp, Cmid_p)             f32   scratch accumulator for conv1
    acc2_ref: (H2*Wp, Cout_p)             f32   scratch accumulator for conv2
    """
    K = 3
    H1 = H - (K - 1)
    r1 = H1 * Wp                    # conv1 output rows (flattened)
    r2 = out_ref.shape[1]           # conv2 output rows (flattened)
    Cmid_p = h1_ref.shape[-1]

    def conv3x3_relu(src, w_ref, b_ref, acc_ref, out_rows):
        # Nine accumulating MXU matmuls (K = src channels) into an f32 VMEM
        # accumulator -- no materialized 9x im2col buffer, no concat copies.
        # (kx=1,2 tap starts are sublane-unaligned; pltpu.roll onto the XLU is
        # a further micro-opt left out for simplicity at these shapes.)
        for t in range(K * K):
            ky, kx = divmod(t, K)
            start = ky * Wp + kx                      # static slice offsets
            tap = src[start:start + out_rows, :]
            d = jnp.dot(tap, w_ref[t], preferred_element_type=jnp.float32)
            if t == 0:
                acc_ref[...] = d
            else:
                acc_ref[...] += d
        return jnp.maximum(acc_ref[...] + b_ref[...], 0.0)

    # Zero the 8 slack rows of the h1 scratch every step (cheap, 2 KiB) so the
    # kernel is safe even when the batch grid is sharded across TensorCores
    # (scratch is per-core, so a pid==0 guard would be wrong on megacore).
    h1_ref[r1:, :] = jnp.zeros((SUBLANE, Cmid_p), jnp.bfloat16)

    # conv1 + relu1: bf16 result lands directly where conv2's taps read it.
    x = x_ref[0]                                              # (H*Wp+8, Cin_k)
    h1_ref[0:r1, :] = conv3x3_relu(
        x, w1_ref, b1_ref, acc1_ref, r1).astype(jnp.bfloat16)

    # conv2 + relu2: lane/sublane-dense bf16 store of the full padded-W block;
    # wrap columns / padding are cropped for free in the wrapper.
    h1 = h1_ref[...]                                          # (H1*Wp+8, Cmid_p)
    out_ref[0] = conv3x3_relu(
        h1, w2_ref, b2_ref, acc2_ref, r2).astype(out_ref.dtype)


def prepare_params(w1, b1, w2, b2, Cin_k, Cmid_p, Cout_p):
    """One-time repack: OIHW conv weights -> per-tap padded bf16 slabs.

    In a real model this runs once at weight-load time, not per forward call.
    Padded bias lanes are zero by construction (required: keeps padded h1
    channels at exactly 0 after ReLU).
    """
    Cmid, Cin = w1.shape[0], w1.shape[1]
    Cout = w2.shape[0]

    def pack_w(w, ci, ci_p, co, co_p):
        w = jnp.transpose(w, (2, 3, 1, 0))                    # OIHW -> HWIO
        w = jnp.pad(w, ((0, 0), (0, 0), (0, ci_p - ci), (0, co_p - co)))
        return w.reshape(9, ci_p, co_p).astype(jnp.bfloat16)  # tap t = ky*3+kx

    w1k = pack_w(w1, Cin, Cin_k, Cmid, Cmid_p)
    w2k = pack_w(w2, Cmid, Cmid_p, Cout, Cout_p)
    b1k = jnp.pad(b1, (0, Cmid_p - Cmid)).reshape(1, Cmid_p).astype(jnp.float32)
    b2k = jnp.pad(b2, (0, Cout_p - Cout)).reshape(1, Cout_p).astype(jnp.float32)
    return w1k, b1k, w2k, b2k


@jax.jit
def block_forward(x_nchw, w1, b1, w2, b2):
    """PyTorch-semantics forward of `Block` (NCHW in / NCHW out).

    x_nchw: (N, Cin, H, W); w1: (Cmid, Cin, 3, 3); b1: (Cmid,);
    w2: (Cout, Cmid, 3, 3); b2: (Cout,)   ->   (N, Cout, H-4, W-4) f32
    """
    K = 3
    N, Cin, H, W = x_nchw.shape
    Cmid, Cout = w1.shape[0], w2.shape[0]
    H1 = H - (K - 1)
    Hout, Wout = H - 2 * (K - 1), W - 2 * (K - 1)
    assert Hout > 0 and Wout > 0
    # 8 slack rows cover the max tap offset (2*Wp + 2) past the last output row
    # -- valid only for K=3 VALID convs.
    assert SUBLANE >= K - 1

    Cin_k = _round_up(Cin, SUBLANE)       # matmul-K alignment only (NOT 128)
    Cmid_p = _round_up(Cmid, LANE)
    Cout_p = _round_up(Cout, LANE)
    Wp = _round_up(W, SUBLANE)
    rows_in = H * Wp + SUBLANE
    r2 = Hout * Wp

    w1k, b1k, w2k, b2k = prepare_params(w1, b1, w2, b2, Cin_k, Cmid_p, Cout_p)

    # Boundary glue: NCHW -> NHWC, pad W->Wp and Cin->Cin_k (only a ~2x pad at
    # Cin=4, not the old 32x pad-to-128), flatten spatial, add slack rows.
    x = jnp.transpose(x_nchw, (0, 2, 3, 1))
    x = jnp.pad(x, ((0, 0), (0, 0), (0, Wp - W), (0, Cin_k - Cin)))
    x = x.astype(jnp.bfloat16).reshape(N, H * Wp, Cin_k)
    x = jnp.pad(x, ((0, 0), (0, SUBLANE), (0, 0)))

    flops = 2 * N * 9 * (H1 * Wp * Cin * Cmid + Hout * Wp * Cmid * Cout)
    bytes_accessed = (x.size * 2 + w1k.size * 2 + w2k.size * 2
                      + b1k.size * 4 + b2k.size * 4 + N * r2 * Cout_p * 2)

    kernel = functools.partial(_block_kernel, H=H, Wp=Wp)
    out = pl.pallas_call(
        kernel,
        out_shape=jax.ShapeDtypeStruct((N, r2, Cout_p), jnp.bfloat16),
        grid_spec=pltpu.PrefetchScalarGridSpec(
            num_scalar_prefetch=0,
            grid=(N,),
            in_specs=[
                pl.BlockSpec((1, rows_in, Cin_k), lambda n: (n, 0, 0)),
                # Constant index maps: weight/bias slabs are fetched once.
                pl.BlockSpec((9, Cin_k, Cmid_p), lambda n: (0, 0, 0)),
                pl.BlockSpec((1, Cmid_p), lambda n: (0, 0)),
                pl.BlockSpec((9, Cmid_p, Cout_p), lambda n: (0, 0, 0)),
                pl.BlockSpec((1, Cout_p), lambda n: (0, 0)),
            ],
            out_specs=pl.BlockSpec((1, r2, Cout_p), lambda n: (n, 0, 0)),
            scratch_shapes=[
                pltpu.VMEM((H1 * Wp + SUBLANE, Cmid_p), jnp.bfloat16),  # h1
                pltpu.VMEM((H1 * Wp, Cmid_p), jnp.float32),             # acc1
                pltpu.VMEM((r2, Cout_p), jnp.float32),                  # acc2
            ],
        ),
        compiler_params=pltpu.CompilerParams(
            dimension_semantics=("parallel",),
            vmem_limit_bytes=32 * 1024 * 1024),
        cost_estimate=pl.CostEstimate(
            flops=flops, transcendentals=0, bytes_accessed=bytes_accessed),
    )(x, w1k, b1k, w2k, b2k)

    # Free crops in XLA: drop wrap/pad columns and padded channels, back to NCHW.
    out = out.reshape(N, Hout, Wp, Cout_p)[:, :, :Wout, :Cout]
    return jnp.transpose(out, (0, 3, 1, 2)).astype(jnp.float32)


def _reference(x_nchw, w1, b1, w2, b2):
    """Pure-JAX reference at the kernel's precision (bf16 operands, f32 accum)."""
    dn = ("NCHW", "OIHW", "NCHW")
    y = lax.conv_general_dilated(
        x_nchw.astype(jnp.bfloat16), w1.astype(jnp.bfloat16), (1, 1), "VALID",
        dimension_numbers=dn, preferred_element_type=jnp.float32)
    y = jnp.maximum(y + b1[None, :, None, None], 0.0).astype(jnp.bfloat16)
    y = lax.conv_general_dilated(
        y, w2.astype(jnp.bfloat16), (1, 1), "VALID",
        dimension_numbers=dn, preferred_element_type=jnp.float32)
    return jnp.maximum(y + b2[None, :, None, None], 0.0)


def _init_params(key, ch_in, ch_out):
    """Deterministic PyTorch-like uniform init (bound = 1/sqrt(fan_in))."""
    k1, k2, k3, k4 = jax.random.split(key, 4)
    bnd1 = 1.0 / jnp.sqrt(ch_in * 3 * 3)
    bnd2 = 1.0 / jnp.sqrt(ch_out * 3 * 3)
    w1 = jax.random.uniform(k1, (ch_out, ch_in, 3, 3), jnp.float32, -bnd1, bnd1)
    b1 = jax.random.uniform(k2, (ch_out,), jnp.float32, -bnd1, bnd1)
    w2 = jax.random.uniform(k3, (ch_out, ch_out, 3, 3), jnp.float32, -bnd2, bnd2)
    b2 = jax.random.uniform(k4, (ch_out,), jnp.float32, -bnd2, bnd2)
    return w1, b1, w2, b2


if __name__ == "__main__":
    key = jax.random.PRNGKey(0)
    k_x, k_p = jax.random.split(key)

    N, C_IN, C_OUT, H, W = 2, 4, 8, 16, 16
    x = jax.random.normal(k_x, (N, C_IN, H, W), jnp.float32)
    w1, b1, w2, b2 = _init_params(k_p, C_IN, C_OUT)

    out = jax.block_until_ready(block_forward(x, w1, b1, w2, b2))
    ref = _reference(x, w1, b1, w2, b2)

    assert out.shape == (N, C_OUT, H - 4, W - 4), out.shape
    assert jnp.allclose(out, ref, atol=2e-2, rtol=2e-2), \
        float(jnp.max(jnp.abs(out - ref)))
    print("KERNEL_OK")
</pallas_src>

<mosaic_0001>
module attributes {stable_mosaic.version = 11 : i64} {
  func.func @_block_kernel(%arg0: i32, %arg1: memref<1x264x8xbf16, #tpu.memory_space<vmem>>, %arg2: memref<9x8x128xbf16, #tpu.memory_space<vmem>>, %arg3: memref<1x128xf32, #tpu.memory_space<vmem>>, %arg4: memref<9x128x128xbf16, #tpu.memory_space<vmem>>, %arg5: memref<1x128xf32, #tpu.memory_space<vmem>>, %arg6: memref<1x192x128xbf16, #tpu.memory_space<vmem>>, %arg7: memref<232x128xbf16, #tpu.memory_space<vmem>>, %arg8: memref<224x128xf32, #tpu.memory_space<vmem>>, %arg9: memref<192x128xf32, #tpu.memory_space<vmem>>) attributes {dimension_semantics = [#tpu.dimension_semantics<parallel>], iteration_bounds = array<i64: 2>, scalar_prefetch = 0 : i64, scratch_operands = 3 : i64, tpu.core_type = #tpu.core_type<tc>, window_params = [{transform_indices = @transform_0, window_bounds = array<i64: 1, 264, 8>}, {pipeline_mode = #tpu.pipeline_mode<synchronous>, transform_indices = @transform_1, window_bounds = array<i64: 9, 8, 128>}, {pipeline_mode = #tpu.pipeline_mode<synchronous>, transform_indices = @transform_2, window_bounds = array<i64: 1, 128>}, {pipeline_mode = #tpu.pipeline_mode<synchronous>, transform_indices = @transform_3, window_bounds = array<i64: 9, 128, 128>}, {pipeline_mode = #tpu.pipeline_mode<synchronous>, transform_indices = @transform_4, window_bounds = array<i64: 1, 128>}, {transform_indices = @transform_5, window_bounds = array<i64: 1, 192, 128>}]} {
    %cst = arith.constant 0.000000e+00 : bf16
    %0 = vector.broadcast %cst : bf16 to vector<8x128xbf16>
    %c224 = arith.constant 224 : index
    %c0 = arith.constant 0 : index
    %1 = vector.load %arg7[%c224, %c0] : memref<232x128xbf16, #tpu.memory_space<vmem>>, vector<8x128xbf16>
    tpu.vector_store %arg7[%c224, %c0], %0 {strides = array<i32>} : memref<232x128xbf16, #tpu.memory_space<vmem>>, vector<8x128xbf16>,
    %c0_0 = arith.constant 0 : index
    %c0_1 = arith.constant 0 : index
    %c0_2 = arith.constant 0 : index
    %2 = vector.load %arg1[%c0_0, %c0_1, %c0_2] : memref<1x264x8xbf16, #tpu.memory_space<vmem>>, vector<1x264x8xbf16>
    %3 = vector.shape_cast %2 : vector<1x264x8xbf16> to vector<264x8xbf16>
    %4 = vector.extract_strided_slice %3 {offsets = [0, 0], sizes = [224, 8], strides = [1, 1]} : vector<264x8xbf16> to vector<224x8xbf16>
    %c0_3 = arith.constant 0 : index
    %c0_4 = arith.constant 0 : index
    %c0_5 = arith.constant 0 : index
    %5 = vector.load %arg2[%c0_3, %c0_4, %c0_5] : memref<9x8x128xbf16, #tpu.memory_space<vmem>>, vector<1x8x128xbf16>
    %6 = vector.shape_cast %5 : vector<1x8x128xbf16> to vector<8x128xbf16>
    %cst_6 = arith.constant dense<0.000000e+00> : vector<224x128xf32>
    %7 = tpu.matmul %4, %6, %cst_6 {dimension_numbers = #tpu.dot_dimension_numbers<[1], [0], [0], [1], [0, 0, 1, 1], [], []>} : vector<224x8xbf16>, vector<8x128xbf16>, vector<224x128xf32> -> vector<224x128xf32>
    %c0_7 = arith.constant 0 : index
    %c0_8 = arith.constant 0 : index
    %8 = vector.load %arg8[%c0_7, %c0_8] : memref<224x128xf32, #tpu.memory_space<vmem>>, vector<224x128xf32>
    tpu.vector_store %arg8[%c0_7, %c0_8], %7 {strides = array<i32>} : memref<224x128xf32, #tpu.memory_space<vmem>>, vector<224x128xf32>,
    %9 = vector.extract_strided_slice %3 {offsets = [1, 0], sizes = [224, 8], strides = [1, 1]} : vector<264x8xbf16> to vector<224x8xbf16>
    %c1 = arith.constant 1 : index
    %c0_9 = arith.constant 0 : index
    %c0_10 = arith.constant 0 : index
    %10 = vector.load %arg2[%c1, %c0_9, %c0_10] : memref<9x8x128xbf16, #tpu.memory_space<vmem>>, vector<1x8x128xbf16>
    %11 = vector.shape_cast %10 : vector<1x8x128xbf16> to vector<8x128xbf16>
    %cst_11 = arith.constant dense<0.000000e+00> : vector<224x128xf32>
    %12 = tpu.matmul %9, %11, %cst_11 {dimension_numbers = #tpu.dot_dimension_numbers<[1], [0], [0], [1], [0, 0, 1, 1], [], []>} : vector<224x8xbf16>, vector<8x128xbf16>, vector<224x128xf32> -> vector<224x128xf32>
    %c0_12 = arith.constant 0 : index
    %c0_13 = arith.constant 0 : index
    %13 = vector.load %arg8[%c0_12, %c0_13] : memref<224x128xf32, #tpu.memory_space<vmem>>, vector<224x128xf32>
    %14 = arith.addf %13, %12 : vector<224x128xf32>
    %c0_14 = arith.constant 0 : index
    %c0_15 = arith.constant 0 : index
    %15 = vector.load %arg8[%c0_14, %c0_15] : memref<224x128xf32, #tpu.memory_space<vmem>>, vector<224x128xf32>
    tpu.vector_store %arg8[%c0_14, %c0_15], %14 {strides = array<i32>} : memref<224x128xf32, #tpu.memory_space<vmem>>, vector<224x128xf32>,
    %16 = vector.extract_strided_slice %3 {offsets = [2, 0], sizes = [224, 8], strides = [1, 1]} : vector<264x8xbf16> to vector<224x8xbf16>
    %c2 = arith.constant 2 : index
    %c0_16 = arith.constant 0 : index
    %c0_17 = arith.constant 0 : index
    %17 = vector.load %arg2[%c2, %c0_16, %c0_17] : memref<9x8x128xbf16, #tpu.memory_space<vmem>>, vector<1x8x128xbf16>
    %18 = vector.shape_cast %17 : vector<1x8x128xbf16> to vector<8x128xbf16>
    %cst_18 = arith.constant dense<0.000000e+00> : vector<224x128xf32>
    %19 = tpu.matmul %16, %18, %cst_18 {dimension_numbers = #tpu.dot_dimension_numbers<[1], [0], [0], [1], [0, 0, 1, 1], [], []>} : vector<224x8xbf16>, vector<8x128xbf16>, vector<224x128xf32> -> vector<224x128xf32>
    %c0_19 = arith.constant 0 : index
    %c0_20 = arith.constant 0 : index
    %20 = vector.load %arg8[%c0_19, %c0_20] : memref<224x128xf32, #tpu.memory_space<vmem>>, vector<224x128xf32>
    %21 = arith.addf %20, %19 : vector<224x128xf32>
    %c0_21 = arith.constant 0 : index
    %c0_22 = arith.constant 0 : index
    %22 = vector.load %arg8[%c0_21, %c0_22] : memref<224x128xf32, #tpu.memory_space<vmem>>, vector<224x128xf32>
    tpu.vector_store %arg8[%c0_21, %c0_22], %21 {strides = array<i32>} : memref<224x128xf32, #tpu.memory_space<vmem>>, vector<224x128xf32>,
    %23 = vector.extract_strided_slice %3 {offsets = [16, 0], sizes = [224, 8], strides = [1, 1]} : vector<264x8xbf16> to vector<224x8xbf16>
    %c3 = arith.constant 3 : index
    %c0_23 = arith.constant 0 : index
    %c0_24 = arith.constant 0 : index
    %24 = vector.load %arg2[%c3, %c0_23, %c0_24] : memref<9x8x128xbf16, #tpu.memory_space<vmem>>, vector<1x8x128xbf16>
    %25 = vector.shape_cast %24 : vector<1x8x128xbf16> to vector<8x128xbf16>
    %cst_25 = arith.constant dense<0.000000e+00> : vector<224x128xf32>
    %26 = tpu.matmul %23, %25, %cst_25 {dimension_numbers = #tpu.dot_dimension_numbers<[1], [0], [0], [1], [0, 0, 1, 1], [], []>} : vector<224x8xbf16>, vector<8x128xbf16>, vector<224x128xf32> -> vector<224x128xf32>
    %c0_26 = arith.constant 0 : index
    %c0_27 = arith.constant 0 : index
    %27 = vector.load %arg8[%c0_26, %c0_27] : memref<224x128xf32, #tpu.memory_space<vmem>>, vector<224x128xf32>
    %28 = arith.addf %27, %26 : vector<224x128xf32>
    %c0_28 = arith.constant 0 : index
    %c0_29 = arith.constant 0 : index
    %29 = vector.load %arg8[%c0_28, %c0_29] : memref<224x128xf32, #tpu.memory_space<vmem>>, vector<224x128xf32>
    tpu.vector_store %arg8[%c0_28, %c0_29], %28 {strides = array<i32>} : memref<224x128xf32, #tpu.memory_space<vmem>>, vector<224x128xf32>,
    %30 = vector.extract_strided_slice %3 {offsets = [17, 0], sizes = [224, 8], strides = [1, 1]} : vector<264x8xbf16> to vector<224x8xbf16>
    %c4 = arith.constant 4 : index
    %c0_30 = arith.constant 0 : index
    %c0_31 = arith.constant 0 : index
    %31 = vector.load %arg2[%c4, %c0_30, %c0_31] : memref<9x8x128xbf16, #tpu.memory_space<vmem>>, vector<1x8x128xbf16>
    %32 = vector.shape_cast %31 : vector<1x8x128xbf16> to vector<8x128xbf16>
    %cst_32 = arith.constant dense<0.000000e+00> : vector<224x128xf32>
    %33 = tpu.matmul %30, %32, %cst_32 {dimension_numbers = #tpu.dot_dimension_numbers<[1], [0], [0], [1], [0, 0, 1, 1], [], []>} : vector<224x8xbf16>, vector<8x128xbf16>, vector<224x128xf32> -> vector<224x128xf32>
    %c0_33 = arith.constant 0 : index
    %c0_34 = arith.constant 0 : index
    %34 = vector.load %arg8[%c0_33, %c0_34] : memref<224x128xf32, #tpu.memory_space<vmem>>, vector<224x128xf32>
    %35 = arith.addf %34, %33 : vector<224x128xf32>
    %c0_35 = arith.constant 0 : index
    %c0_36 = arith.constant 0 : index
    %36 = vector.load %arg8[%c0_35, %c0_36] : memref<224x128xf32, #tpu.memory_space<vmem>>, vector<224x128xf32>
    tpu.vector_store %arg8[%c0_35, %c0_36], %35 {strides = array<i32>} : memref<224x128xf32, #tpu.memory_space<vmem>>, vector<224x128xf32>,
    %37 = vector.extract_strided_slice %3 {offsets = [18, 0], sizes = [224, 8], strides = [1, 1]} : vector<264x8xbf16> to vector<224x8xbf16>
    %c5 = arith.constant 5 : index
    %c0_37 = arith.constant 0 : index
    %c0_38 = arith.constant 0 : index
    %38 = vector.load %arg2[%c5, %c0_37, %c0_38] : memref<9x8x128xbf16, #tpu.memory_space<vmem>>, vector<1x8x128xbf16>
    %39 = vector.shape_cast %38 : vector<1x8x128xbf16> to vector<8x128xbf16>
    %cst_39 = arith.constant dense<0.000000e+00> : vector<224x128xf32>
    %40 = tpu.matmul %37, %39, %cst_39 {dimension_numbers = #tpu.dot_dimension_numbers<[1], [0], [0], [1], [0, 0, 1, 1], [], []>} : vector<224x8xbf16>, vector<8x128xbf16>, vector<224x128xf32> -> vector<224x128xf32>
    %c0_40 = arith.constant 0 : index
    %c0_41 = arith.constant 0 : index
    %41 = vector.load %arg8[%c0_40, %c0_41] : memref<224x128xf32, #tpu.memory_space<vmem>>, vector<224x128xf32>
    %42 = arith.addf %41, %40 : vector<224x128xf32>
    %c0_42 = arith.constant 0 : index
    %c0_43 = arith.constant 0 : index
    %43 = vector.load %arg8[%c0_42, %c0_43] : memref<224x128xf32, #tpu.memory_space<vmem>>, vector<224x128xf32>
    tpu.vector_store %arg8[%c0_42, %c0_43], %42 {strides = array<i32>} : memref<224x128xf32, #tpu.memory_space<vmem>>, vector<224x128xf32>,
    %44 = vector.extract_strided_slice %3 {offsets = [32, 0], sizes = [224, 8], strides = [1, 1]} : vector<264x8xbf16> to vector<224x8xbf16>
    %c6 = arith.constant 6 : index
    %c0_44 = arith.constant 0 : index
    %c0_45 = arith.constant 0 : index
    %45 = vector.load %arg2[%c6, %c0_44, %c0_45] : memref<9x8x128xbf16, #tpu.memory_space<vmem>>, vector<1x8x128xbf16>
    %46 = vector.shape_cast %45 : vector<1x8x128xbf16> to vector<8x128xbf16>
    %cst_46 = arith.constant dense<0.000000e+00> : vector<224x128xf32>
    %47 = tpu.matmul %44, %46, %cst_46 {dimension_numbers = #tpu.dot_dimension_numbers<[1], [0], [0], [1], [0, 0, 1, 1], [], []>} : vector<224x8xbf16>, vector<8x128xbf16>, vector<224x128xf32> -> vector<224x128xf32>
    %c0_47 = arith.constant 0 : index
    %c0_48 = arith.constant 0 : index
    %48 = vector.load %arg8[%c0_47, %c0_48] : memref<224x128xf32, #tpu.memory_space<vmem>>, vector<224x128xf32>
    %49 = arith.addf %48, %47 : vector<224x128xf32>
    %c0_49 = arith.constant 0 : index
    %c0_50 = arith.constant 0 : index
    %50 = vector.load %arg8[%c0_49, %c0_50] : memref<224x128xf32, #tpu.memory_space<vmem>>, vector<224x128xf32>
    tpu.vector_store %arg8[%c0_49, %c0_50], %49 {strides = array<i32>} : memref<224x128xf32, #tpu.memory_space<vmem>>, vector<224x128xf32>,
    %51 = vector.extract_strided_slice %3 {offsets = [33, 0], sizes = [224, 8], strides = [1, 1]} : vector<264x8xbf16> to vector<224x8xbf16>
    %c7 = arith.constant 7 : index
    %c0_51 = arith.constant 0 : index
    %c0_52 = arith.constant 0 : index
    %52 = vector.load %arg2[%c7, %c0_51, %c0_52] : memref<9x8x128xbf16, #tpu.memory_space<vmem>>, vector<1x8x128xbf16>
    %53 = vector.shape_cast %52 : vector<1x8x128xbf16> to vector<8x128xbf16>
    %cst_53 = arith.constant dense<0.000000e+00> : vector<224x128xf32>
    %54 = tpu.matmul %51, %53, %cst_53 {dimension_numbers = #tpu.dot_dimension_numbers<[1], [0], [0], [1], [0, 0, 1, 1], [], []>} : vector<224x8xbf16>, vector<8x128xbf16>, vector<224x128xf32> -> vector<224x128xf32>
    %c0_54 = arith.constant 0 : index
    %c0_55 = arith.constant 0 : index
    %55 = vector.load %arg8[%c0_54, %c0_55] : memref<224x128xf32, #tpu.memory_space<vmem>>, vector<224x128xf32>
    %56 = arith.addf %55, %54 : vector<224x128xf32>
    %c0_56 = arith.constant 0 : index
    %c0_57 = arith.constant 0 : index
    %57 = vector.load %arg8[%c0_56, %c0_57] : memref<224x128xf32, #tpu.memory_space<vmem>>, vector<224x128xf32>
    tpu.vector_store %arg8[%c0_56, %c0_57], %56 {strides = array<i32>} : memref<224x128xf32, #tpu.memory_space<vmem>>, vector<224x128xf32>,
    %58 = vector.extract_strided_slice %3 {offsets = [34, 0], sizes = [224, 8], strides = [1, 1]} : vector<264x8xbf16> to vector<224x8xbf16>
    %c8 = arith.constant 8 : index
    %c0_58 = arith.constant 0 : index
    %c0_59 = arith.constant 0 : index
    %59 = vector.load %arg2[%c8, %c0_58, %c0_59] : memref<9x8x128xbf16, #tpu.memory_space<vmem>>, vector<1x8x128xbf16>
    %60 = vector.shape_cast %59 : vector<1x8x128xbf16> to vector<8x128xbf16>
    %cst_60 = arith.constant dense<0.000000e+00> : vector<224x128xf32>
    %61 = tpu.matmul %58, %60, %cst_60 {dimension_numbers = #tpu.dot_dimension_numbers<[1], [0], [0], [1], [0, 0, 1, 1], [], []>} : vector<224x8xbf16>, vector<8x128xbf16>, vector<224x128xf32> -> vector<224x128xf32>
    %c0_61 = arith.constant 0 : index
    %c0_62 = arith.constant 0 : index
    %62 = vector.load %arg8[%c0_61, %c0_62] : memref<224x128xf32, #tpu.memory_space<vmem>>, vector<224x128xf32>
    %63 = arith.addf %62, %61 : vector<224x128xf32>
    %c0_63 = arith.constant 0 : index
    %c0_64 = arith.constant 0 : index
    %64 = vector.load %arg8[%c0_63, %c0_64] : memref<224x128xf32, #tpu.memory_space<vmem>>, vector<224x128xf32>
    tpu.vector_store %arg8[%c0_63, %c0_64], %63 {strides = array<i32>} : memref<224x128xf32, #tpu.memory_space<vmem>>, vector<224x128xf32>,
    %c0_65 = arith.constant 0 : index
    %c0_66 = arith.constant 0 : index
    %65 = vector.load %arg8[%c0_65, %c0_66] : memref<224x128xf32, #tpu.memory_space<vmem>>, vector<224x128xf32>
    %c0_67 = arith.constant 0 : index
    %c0_68 = arith.constant 0 : index
    %66 = vector.load %arg3[%c0_67, %c0_68] : memref<1x128xf32, #tpu.memory_space<vmem>>, vector<1x128xf32>
    %67 = vector.broadcast %66 : vector<1x128xf32> to vector<224x128xf32>
    %68 = arith.addf %65, %67 : vector<224x128xf32>
    %cst_69 = arith.constant 0.000000e+00 : f32
    %69 = vector.broadcast %cst_69 : f32 to vector<224x128xf32>
    %70 = arith.maximumf %68, %69 : vector<224x128xf32>
    %71 = arith.truncf %70 : vector<224x128xf32> to vector<224x128xbf16>
    %c0_70 = arith.constant 0 : index
    %c0_71 = arith.constant 0 : index
    %72 = vector.load %arg7[%c0_70, %c0_71] : memref<232x128xbf16, #tpu.memory_space<vmem>>, vector<224x128xbf16>
    tpu.vector_store %arg7[%c0_70, %c0_71], %71 {strides = array<i32>} : memref<232x128xbf16, #tpu.memory_space<vmem>>, vector<224x128xbf16>,
    %c0_72 = arith.constant 0 : index
    %c0_73 = arith.constant 0 : index
    %73 = vector.load %arg7[%c0_72, %c0_73] : memref<232x128xbf16, #tpu.memory_space<vmem>>, vector<232x128xbf16>
    %74 = vector.extract_strided_slice %73 {offsets = [0, 0], sizes = [192, 128], strides = [1, 1]} : vector<232x128xbf16> to vector<192x128xbf16>
    %c0_74 = arith.constant 0 : index
    %c0_75 = arith.constant 0 : index
    %c0_76 = arith.constant 0 : index
    %75 = vector.load %arg4[%c0_74, %c0_75, %c0_76] : memref<9x128x128xbf16, #tpu.memory_space<vmem>>, vector<1x128x128xbf16>
    %76 = vector.shape_cast %75 : vector<1x128x128xbf16> to vector<128x128xbf16>
    %cst_77 = arith.constant dense<0.000000e+00> : vector<192x128xf32>
    %77 = tpu.matmul %74, %76, %cst_77 {dimension_numbers = #tpu.dot_dimension_numbers<[1], [0], [0], [1], [0, 0, 1, 1], [], []>} : vector<192x128xbf16>, vector<128x128xbf16>, vector<192x128xf32> -> vector<192x128xf32>
    %c0_78 = arith.constant 0 : index
    %c0_79 = arith.constant 0 : index
    %78 = vector.load %arg9[%c0_78, %c0_79] : memref<192x128xf32, #tpu.memory_space<vmem>>, vector<192x128xf32>
    tpu.vector_store %arg9[%c0_78, %c0_79], %77 {strides = array<i32>} : memref<192x128xf32, #tpu.memory_space<vmem>>, vector<192x128xf32>,
    %79 = vector.extract_strided_slice %73 {offsets = [1, 0], sizes = [192, 128], strides = [1, 1]} : vector<232x128xbf16> to vector<192x128xbf16>
    %c1_80 = arith.constant 1 : index
    %c0_81 = arith.constant 0 : index
    %c0_82 = arith.constant 0 : index
    %80 = vector.load %arg4[%c1_80, %c0_81, %c0_82] : memref<9x128x128xbf16, #tpu.memory_space<vmem>>, vector<1x128x128xbf16>
    %81 = vector.shape_cast %80 : vector<1x128x128xbf16> to vector<128x128xbf16>
    %cst_83 = arith.constant dense<0.000000e+00> : vector<192x128xf32>
    %82 = tpu.matmul %79, %81, %cst_83 {dimension_numbers = #tpu.dot_dimension_numbers<[1], [0], [0], [1], [0, 0, 1, 1], [], []>} : vector<192x128xbf16>, vector<128x128xbf16>, vector<192x128xf32> -> vector<192x128xf32>
    %c0_84 = arith.constant 0 : index
    %c0_85 = arith.constant 0 : index
    %83 = vector.load %arg9[%c0_84, %c0_85] : memref<192x128xf32, #tpu.memory_space<vmem>>, vector<192x128xf32>
    %84 = arith.addf %83, %82 : vector<192x128xf32>
    %c0_86 = arith.constant 0 : index
    %c0_87 = arith.constant 0 : index
    %85 = vector.load %arg9[%c0_86, %c0_87] : memref<192x128xf32, #tpu.memory_space<vmem>>, vector<192x128xf32>
    tpu.vector_store %arg9[%c0_86, %c0_87], %84 {strides = array<i32>} : memref<192x128xf32, #tpu.memory_space<vmem>>, vector<192x128xf32>,
    %86 = vector.extract_strided_slice %73 {offsets = [2, 0], sizes = [192, 128], strides = [1, 1]} : vector<232x128xbf16> to vector<192x128xbf16>
    %c2_88 = arith.constant 2 : index
    %c0_89 = arith.constant 0 : index
    %c0_90 = arith.constant 0 : index
    %87 = vector.load %arg4[%c2_88, %c0_89, %c0_90] : memref<9x128x128xbf16, #tpu.memory_space<vmem>>, vector<1x128x128xbf16>
    %88 = vector.shape_cast %87 : vector<1x128x128xbf16> to vector<128x128xbf16>
    %cst_91 = arith.constant dense<0.000000e+00> : vector<192x128xf32>
    %89 = tpu.matmul %86, %88, %cst_91 {dimension_numbers = #tpu.dot_dimension_numbers<[1], [0], [0], [1], [0, 0, 1, 1], [], []>} : vector<192x128xbf16>, vector<128x128xbf16>, vector<192x128xf32> -> vector<192x128xf32>
    %c0_92 = arith.constant 0 : index
    %c0_93 = arith.constant 0 : index
    %90 = vector.load %arg9[%c0_92, %c0_93] : memref<192x128xf32, #tpu.memory_space<vmem>>, vector<192x128xf32>
    %91 = arith.addf %90, %89 : vector<192x128xf32>
    %c0_94 = arith.constant 0 : index
    %c0_95 = arith.constant 0 : index
    %92 = vector.load %arg9[%c0_94, %c0_95] : memref<192x128xf32, #tpu.memory_space<vmem>>, vector<192x128xf32>
    tpu.vector_store %arg9[%c0_94, %c0_95], %91 {strides = array<i32>} : memref<192x128xf32, #tpu.memory_space<vmem>>, vector<192x128xf32>,
    %93 = vector.extract_strided_slice %73 {offsets = [16, 0], sizes = [192, 128], strides = [1, 1]} : vector<232x128xbf16> to vector<192x128xbf16>
    %c3_96 = arith.constant 3 : index
    %c0_97 = arith.constant 0 : index
    %c0_98 = arith.constant 0 : index
    %94 = vector.load %arg4[%c3_96, %c0_97, %c0_98] : memref<9x128x128xbf16, #tpu.memory_space<vmem>>, vector<1x128x128xbf16>
    %95 = vector.shape_cast %94 : vector<1x128x128xbf16> to vector<128x128xbf16>
    %cst_99 = arith.constant dense<0.000000e+00> : vector<192x128xf32>
    %96 = tpu.matmul %93, %95, %cst_99 {dimension_numbers = #tpu.dot_dimension_numbers<[1], [0], [0], [1], [0, 0, 1, 1], [], []>} : vector<192x128xbf16>, vector<128x128xbf16>, vector<192x128xf32> -> vector<192x128xf32>
    %c0_100 = arith.constant 0 : index
    %c0_101 = arith.constant 0 : index
    %97 = vector.load %arg9[%c0_100, %c0_101] : memref<192x128xf32, #tpu.memory_space<vmem>>, vector<192x128xf32>
    %98 = arith.addf %97, %96 : vector<192x128xf32>
    %c0_102 = arith.constant 0 : index
    %c0_103 = arith.constant 0 : index
    %99 = vector.load %arg9[%c0_102, %c0_103] : memref<192x128xf32, #tpu.memory_space<vmem>>, vector<192x128xf32>
    tpu.vector_store %arg9[%c0_102, %c0_103], %98 {strides = array<i32>} : memref<192x128xf32, #tpu.memory_space<vmem>>, vector<192x128xf32>,
    %100 = vector.extract_strided_slice %73 {offsets = [17, 0], sizes = [192, 128], strides = [1, 1]} : vector<232x128xbf16> to vector<192x128xbf16>
    %c4_104 = arith.constant 4 : index
    %c0_105 = arith.constant 0 : index
    %c0_106 = arith.constant 0 : index
    %101 = vector.load %arg4[%c4_104, %c0_105, %c0_106] : memref<9x128x128xbf16, #tpu.memory_space<vmem>>, vector<1x128x128xbf16>
    %102 = vector.shape_cast %101 : vector<1x128x128xbf16> to vector<128x128xbf16>
    %cst_107 = arith.constant dense<0.000000e+00> : vector<192x128xf32>
    %103 = tpu.matmul %100, %102, %cst_107 {dimension_numbers = #tpu.dot_dimension_numbers<[1], [0], [0], [1], [0, 0, 1, 1], [], []>} : vector<192x128xbf16>, vector<128x128xbf16>, vector<192x128xf32> -> vector<192x128xf32>
    %c0_108 = arith.constant 0 : index
    %c0_109 = arith.constant 0 : index
    %104 = vector.load %arg9[%c0_108, %c0_109] : memref<192x128xf32, #tpu.memory_space<vmem>>, vector<192x128xf32>
    %105 = arith.addf %104, %103 : vector<192x128xf32>
    %c0_110 = arith.constant 0 : index
    %c0_111 = arith.constant 0 : index
    %106 = vector.load %arg9[%c0_110, %c0_111] : memref<192x128xf32, #tpu.memory_space<vmem>>, vector<192x128xf32>
    tpu.vector_store %arg9[%c0_110, %c0_111], %105 {strides = array<i32>} : memref<192x128xf32, #tpu.memory_space<vmem>>, vector<192x128xf32>,
    %107 = vector.extract_strided_slice %73 {offsets = [18, 0], sizes = [192, 128], strides = [1, 1]} : vector<232x128xbf16> to vector<192x128xbf16>
    %c5_112 = arith.constant 5 : index
    %c0_113 = arith.constant 0 : index
    %c0_114 = arith.constant 0 : index
    %108 = vector.load %arg4[%c5_112, %c0_113, %c0_114] : memref<9x128x128xbf16, #tpu.memory_space<vmem>>, vector<1x128x128xbf16>
    %109 = vector.shape_cast %108 : vector<1x128x128xbf16> to vector<128x128xbf16>
    %cst_115 = arith.constant dense<0.000000e+00> : vector<192x128xf32>
    %110 = tpu.matmul %107, %109, %cst_115 {dimension_numbers = #tpu.dot_dimension_numbers<[1], [0], [0], [1], [0, 0, 1, 1], [], []>} : vector<192x128xbf16>, vector<128x128xbf16>, vector<192x128xf32> -> vector<192x128xf32>
    %c0_116 = arith.constant 0 : index
    %c0_117 = arith.constant 0 : index
    %111 = vector.load %arg9[%c0_116, %c0_117] : memref<192x128xf32, #tpu.memory_space<vmem>>, vector<192x128xf32>
    %112 = arith.addf %111, %110 : vector<192x128xf32>
    %c0_118 = arith.constant 0 : index
    %c0_119 = arith.constant 0 : index
    %113 = vector.load %arg9[%c0_118, %c0_119] : memref<192x128xf32, #tpu.memory_space<vmem>>, vector<192x128xf32>
    tpu.vector_store %arg9[%c0_118, %c0_119], %112 {strides = array<i32>} : memref<192x128xf32, #tpu.memory_space<vmem>>, vector<192x128xf32>,
    %114 = vector.extract_strided_slice %73 {offsets = [32, 0], sizes = [192, 128], strides = [1, 1]} : vector<232x128xbf16> to vector<192x128xbf16>
    %c6_120 = arith.constant 6 : index
    %c0_121 = arith.constant 0 : index
    %c0_122 = arith.constant 0 : index
    %115 = vector.load %arg4[%c6_120, %c0_121, %c0_122] : memref<9x128x128xbf16, #tpu.memory_space<vmem>>, vector<1x128x128xbf16>
    %116 = vector.shape_cast %115 : vector<1x128x128xbf16> to vector<128x128xbf16>
    %cst_123 = arith.constant dense<0.000000e+00> : vector<192x128xf32>
    %117 = tpu.matmul %114, %116, %cst_123 {dimension_numbers = #tpu.dot_dimension_numbers<[1], [0], [0], [1], [0, 0, 1, 1], [], []>} : vector<192x128xbf16>, vector<128x128xbf16>, vector<192x128xf32> -> vector<192x128xf32>
    %c0_124 = arith.constant 0 : index
    %c0_125 = arith.constant 0 : index
    %118 = vector.load %arg9[%c0_124, %c0_125] : memref<192x128xf32, #tpu.memory_space<vmem>>, vector<192x128xf32>
    %119 = arith.addf %118, %117 : vector<192x128xf32>
    %c0_126 = arith.constant 0 : index
    %c0_127 = arith.constant 0 : index
    %120 = vector.load %arg9[%c0_126, %c0_127] : memref<192x128xf32, #tpu.memory_space<vmem>>, vector<192x128xf32>
    tpu.vector_store %arg9[%c0_126, %c0_127], %119 {strides = array<i32>} : memref<192x128xf32, #tpu.memory_space<vmem>>, vector<192x128xf32>,
    %121 = vector.extract_strided_slice %73 {offsets = [33, 0], sizes = [192, 128], strides = [1, 1]} : vector<232x128xbf16> to vector<192x128xbf16>
    %c7_128 = arith.constant 7 : index
    %c0_129 = arith.constant 0 : index
    %c0_130 = arith.constant 0 : index
    %122 = vector.load %arg4[%c7_128, %c0_129, %c0_130] : memref<9x128x128xbf16, #tpu.memory_space<vmem>>, vector<1x128x128xbf16>
    %123 = vector.shape_cast %122 : vector<1x128x128xbf16> to vector<128x128xbf16>
    %cst_131 = arith.constant dense<0.000000e+00> : vector<192x128xf32>
    %124 = tpu.matmul %121, %123, %cst_131 {dimension_numbers = #tpu.dot_dimension_numbers<[1], [0], [0], [1], [0, 0, 1, 1], [], []>} : vector<192x128xbf16>, vector<128x128xbf16>, vector<192x128xf32> -> vector<192x128xf32>
    %c0_132 = arith.constant 0 : index
    %c0_133 = arith.constant 0 : index
    %125 = vector.load %arg9[%c0_132, %c0_133] : memref<192x128xf32, #tpu.memory_space<vmem>>, vector<192x128xf32>
    %126 = arith.addf %125, %124 : vector<192x128xf32>
    %c0_134 = arith.constant 0 : index
    %c0_135 = arith.constant 0 : index
    %127 = vector.load %arg9[%c0_134, %c0_135] : memref<192x128xf32, #tpu.memory_space<vmem>>, vector<192x128xf32>
    tpu.vector_store %arg9[%c0_134, %c0_135], %126 {strides = array<i32>} : memref<192x128xf32, #tpu.memory_space<vmem>>, vector<192x128xf32>,
    %128 = vector.extract_strided_slice %73 {offsets = [34, 0], sizes = [192, 128], strides = [1, 1]} : vector<232x128xbf16> to vector<192x128xbf16>
    %c8_136 = arith.constant 8 : index
    %c0_137 = arith.constant 0 : index
    %c0_138 = arith.constant 0 : index
    %129 = vector.load %arg4[%c8_136, %c0_137, %c0_138] : memref<9x128x128xbf16, #tpu.memory_space<vmem>>, vector<1x128x128xbf16>
    %130 = vector.shape_cast %129 : vector<1x128x128xbf16> to vector<128x128xbf16>
    %cst_139 = arith.constant dense<0.000000e+00> : vector<192x128xf32>
    %131 = tpu.matmul %128, %130, %cst_139 {dimension_numbers = #tpu.dot_dimension_numbers<[1], [0], [0], [1], [0, 0, 1, 1], [], []>} : vector<192x128xbf16>, vector<128x128xbf16>, vector<192x128xf32> -> vector<192x128xf32>
    %c0_140 = arith.constant 0 : index
    %c0_141 = arith.constant 0 : index
    %132 = vector.load %arg9[%c0_140, %c0_141] : memref<192x128xf32, #tpu.memory_space<vmem>>, vector<192x128xf32>
    %133 = arith.addf %132, %131 : vector<192x128xf32>
    %c0_142 = arith.constant 0 : index
    %c0_143 = arith.constant 0 : index
    %134 = vector.load %arg9[%c0_142, %c0_143] : memref<192x128xf32, #tpu.memory_space<vmem>>, vector<192x128xf32>
    tpu.vector_store %arg9[%c0_142, %c0_143], %133 {strides = array<i32>} : memref<192x128xf32, #tpu.memory_space<vmem>>, vector<192x128xf32>,
    %c0_144 = arith.constant 0 : index
    %c0_145 = arith.constant 0 : index
    %135 = vector.load %arg9[%c0_144, %c0_145] : memref<192x128xf32, #tpu.memory_space<vmem>>, vector<192x128xf32>
    %c0_146 = arith.constant 0 : index
    %c0_147 = arith.constant 0 : index
    %136 = vector.load %arg5[%c0_146, %c0_147] : memref<1x128xf32, #tpu.memory_space<vmem>>, vector<1x128xf32>
    %137 = vector.broadcast %136 : vector<1x128xf32> to vector<192x128xf32>
    %138 = arith.addf %135, %137 : vector<192x128xf32>
    %cst_148 = arith.constant 0.000000e+00 : f32
    %139 = vector.broadcast %cst_148 : f32 to vector<192x128xf32>
    %140 = arith.maximumf %138, %139 : vector<192x128xf32>
    %141 = arith.truncf %140 : vector<192x128xf32> to vector<192x128xbf16>
    %c0_149 = arith.constant 0 : index
    %c0_150 = arith.constant 0 : index
    %c0_151 = arith.constant 0 : index
    %142 = vector.load %arg6[%c0_149, %c0_150, %c0_151] : memref<1x192x128xbf16, #tpu.memory_space<vmem>>, vector<1x192x128xbf16>
    %143 = vector.shape_cast %142 : vector<1x192x128xbf16> to vector<192x128xbf16>
    %144 = vector.shape_cast %141 : vector<192x128xbf16> to vector<1x192x128xbf16>
    tpu.vector_store %arg6[%c0_149, %c0_150, %c0_151], %144 {strides = array<i32>} : memref<1x192x128xbf16, #tpu.memory_space<vmem>>, vector<1x192x128xbf16>,
    return
  }
  func.func @transform_0(%arg0: i32) -> (i32, i32, i32) {
    %c0_i32 = arith.constant 0 : i32
    %c0_i32_0 = arith.constant 0 : i32
    %c0_i32_1 = arith.constant 0 : i32
    return %arg0, %c0_i32, %c0_i32_0 : i32, i32, i32
  }
  func.func @transform_1(%arg0: i32) -> (i32, i32, i32) {
    %c0_i32 = arith.constant 0 : i32
    %c0_i32_0 = arith.constant 0 : i32
    %c0_i32_1 = arith.constant 0 : i32
    %c0_i32_2 = arith.constant 0 : i32
    return %c0_i32, %c0_i32_0, %c0_i32_1 : i32, i32, i32
  }
  func.func @transform_2(%arg0: i32) -> (i32, i32) {
    %c0_i32 = arith.constant 0 : i32
    %c0_i32_0 = arith.constant 0 : i32
    %c0_i32_1 = arith.constant 0 : i32
    return %c0_i32, %c0_i32_0 : i32, i32
  }
  func.func @transform_3(%arg0: i32) -> (i32, i32, i32) {
    %c0_i32 = arith.constant 0 : i32
    %c0_i32_0 = arith.constant 0 : i32
    %c0_i32_1 = arith.constant 0 : i32
    %c0_i32_2 = arith.constant 0 : i32
    return %c0_i32, %c0_i32_0, %c0_i32_1 : i32, i32, i32
  }
  func.func @transform_4(%arg0: i32) -> (i32, i32) {
    %c0_i32 = arith.constant 0 : i32
    %c0_i32_0 = arith.constant 0 : i32
    %c0_i32_1 = arith.constant 0 : i32
    return %c0_i32, %c0_i32_0 : i32, i32
  }
  func.func @transform_5(%arg0: i32) -> (i32, i32, i32) {
    %c0_i32 = arith.constant 0 : i32
    %c0_i32_0 = arith.constant 0 : i32
    %c0_i32_1 = arith.constant 0 : i32
    return %arg0, %c0_i32, %c0_i32_0 : i32, i32, i32
  }
}

</mosaic_0001>

<llo_original>
// kernel: block_forward.1
$region0: #{block_forward.1}
  #allocation0 [shape = 'u32[]', space=smem, size = 0x4, offset = 0x4, fixed_abs, tag = 'smem constant byte address 0x4 - core index']
  #allocation1 [shape = 'u32[144,128]{1,0:T(1,128)}', space=vmem, size = 0x12000, scoped, tag = 'internal scratch']
  #allocation2 [shape = 'bf16[232,128]{1,0:T(8,128)(2,1)}', space=vmem, size = 0xe800, scoped, tag = 'scratch operand']
  #allocation3 [shape = 'f32[224,128]{1,0:T(8,128)}', space=vmem, size = 0x1c000, scoped, tag = 'scratch operand']
  #allocation4 [shape = 'f32[192,128]{1,0:T(8,128)}', space=vmem, size = 0x18000, scoped, tag = 'scratch operand']
  %s0 = inlined_call_operand.vmem [shape: bf16[2,264,8], index: 0, kind: input, shape index: {}]
  %s1 = inlined_call_operand.vmem [shape: bf16[9,8,128], index: 1, kind: input, shape index: {}]
  %s2 = inlined_call_operand.vmem [shape: f32[1,128], index: 2, kind: input, shape index: {}]
  %s3 = inlined_call_operand.vmem [shape: bf16[9,128,128], index: 3, kind: input, shape index: {}]
  %s4 = inlined_call_operand.vmem [shape: f32[1,128], index: 4, kind: input, shape index: {}]
  %s5 = inlined_call_operand.vmem [shape: bf16[2,192,128], index: 5, kind: output, shape index: {}]
  %s6 = sld [smem:[#allocation0]]
  $region53: #{block_forward.1} parent=0
    _
  %s8 = ssub.s32 1, %s6
  %s9 = scalar_select 0, %s8, %s6
  loop: start=0, step=1, limit=4
  $region2: #{block_forward.1} parent=0 // loop_pre_header
    _
  $region3: #{block_forward.1} parent=0 // loop_header
    %s11 = sphi 0, %s15
    %p12 = scmp.ge.s32.totalorder %s11, 4
    %s21 = sphi 0, %s23
    %s24 = sphi 0, %s21
    %s25 = sphi 0, %s24
    %s41 = sphi 0, %s25
    %s45 = sphi 0, %s45
    %s47 = sphi 0, %s45
    %s48 = sphi 0, %s47
    %s62 = sphi 0, %s48
    %s66 = sphi 0, %s66
    %s68 = sphi 0, %s66
    %s69 = sphi 0, %s68
    %s83 = sphi 0, %s69
    %s87 = sphi 0, %s87
    %s89 = sphi 0, %s87
    %s90 = sphi 0, %s89
    %s104 = sphi 0, %s90
    %s108 = sphi 0, %s108
    %s110 = sphi 0, %s108
    %s111 = sphi 0, %s110
    %s125 = sphi 0, %s111
    %s131 = sphi 0, %s133
    %s134 = sphi 0, %s131
    %s135 = sphi 0, %s134
    %s151 = sphi 0, %s135
  $region4: #{block_forward.1} parent=0 // loop_header_branch
    %14 = sbr.rel (%p12) target = $region8
  $region5: #{block_forward.1} parent=0 // loop_body
    %s16 = ssub.s32 %s11, 1
    %s17 = ssub.s32 %s11, 2
    %s18 = sadd.s32 %s11, 1
    %s19 = ssub.s32 %s11, %s18
    %p20 = scmp.eq.s32.totalorder %s19, 0
    %s22 = sadd.s32 %s21, 1
    %s23 = scalar_select %p20, %s21, %s22
    %p26 = pneg %p20
    %p27 = scmp.eq.s32.totalorder %s11, 1
    %p28 = por %p26, %p27
    %p29 = scmp.ne.s32.totalorder %s21, %s24
    %p30 = scmp.eq.s32.totalorder %s11, 0
    %p31 = por %p29, %p30
    %p32 = scmp.ne.s32.totalorder %s21, %s24
    %p33 = scmp.eq.s32.totalorder %s16, 1
    %p34 = por %p32, %p33
    %p35 = scmp.ne.s32.totalorder %s24, %s25
    %p36 = scmp.eq.s32.totalorder %s16, 0
    %p37 = por %p35, %p36
    %p38 = scmp.ne.s32.totalorder %s24, %s25
    %p39 = scmp.eq.s32.totalorder %s17, 1
    %p40 = por %p38, %p39
    %p42 = scmp.ne.s32.totalorder %s25, %s41
    %p43 = scmp.eq.s32.totalorder %s17, 0
    %p44 = por %p42, %p43
    %s46 = sadd.s32 %s45, 1
    %p49 = scmp.eq.s32.totalorder %s11, 1
    %p50 = scmp.ne.s32.totalorder %s45, %s47
    %p51 = scmp.eq.s32.totalorder %s11, 0
    %p52 = por %p50, %p51
    %p53 = scmp.ne.s32.totalorder %s45, %s47
    %p54 = scmp.eq.s32.totalorder %s16, 1
    %p55 = por %p53, %p54
    %p56 = scmp.ne.s32.totalorder %s47, %s48
    %p57 = scmp.eq.s32.totalorder %s16, 0
    %p58 = por %p56, %p57
    %p59 = scmp.ne.s32.totalorder %s47, %s48
    %p60 = scmp.eq.s32.totalorder %s17, 1
    %p61 = por %p59, %p60
    %p63 = scmp.ne.s32.totalorder %s48, %s62
    %p64 = scmp.eq.s32.totalorder %s17, 0
    %p65 = por %p63, %p64
    %s67 = sadd.s32 %s66, 1
    %p70 = scmp.eq.s32.totalorder %s11, 1
    %p71 = scmp.ne.s32.totalorder %s66, %s68
    %p72 = scmp.eq.s32.totalorder %s11, 0
    %p73 = por %p71, %p72
    %p74 = scmp.ne.s32.totalorder %s66, %s68
    %p75 = scmp.eq.s32.totalorder %s16, 1
    %p76 = por %p74, %p75
    %p77 = scmp.ne.s32.totalorder %s68, %s69
    %p78 = scmp.eq.s32.totalorder %s16, 0
    %p79 = por %p77, %p78
    %p80 = scmp.ne.s32.totalorder %s68, %s69
    %p81 = scmp.eq.s32.totalorder %s17, 1
    %p82 = por %p80, %p81
    %p84 = scmp.ne.s32.totalorder %s69, %s83
    %p85 = scmp.eq.s32.totalorder %s17, 0
    %p86 = por %p84, %p85
    %s88 = sadd.s32 %s87, 1
    %p91 = scmp.eq.s32.totalorder %s11, 1
    %p92 = scmp.ne.s32.totalorder %s87, %s89
    %p93 = scmp.eq.s32.totalorder %s11, 0
    %p94 = por %p92, %p93
    %p95 = scmp.ne.s32.totalorder %s87, %s89
    %p96 = scmp.eq.s32.totalorder %s16, 1
    %p97 = por %p95, %p96
    %p98 = scmp.ne.s32.totalorder %s89, %s90
    %p99 = scmp.eq.s32.totalorder %s16, 0
    %p100 = por %p98, %p99
    %p101 = scmp.ne.s32.totalorder %s89, %s90
    %p102 = scmp.eq.s32.totalorder %s17, 1
    %p103 = por %p101, %p102
    %p105 = scmp.ne.s32.totalorder %s90, %s104
    %p106 = scmp.eq.s32.totalorder %s17, 0
    %p107 = por %p105, %p106
    %s109 = sadd.s32 %s108, 1
    %p112 = scmp.eq.s32.totalorder %s11, 1
    %p113 = scmp.ne.s32.totalorder %s108, %s110
    %p114 = scmp.eq.s32.totalorder %s11, 0
    %p115 = por %p113, %p114
    %p116 = scmp.ne.s32.totalorder %s108, %s110
    %p117 = scmp.eq.s32.totalorder %s16, 1
    %p118 = por %p116, %p117
    %p119 = scmp.ne.s32.totalorder %s110, %s111
    %p120 = scmp.eq.s32.totalorder %s16, 0
    %p121 = por %p119, %p120
    %p122 = scmp.ne.s32.totalorder %s110, %s111
    %p123 = scmp.eq.s32.totalorder %s17, 1
    %p124 = por %p122, %p123
    %p126 = scmp.ne.s32.totalorder %s111, %s125
    %p127 = scmp.eq.s32.totalorder %s17, 0
    %p128 = por %p126, %p127
    %s129 = ssub.s32 %s11, %s18
    %p130 = scmp.eq.s32.totalorder %s129, 0
    %s132 = sadd.s32 %s131, 1
    %s133 = scalar_select %p130, %s131, %s132
    %p136 = pneg %p130
    %p137 = scmp.eq.s32.totalorder %s11, 1
    %p138 = por %p136, %p137
    %p139 = scmp.ne.s32.totalorder %s131, %s134
    %p140 = scmp.eq.s32.totalorder %s11, 0
    %p141 = por %p139, %p140
    %p142 = scmp.ne.s32.totalorder %s131, %s134
    %p143 = scmp.eq.s32.totalorder %s16, 1
    %p144 = por %p142, %p143
    %p145 = scmp.ne.s32.totalorder %s134, %s135
    %p146 = scmp.eq.s32.totalorder %s16, 0
    %p147 = por %p145, %p146
    %p148 = scmp.ne.s32.totalorder %s134, %s135
    %p149 = scmp.eq.s32.totalorder %s17, 1
    %p150 = por %p148, %p149
    %p152 = scmp.ne.s32.totalorder %s135, %s151
    %p153 = scmp.eq.s32.totalorder %s17, 0
    %p154 = por %p152, %p153
    %p155 = scmp.le.s32.totalorder 1, %s11
    %p156 = scmp.lt.s32.totalorder %s11, 3
    %p157 = pnand %p155, %p156
    %p158 = pneg %p157
    // Predicated region
    $region9: #{block_forward.1} parent=5 // pred_check
      _
    $region10: #{block_forward.1} parent=5 // pred_check_branch
      %160 = sbr.rel (%p157) target = $region12
    $region11: #{block_forward.1} parent=5 // pred_region
      %s161 = ssub.s32 %s11, 1
      // Predicated region
      $region13: #{block_forward.1} parent=11 // pred_check
        %p162 = pneg %p58
      $region14: #{block_forward.1} parent=11 // pred_check_branch
        %164 = sbr.rel (%p162) target = $region16
      $region15: #{block_forward.1} parent=11 // pred_region
        _
      $region16: #{block_forward.1} parent=11 // pred_fallthru
        _
      // Predicated region
      $region17: #{block_forward.1} parent=11 // pred_check
        %p165 = pneg %p79
      $region18: #{block_forward.1} parent=11 // pred_check_branch
        %167 = sbr.rel (%p165) target = $region20
      $region19: #{block_forward.1} parent=11 // pred_region
        _
      $region20: #{block_forward.1} parent=11 // pred_fallthru
        _
      // Predicated region
      $region21: #{block_forward.1} parent=11 // pred_check
        %p168 = pneg %p100
      $region22: #{block_forward.1} parent=11 // pred_check_branch
        %170 = sbr.rel (%p168) target = $region24
      $region23: #{block_forward.1} parent=11 // pred_region
        _
      $region24: #{block_forward.1} parent=11 // pred_fallthru
        _
      // Predicated region
      $region25: #{block_forward.1} parent=11 // pred_check
        %p171 = pneg %p121
      $region26: #{block_forward.1} parent=11 // pred_check_branch
        %173 = sbr.rel (%p171) target = $region28
      $region27: #{block_forward.1} parent=11 // pred_region
        _
      $region28: #{block_forward.1} parent=11 // pred_fallthru
        _
    $region12: #{block_forward.1} parent=5 // pred_fallthru
      _
    %p174 = scmp.lt.s32.totalorder %s11, 2
    // Predicated region
    $region29: #{block_forward.1} parent=5 // pred_check
      %p175 = pneg %p174
    $region30: #{block_forward.1} parent=5 // pred_check_branch
      %177 = sbr.rel (%p175) target = $region32
    $region31: #{block_forward.1} parent=5 // pred_region
      // Predicated region
      $region33: #{block_forward.1} parent=31 // pred_check
        %p178 = pneg %p31
      $region34: #{block_forward.1} parent=31 // pred_check_branch
        %180 = sbr.rel (%p178) target = $region36
      $region35: #{block_forward.1} parent=31 // pred_region
        %p181 = scmp.lt.s32.totalorder %s11, 1
        %s182 = scalar_select %p181, %s11, 1
        %s183 = smul.addr %s182, 33
        %s184 = smul.addr %s183, 4
        %s185 = scalar_lea.vmem %s0, %s184
      $region36: #{block_forward.1} parent=31 // pred_fallthru
        _
    $region32: #{block_forward.1} parent=5 // pred_fallthru
      _
    %p186 = scmp.le.s32.totalorder 1, %s11
    %p187 = scmp.lt.s32.totalorder %s11, 3
    %p188 = pnand %p186, %p187
    %p189 = pneg %p188
    // Predicated region
    $region37: #{block_forward.1} parent=5 // pred_check
      _
    $region38: #{block_forward.1} parent=5 // pred_check_branch
      %191 = sbr.rel (%p188) target = $region40
    $region39: #{block_forward.1} parent=5 // pred_region
      %s192 = ssub.s32 %s11, 1
      %p193 = scmp.lt.s32.totalorder %s16, 1
      %s194 = scalar_select %p193, %s16, 1
      %s195 = smul.addr %s194, 33
      %s196 = smul.addr %s195, 4
      %s197 = scalar_lea.vmem %s0, %s196
      %p198 = pneg %p37
      %p199 = pneg %p34
      %p200 = pneg %p58
      %p201 = pneg %p55
      %p202 = pneg %p79
      %p203 = pneg %p76
      %p204 = pneg %p100
      %p205 = pneg %p97
      %p206 = pneg %p121
      %p207 = pneg %p118
      %p208 = pneg %p147
      %p209 = pneg %p144
      %p210 = scmp.lt.s32.totalorder %s16, 1
      %s211 = scalar_select %p210, %s16, 1
      %s212 = smul.addr %s211, 24
      %s213 = smul.addr %s212, 4
      %s214 = scalar_lea.vmem %s5, %s213
      %p215 = scmp.lt.s32.totalorder %s16, 1
      %s216 = scalar_select %p215, %s16, 1
      %s217 = smul.addr %s216, 33
      %s218 = smul.addr %s217, 4
      %s219 = scalar_lea.vmem %s0, %s218
      %p220 = scmp.lt.s32.totalorder %s16, 1
      %s221 = scalar_select %p220, %s16, 1
      %s222 = smul.addr %s221, 24
      %s223 = smul.addr %s222, 4
      %s224 = scalar_lea.vmem %s5, %s223
      %226 = vst [vmem:[#allocation2 + $0x70] sm:$0xf] 0
      %v227 = vld [vmem:[%s219] sm:$0xf]
      %v228 = vld [vmem:[%s219 + $0x4] sm:$0xf]
      %v229 = vld [vmem:[%s219 + $0x8] sm:$0xf]
      %v230 = vld [vmem:[%s219 + $0xc] sm:$0xf]
      %v231 = vld [vmem:[%s219 + $0x10] sm:$0xf]
      %v232 = vld [vmem:[%s219 + $0x14] sm:$0xf]
      %v233 = vld [vmem:[%s219 + $0x18] sm:$0xf]
      %v234 = vld [vmem:[%s219 + $0x1c] sm:$0xf]
      %v235 = vld [vmem:[%s219 + $0x20] sm:$0xf]
      %v236 = vld [vmem:[%s219 + $0x24] sm:$0xf]
      %v237 = vld [vmem:[%s219 + $0x28] sm:$0xf]
      %v238 = vld [vmem:[%s219 + $0x2c] sm:$0xf]
      %v239 = vld [vmem:[%s219 + $0x30] sm:$0xf]
      %v240 = vld [vmem:[%s219 + $0x34] sm:$0xf]
      %v241 = vld [vmem:[%s219 + $0x38] sm:$0xf]
      %v242 = vld [vmem:[%s219 + $0x3c] sm:$0xf]
      %v243 = vld [vmem:[%s219 + $0x40] sm:$0xf]
      %v244 = vld [vmem:[%s219 + $0x44] sm:$0xf]
      %v245 = vld [vmem:[%s219 + $0x48] sm:$0xf]
      %v246 = vld [vmem:[%s219 + $0x4c] sm:$0xf]
      %v247 = vld [vmem:[%s219 + $0x50] sm:$0xf]
      %v248 = vld [vmem:[%s219 + $0x54] sm:$0xf]
      %v249 = vld [vmem:[%s219 + $0x58] sm:$0xf]
      %v250 = vld [vmem:[%s219 + $0x5c] sm:$0xf]
      %v251 = vld [vmem:[%s219 + $0x60] sm:$0xf]
      %v252 = vld [vmem:[%s219 + $0x64] sm:$0xf]
      %v253 = vld [vmem:[%s219 + $0x68] sm:$0xf]
      %v254 = vld [vmem:[%s219 + $0x6c] sm:$0xf]
      %v255 = vld [vmem:[%s219 + $0x70] sm:$0xf]
      %v256 = vld [vmem:[%s219 + $0x74] sm:$0xf]
      %v257 = vld [vmem:[%s219 + $0x78] sm:$0xf]
      %v258 = vld [vmem:[%s219 + $0x7c] sm:$0xf]
      %v259 = vld [vmem:[%s219 + $0x80] sm:$0xf]
      %v260 = vld [vmem:[%s1] sm:$0xf]
      %v289 = vunpack.c.l.b16 %v227
      %v290 = vunpack.c.l.b16 %v228
      %v291 = vunpack.c.l.b16 %v229
      %v292 = vunpack.c.l.b16 %v230
      %v293 = vunpack.c.l.b16 %v231
      %v294 = vunpack.c.l.b16 %v232
      %v295 = vunpack.c.l.b16 %v233
      %v296 = vunpack.c.l.b16 %v234
      %v297 = vunpack.c.l.b16 %v235
      %v298 = vunpack.c.l.b16 %v236
      %v299 = vunpack.c.l.b16 %v237
      %v300 = vunpack.c.l.b16 %v238
      %v301 = vunpack.c.l.b16 %v239
      %v302 = vunpack.c.l.b16 %v240
      %v303 = vunpack.c.l.b16 %v241
      %v304 = vunpack.c.l.b16 %v242
      %v305 = vunpack.c.l.b16 %v243
      %v306 = vunpack.c.l.b16 %v244
      %v307 = vunpack.c.l.b16 %v245
      %v308 = vunpack.c.l.b16 %v246
      %v309 = vunpack.c.l.b16 %v247
      %v310 = vunpack.c.l.b16 %v248
      %v311 = vunpack.c.l.b16 %v249
      %v312 = vunpack.c.l.b16 %v250
      %v313 = vunpack.c.l.b16 %v251
      %v314 = vunpack.c.l.b16 %v252
      %v315 = vunpack.c.l.b16 %v253
      %v316 = vunpack.c.l.b16 %v254
      %v317 = vpack.c.b16 %v290, %v289
      %v318 = vpack.c.b16 %v292, %v291
      %v319 = vpack.c.b16 %v294, %v293
      %v320 = vpack.c.b16 %v296, %v295
      %v321 = vpack.c.b16 %v298, %v297
      %v322 = vpack.c.b16 %v300, %v299
      %v323 = vpack.c.b16 %v302, %v301
      %v324 = vpack.c.b16 %v304, %v303
      %v325 = vpack.c.b16 %v306, %v305
      %v326 = vpack.c.b16 %v308, %v307
      %v327 = vpack.c.b16 %v310, %v309
      %v328 = vpack.c.b16 %v312, %v311
      %v329 = vpack.c.b16 %v314, %v313
      %v330 = vpack.c.b16 %v316, %v315
      %vm331 = vcmask 64512
      %v333 = vsel %vm331, %v317, 0
      %v336 = vsel %vm331, %v318, 0
      %v339 = vsel %vm331, %v319, 0
      %v342 = vsel %vm331, %v320, 0
      %v345 = vsel %vm331, %v321, 0
      %v348 = vsel %vm331, %v322, 0
      %v351 = vsel %vm331, %v323, 0
      %v354 = vsel %vm331, %v324, 0
      %v357 = vsel %vm331, %v325, 0
      %v360 = vsel %vm331, %v326, 0
      %v363 = vsel %vm331, %v327, 0
      %v366 = vsel %vm331, %v328, 0
      %v369 = vsel %vm331, %v329, 0
      %v372 = vsel %vm331, %v330, 0
      %vm374 = vcmask 1043456
      %v376 = vsel %vm374, %v260, 0
      %378 = vmatprep.subr.bf16.mxu0 0
      %379 = vmatpush1.bf16.msra.mxu0 0
      %380 = vmatprep.subr.bf16.mxu0 0
      %381 = vmatpush1.bf16.msra.mxu0 0
      %382 = vmatprep.subr.bf16.mxu0 0
      %383 = vmatpush1.bf16.msra.mxu0 0
      %384 = vmatprep.subr.bf16.mxu0 0
      %385 = vmatpush1.bf16.msra.mxu0 0
      %386 = vmatprep.subr.bf16.mxu0 0
      %387 = vmatpush1.bf16.msra.mxu0 0
      %388 = vmatprep.subr.bf16.mxu0 0
      %389 = vmatpush1.bf16.msra.mxu0 0
      %390 = vmatprep.subr.bf16.mxu0 0
      %391 = vmatpush1.bf16.msra.mxu0 0
      %392 = vmatprep.subr.bf16.mxu0 0
      %393 = vmatpush1.bf16.msra.mxu0 %v376
      %394 = vmatprep.subr.bf16.mxu0 0
      %395 = vmatpush2.bf16.msra.mxu0 0
      %396 = vmatprep.subr.bf16.mxu0 0
      %397 = vmatpush2.bf16.msra.mxu0 0
      %398 = vmatprep.subr.bf16.mxu0 0
      %399 = vmatpush2.bf16.msra.mxu0 0
      %400 = vmatprep.subr.bf16.mxu0 0
      %401 = vmatpush2.bf16.msra.mxu0 0
      %402 = vmatprep.subr.bf16.mxu0 0
      %403 = vmatpush2.bf16.msra.mxu0 0
      %404 = vmatprep.subr.bf16.mxu0 0
      %405 = vmatpush2.bf16.msra.mxu0 0
      %406 = vmatprep.subr.bf16.mxu0 0
      %407 = vmatpush2.bf16.msra.mxu0 0
      %408 = vmatprep.subr.bf16.mxu0 0
      %409 = vmatpush2.bf16.msra.mxu0 0
      %410 = vmatprep.mubr.bf16.mxu0 0
      %411 = vmatmul.mubr.bf16.gmra.mxu0 %v333
      %v412 = vpop.f32.mrf.mxu0
      %v413 = vadd.f32 0.0, %v412
      %v414 = vpop.f32.mrf.mxu0
      %v415 = vpop.f32.mrf.mxu0
      %v416 = vadd.f32 0.0, %v415
      %v417 = vpop.f32.mrf.mxu0
      %418 = vmatprep.mubr.bf16.mxu0 0
      %419 = vmatmul.mubr.bf16.gmra.mxu0 %v336
      %v420 = vpop.f32.mrf.mxu0
      %v421 = vadd.f32 0.0, %v420
      %v422 = vpop.f32.mrf.mxu0
      %v423 = vpop.f32.mrf.mxu0
      %v424 = vadd.f32 0.0, %v423
      %v425 = vpop.f32.mrf.mxu0
      %426 = vmatprep.mubr.bf16.mxu0 0
      %427 = vmatmul.mubr.bf16.gmra.mxu0 %v339
      %v428 = vpop.f32.mrf.mxu0
      %v429 = vadd.f32 0.0, %v428
      %v430 = vpop.f32.mrf.mxu0
      %v431 = vpop.f32.mrf.mxu0
      %v432 = vadd.f32 0.0, %v431
      %v433 = vpop.f32.mrf.mxu0
      %434 = vmatprep.mubr.bf16.mxu0 0
      %435 = vmatmul.mubr.bf16.gmra.mxu0 %v342
      %v436 = vpop.f32.mrf.mxu0
      %v437 = vadd.f32 0.0, %v436
      %v438 = vpop.f32.mrf.mxu0
      %v439 = vpop.f32.mrf.mxu0
      %v440 = vadd.f32 0.0, %v439
      %v441 = vpop.f32.mrf.mxu0
      %442 = vmatprep.mubr.bf16.mxu0 0
      %443 = vmatmul.mubr.bf16.gmra.mxu0 %v345
      %v444 = vpop.f32.mrf.mxu0
      %v445 = vadd.f32 0.0, %v444
      %v446 = vpop.f32.mrf.mxu0
      %v447 = vpop.f32.mrf.mxu0
      %v448 = vadd.f32 0.0, %v447
      %v449 = vpop.f32.mrf.mxu0
      %450 = vmatprep.mubr.bf16.mxu0 0
      %451 = vmatmul.mubr.bf16.gmra.mxu0 %v348
      %v452 = vpop.f32.mrf.mxu0
      %v453 = vadd.f32 0.0, %v452
      %v454 = vpop.f32.mrf.mxu0
      %v455 = vpop.f32.mrf.mxu0
      %v456 = vadd.f32 0.0, %v455
      %v457 = vpop.f32.mrf.mxu0
      %458 = vmatprep.mubr.bf16.mxu0 0
      %459 = vmatmul.mubr.bf16.gmra.mxu0 %v351
      %v460 = vpop.f32.mrf.mxu0
      %v461 = vadd.f32 0.0, %v460
      %v462 = vpop.f32.mrf.mxu0
      %v463 = vpop.f32.mrf.mxu0
      %v464 = vadd.f32 0.0, %v463
      %v465 = vpop.f32.mrf.mxu0
      %466 = vmatprep.mubr.bf16.mxu0 0
      %467 = vmatmul.mubr.bf16.gmra.mxu0 %v354
      %v468 = vpop.f32.mrf.mxu0
      %v469 = vadd.f32 0.0, %v468
      %v470 = vpop.f32.mrf.mxu0
      %v471 = vpop.f32.mrf.mxu0
      %v472 = vadd.f32 0.0, %v471
      %v473 = vpop.f32.mrf.mxu0
      %474 = vmatprep.mubr.bf16.mxu0 0
      %475 = vmatmul.mubr.bf16.gmra.mxu0 %v357
      %v476 = vpop.f32.mrf.mxu0
      %v477 = vadd.f32 0.0, %v476
      %v478 = vpop.f32.mrf.mxu0
      %v479 = vpop.f32.mrf.mxu0
      %v480 = vadd.f32 0.0, %v479
      %v481 = vpop.f32.mrf.mxu0
      %482 = vmatprep.mubr.bf16.mxu0 0
      %483 = vmatmul.mubr.bf16.gmra.mxu0 %v360
      %v484 = vpop.f32.mrf.mxu0
      %v485 = vadd.f32 0.0, %v484
      %v486 = vpop.f32.mrf.mxu0
      %v487 = vpop.f32.mrf.mxu0
      %v488 = vadd.f32 0.0, %v487
      %v489 = vpop.f32.mrf.mxu0
      %490 = vmatprep.mubr.bf16.mxu0 0
      %491 = vmatmul.mubr.bf16.gmra.mxu0 %v363
      %v492 = vpop.f32.mrf.mxu0
      %v493 = vadd.f32 0.0, %v492
      %v494 = vpop.f32.mrf.mxu0
      %v495 = vpop.f32.mrf.mxu0
      %v496 = vadd.f32 0.0, %v495
      %v497 = vpop.f32.mrf.mxu0
      %498 = vmatprep.mubr.bf16.mxu0 0
      %499 = vmatmul.mubr.bf16.gmra.mxu0 %v366
      %v500 = vpop.f32.mrf.mxu0
      %v501 = vadd.f32 0.0, %v500
      %v502 = vpop.f32.mrf.mxu0
      %v503 = vpop.f32.mrf.mxu0
      %v504 = vadd.f32 0.0, %v503
      %v505 = vpop.f32.mrf.mxu0
      %506 = vmatprep.mubr.bf16.mxu0 0
      %507 = vmatmul.mubr.bf16.gmra.mxu0 %v369
      %v508 = vpop.f32.mrf.mxu0
      %v509 = vadd.f32 0.0, %v508
      %v510 = vpop.f32.mrf.mxu0
      %v511 = vpop.f32.mrf.mxu0
      %v512 = vadd.f32 0.0, %v511
      %v513 = vpop.f32.mrf.mxu0
      %514 = vmatprep.mubr.bf16.mxu0 0
      %515 = vmatmul.mubr.bf16.gmra.mxu0 %v372
      %v516 = vpop.f32.mrf.mxu0
      %v517 = vadd.f32 0.0, %v516
      %v518 = vpop.f32.mrf.mxu0
      %v519 = vpop.f32.mrf.mxu0
      %v520 = vadd.f32 0.0, %v519
      %v521 = vpop.f32.mrf.mxu0
      %522 = vdwg.mxu0
      %523 = vst [vmem:[#allocation3] sm:$0xff] %v413
      %524 = vst [vmem:[#allocation3 + $0x8] sm:$0xff] %v416
      %525 = vst [vmem:[#allocation3 + $0x10] sm:$0xff] %v421
      %526 = vst [vmem:[#allocation3 + $0x18] sm:$0xff] %v424
      %527 = vst [vmem:[#allocation3 + $0x20] sm:$0xff] %v429
      %528 = vst [vmem:[#allocation3 + $0x28] sm:$0xff] %v432
      %529 = vst [vmem:[#allocation3 + $0x30] sm:$0xff] %v437
      %530 = vst [vmem:[#allocation3 + $0x38] sm:$0xff] %v440
      %531 = vst [vmem:[#allocation3 + $0x40] sm:$0xff] %v445
      %532 = vst [vmem:[#allocation3 + $0x48] sm:$0xff] %v448
      %533 = vst [vmem:[#allocation3 + $0x50] sm:$0xff] %v453
      %534 = vst [vmem:[#allocation3 + $0x58] sm:$0xff] %v456
      %535 = vst [vmem:[#allocation3 + $0x60] sm:$0xff] %v461
      %536 = vst [vmem:[#allocation3 + $0x68] sm:$0xff] %v464
      %537 = vst [vmem:[#allocation3 + $0x70] sm:$0xff] %v469
      %538 = vst [vmem:[#allocation3 + $0x78] sm:$0xff] %v472
      %539 = vst [vmem:[#allocation3 + $0x80] sm:$0xff] %v477
      %540 = vst [vmem:[#allocation3 + $0x88] sm:$0xff] %v480
      %541 = vst [vmem:[#allocation3 + $0x90] sm:$0xff] %v485
      %542 = vst [vmem:[#allocation3 + $0x98] sm:$0xff] %v488
      %543 = vst [vmem:[#allocation3 + $0xa0] sm:$0xff] %v493
      %544 = vst [vmem:[#allocation3 + $0xa8] sm:$0xff] %v496
      %545 = vst [vmem:[#allocation3 + $0xb0] sm:$0xff] %v501
      %546 = vst [vmem:[#allocation3 + $0xb8] sm:$0xff] %v504
      %547 = vst [vmem:[#allocation3 + $0xc0] sm:$0xff] %v509
      %548 = vst [vmem:[#allocation3 + $0xc8] sm:$0xff] %v512
      %549 = vst [vmem:[#allocation3 + $0xd0] sm:$0xff] %v517
      %550 = vst [vmem:[#allocation3 + $0xd8] sm:$0xff] %v520
      %s551 = scalar_lea.vmem %s1, 4
      %v552 = vld [vmem:[%s551] sm:$0xf]
      %v554 = vunpack.c.l.b16 %v255
      %v555 = vpack.c.b16 %v554, %v554
      %vm556 = vsmask.f32 7424
      %v557 = vshrl.u32 %v317, 16
      %v559 = vshll.u32 %v317, 16
      %v561 = vrot.slane %v559, 1
      %v562 = vor.u32 %v557, %v561
      %v563 = vshll.u32 %v318, 16
      %v565 = vrot.slane %v563, 1
      %v566 = vsel %vm556, %v562, %v565
      %v567 = vshrl.u32 %v318, 16
      %v569 = vor.u32 %v567, %v565
      %v570 = vshll.u32 %v319, 16
      %v572 = vrot.slane %v570, 1
      %v573 = vsel %vm556, %v569, %v572
      %v574 = vshrl.u32 %v319, 16
      %v576 = vor.u32 %v574, %v572
      %v577 = vshll.u32 %v320, 16
      %v579 = vrot.slane %v577, 1
      %v580 = vsel %vm556, %v576, %v579
      %v581 = vshrl.u32 %v320, 16
      %v583 = vor.u32 %v581, %v579
      %v584 = vshll.u32 %v321, 16
      %v586 = vrot.slane %v584, 1
      %v587 = vsel %vm556, %v583, %v586
      %v588 = vshrl.u32 %v321, 16
      %v590 = vor.u32 %v588, %v586
      %v591 = vshll.u32 %v322, 16
      %v593 = vrot.slane %v591, 1
      %v594 = vsel %vm556, %v590, %v593
      %v595 = vshrl.u32 %v322, 16
      %v597 = vor.u32 %v595, %v593
      %v598 = vshll.u32 %v323, 16
      %v600 = vrot.slane %v598, 1
      %v601 = vsel %vm556, %v597, %v600
      %v602 = vshrl.u32 %v323, 16
      %v604 = vor.u32 %v602, %v600
      %v605 = vshll.u32 %v324, 16
      %v607 = vrot.slane %v605, 1
      %v608 = vsel %vm556, %v604, %v607
      %v609 = vshrl.u32 %v324, 16
      %v611 = vor.u32 %v609, %v607
      %v612 = vshll.u32 %v325, 16
      %v614 = vrot.slane %v612, 1
      %v615 = vsel %vm556, %v611, %v614
      %v616 = vshrl.u32 %v325, 16
      %v618 = vor.u32 %v616, %v614
      %v619 = vshll.u32 %v326, 16
      %v621 = vrot.slane %v619, 1
      %v622 = vsel %vm556, %v618, %v621
      %v623 = vshrl.u32 %v326, 16
      %v625 = vor.u32 %v623, %v621
      %v626 = vshll.u32 %v327, 16
      %v628 = vrot.slane %v626, 1
      %v629 = vsel %vm556, %v625, %v628
      %v630 = vshrl.u32 %v327, 16
      %v632 = vor.u32 %v630, %v628
      %v633 = vshll.u32 %v328, 16
      %v635 = vrot.slane %v633, 1
      %v636 = vsel %vm556, %v632, %v635
      %v637 = vshrl.u32 %v328, 16
      %v639 = vor.u32 %v637, %v635
      %v640 = vshll.u32 %v329, 16
      %v642 = vrot.slane %v640, 1
      %v643 = vsel %vm556, %v639, %v642
      %v644 = vshrl.u32 %v329, 16
      %v646 = vor.u32 %v644, %v642
      %v647 = vshll.u32 %v330, 16
      %v649 = vrot.slane %v647, 1
      %v650 = vsel %vm556, %v646, %v649
      %v651 = vshrl.u32 %v330, 16
      %v653 = vor.u32 %v651, %v649
      %v655 = vshll.u32 %v555, 16
      %v657 = vrot.slane %v655, 1
      %v658 = vsel %vm556, %v653, %v657
      %v660 = vsel %vm331, %v566, 0
      %v663 = vsel %vm331, %v573, 0
      %v666 = vsel %vm331, %v580, 0
      %v669 = vsel %vm331, %v587, 0
      %v672 = vsel %vm331, %v594, 0
      %v675 = vsel %vm331, %v601, 0
      %v678 = vsel %vm331, %v608, 0
      %v681 = vsel %vm331, %v615, 0
      %v684 = vsel %vm331, %v622, 0
      %v687 = vsel %vm331, %v629, 0
      %v690 = vsel %vm331, %v636, 0
      %v693 = vsel %vm331, %v643, 0
      %v696 = vsel %vm331, %v650, 0
      %v699 = vsel %vm331, %v658, 0
      %v702 = vsel %vm374, %v552, 0
      %704 = vmatprep.subr.bf16.mxu0 0
      %705 = vmatpush1.bf16.msra.mxu0 0
      %706 = vmatprep.subr.bf16.mxu0 0
      %707 = vmatpush1.bf16.msra.mxu0 0
      %708 = vmatprep.subr.bf16.mxu0 0
      %709 = vmatpush1.bf16.msra.mxu0 0
      %710 = vmatprep.subr.bf16.mxu0 0
      %711 = vmatpush1.bf16.msra.mxu0 0
      %712 = vmatprep.subr.bf16.mxu0 0
      %713 = vmatpush1.bf16.msra.mxu0 0
      %714 = vmatprep.subr.bf16.mxu0 0
      %715 = vmatpush1.bf16.msra.mxu0 0
      %716 = vmatprep.subr.bf16.mxu0 0
      %717 = vmatpush1.bf16.msra.mxu0 0
      %718 = vmatprep.subr.bf16.mxu0 0
      %719 = vmatpush1.bf16.msra.mxu0 %v702
      %720 = vmatprep.subr.bf16.mxu0 0
      %721 = vmatpush2.bf16.msra.mxu0 0
      %722 = vmatprep.subr.bf16.mxu0 0
      %723 = vmatpush2.bf16.msra.mxu0 0
      %724 = vmatprep.subr.bf16.mxu0 0
      %725 = vmatpush2.bf16.msra.mxu0 0
      %726 = vmatprep.subr.bf16.mxu0 0
      %727 = vmatpush2.bf16.msra.mxu0 0
      %728 = vmatprep.subr.bf16.mxu0 0
      %729 = vmatpush2.bf16.msra.mxu0 0
      %730 = vmatprep.subr.bf16.mxu0 0
      %731 = vmatpush2.bf16.msra.mxu0 0
      %732 = vmatprep.subr.bf16.mxu0 0
      %733 = vmatpush2.bf16.msra.mxu0 0
      %734 = vmatprep.subr.bf16.mxu0 0
      %735 = vmatpush2.bf16.msra.mxu0 0
      %736 = vmatprep.mubr.bf16.mxu0 0
      %737 = vmatmul.mubr.bf16.gmra.mxu0 %v660
      %v738 = vpop.f32.mrf.mxu0
      %v739 = vadd.f32 0.0, %v738
      %v740 = vpop.f32.mrf.mxu0
      %v741 = vpop.f32.mrf.mxu0
      %v742 = vadd.f32 0.0, %v741
      %v743 = vpop.f32.mrf.mxu0
      %744 = vmatprep.mubr.bf16.mxu0 0
      %745 = vmatmul.mubr.bf16.gmra.mxu0 %v663
      %v746 = vpop.f32.mrf.mxu0
      %v747 = vadd.f32 0.0, %v746
      %v748 = vpop.f32.mrf.mxu0
      %v749 = vpop.f32.mrf.mxu0
      %v750 = vadd.f32 0.0, %v749
      %v751 = vpop.f32.mrf.mxu0
      %752 = vmatprep.mubr.bf16.mxu0 0
      %753 = vmatmul.mubr.bf16.gmra.mxu0 %v666
      %v754 = vpop.f32.mrf.mxu0
      %v755 = vadd.f32 0.0, %v754
      %v756 = vpop.f32.mrf.mxu0
      %v757 = vpop.f32.mrf.mxu0
      %v758 = vadd.f32 0.0, %v757
      %v759 = vpop.f32.mrf.mxu0
      %760 = vmatprep.mubr.bf16.mxu0 0
      %761 = vmatmul.mubr.bf16.gmra.mxu0 %v669
      %v762 = vpop.f32.mrf.mxu0
      %v763 = vadd.f32 0.0, %v762
      %v764 = vpop.f32.mrf.mxu0
      %v765 = vpop.f32.mrf.mxu0
      %v766 = vadd.f32 0.0, %v765
      %v767 = vpop.f32.mrf.mxu0
      %768 = vmatprep.mubr.bf16.mxu0 0
      %769 = vmatmul.mubr.bf16.gmra.mxu0 %v672
      %v770 = vpop.f32.mrf.mxu0
      %v771 = vadd.f32 0.0, %v770
      %v772 = vpop.f32.mrf.mxu0
      %v773 = vpop.f32.mrf.mxu0
      %v774 = vadd.f32 0.0, %v773
      %v775 = vpop.f32.mrf.mxu0
      %776 = vmatprep.mubr.bf16.mxu0 0
      %777 = vmatmul.mubr.bf16.gmra.mxu0 %v675
      %v778 = vpop.f32.mrf.mxu0
      %v779 = vadd.f32 0.0, %v778
      %v780 = vpop.f32.mrf.mxu0
      %v781 = vpop.f32.mrf.mxu0
      %v782 = vadd.f32 0.0, %v781
      %v783 = vpop.f32.mrf.mxu0
      %784 = vmatprep.mubr.bf16.mxu0 0
      %785 = vmatmul.mubr.bf16.gmra.mxu0 %v678
      %v786 = vpop.f32.mrf.mxu0
      %v787 = vadd.f32 0.0, %v786
      %v788 = vpop.f32.mrf.mxu0
      %v789 = vpop.f32.mrf.mxu0
      %v790 = vadd.f32 0.0, %v789
      %v791 = vpop.f32.mrf.mxu0
      %792 = vmatprep.mubr.bf16.mxu0 0
      %793 = vmatmul.mubr.bf16.gmra.mxu0 %v681
      %v794 = vpop.f32.mrf.mxu0
      %v795 = vadd.f32 0.0, %v794
      %v796 = vpop.f32.mrf.mxu0
      %v797 = vpop.f32.mrf.mxu0
      %v798 = vadd.f32 0.0, %v797
      %v799 = vpop.f32.mrf.mxu0
      %800 = vmatprep.mubr.bf16.mxu0 0
      %801 = vmatmul.mubr.bf16.gmra.mxu0 %v684
      %v802 = vpop.f32.mrf.mxu0
      %v803 = vadd.f32 0.0, %v802
      %v804 = vpop.f32.mrf.mxu0
      %v805 = vpop.f32.mrf.mxu0
      %v806 = vadd.f32 0.0, %v805
      %v807 = vpop.f32.mrf.mxu0
      %808 = vmatprep.mubr.bf16.mxu0 0
      %809 = vmatmul.mubr.bf16.gmra.mxu0 %v687
      %v810 = vpop.f32.mrf.mxu0
      %v811 = vadd.f32 0.0, %v810
      %v812 = vpop.f32.mrf.mxu0
      %v813 = vpop.f32.mrf.mxu0
      %v814 = vadd.f32 0.0, %v813
      %v815 = vpop.f32.mrf.mxu0
      %816 = vmatprep.mubr.bf16.mxu0 0
      %817 = vmatmul.mubr.bf16.gmra.mxu0 %v690
      %v818 = vpop.f32.mrf.mxu0
      %v819 = vadd.f32 0.0, %v818
      %v820 = vpop.f32.mrf.mxu0
      %v821 = vpop.f32.mrf.mxu0
      %v822 = vadd.f32 0.0, %v821
      %v823 = vpop.f32.mrf.mxu0
      %824 = vmatprep.mubr.bf16.mxu0 0
      %825 = vmatmul.mubr.bf16.gmra.mxu0 %v693
      %v826 = vpop.f32.mrf.mxu0
      %v827 = vadd.f32 0.0, %v826
      %v828 = vpop.f32.mrf.mxu0
      %v829 = vpop.f32.mrf.mxu0
      %v830 = vadd.f32 0.0, %v829
      %v831 = vpop.f32.mrf.mxu0
      %832 = vmatprep.mubr.bf16.mxu0 0
      %833 = vmatmul.mubr.bf16.gmra.mxu0 %v696
      %v834 = vpop.f32.mrf.mxu0
      %v835 = vadd.f32 0.0, %v834
      %v836 = vpop.f32.mrf.mxu0
      %v837 = vpop.f32.mrf.mxu0
      %v838 = vadd.f32 0.0, %v837
      %v839 = vpop.f32.mrf.mxu0
      %840 = vmatprep.mubr.bf16.mxu0 0
      %841 = vmatmul.mubr.bf16.gmra.mxu0 %v699
      %v842 = vpop.f32.mrf.mxu0
      %v843 = vadd.f32 0.0, %v842
      %v844 = vpop.f32.mrf.mxu0
      %v845 = vpop.f32.mrf.mxu0
      %v846 = vadd.f32 0.0, %v845
      %v847 = vpop.f32.mrf.mxu0
      %848 = vdwg.mxu0
      %v849 = vld [vmem:[#allocation3] sm:$0xff]
      %v850 = vld [vmem:[#allocation3 + $0x8] sm:$0xff]
      %v851 = vld [vmem:[#allocation3 + $0x10] sm:$0xff]
      %v852 = vld [vmem:[#allocation3 + $0x18] sm:$0xff]
      %v853 = vld [vmem:[#allocation3 + $0x20] sm:$0xff]
      %v854 = vld [vmem:[#allocation3 + $0x28] sm:$0xff]
      %v855 = vld [vmem:[#allocation3 + $0x30] sm:$0xff]
      %v856 = vld [vmem:[#allocation3 + $0x38] sm:$0xff]
      %v857 = vld [vmem:[#allocation3 + $0x40] sm:$0xff]
      %v858 = vld [vmem:[#allocation3 + $0x48] sm:$0xff]
      %v859 = vld [vmem:[#allocation3 + $0x50] sm:$0xff]
      %v860 = vld [vmem:[#allocation3 + $0x58] sm:$0xff]
      %v861 = vld [vmem:[#allocation3 + $0x60] sm:$0xff]
      %v862 = vld [vmem:[#allocation3 + $0x68] sm:$0xff]
      %v863 = vld [vmem:[#allocation3 + $0x70] sm:$0xff]
      %v864 = vld [vmem:[#allocation3 + $0x78] sm:$0xff]
      %v865 = vld [vmem:[#allocation3 + $0x80] sm:$0xff]
      %v866 = vld [vmem:[#allocation3 + $0x88] sm:$0xff]
      %v867 = vld [vmem:[#allocation3 + $0x90] sm:$0xff]
      %v868 = vld [vmem:[#allocation3 + $0x98] sm:$0xff]
      %v869 = vld [vmem:[#allocation3 + $0xa0] sm:$0xff]
      %v870 = vld [vmem:[#allocation3 + $0xa8] sm:$0xff]
      %v871 = vld [vmem:[#allocation3 + $0xb0] sm:$0xff]
      %v872 = vld [vmem:[#allocation3 + $0xb8] sm:$0xff]
      %v873 = vld [vmem:[#allocation3 + $0xc0] sm:$0xff]
      %v874 = vld [vmem:[#allocation3 + $0xc8] sm:$0xff]
      %v875 = vld [vmem:[#allocation3 + $0xd0] sm:$0xff]
      %v876 = vld [vmem:[#allocation3 + $0xd8] sm:$0xff]
      %v877 = vadd.f32 %v849, %v739
      %v878 = vadd.f32 %v850, %v742
      %v879 = vadd.f32 %v851, %v747
      %v880 = vadd.f32 %v852, %v750
      %v881 = vadd.f32 %v853, %v755
      %v882 = vadd.f32 %v854, %v758
      %v883 = vadd.f32 %v855, %v763
      %v884 = vadd.f32 %v856, %v766
      %v885 = vadd.f32 %v857, %v771
      %v886 = vadd.f32 %v858, %v774
      %v887 = vadd.f32 %v859, %v779
      %v888 = vadd.f32 %v860, %v782
      %v889 = vadd.f32 %v861, %v787
      %v890 = vadd.f32 %v862, %v790
      %v891 = vadd.f32 %v863, %v795
      %v892 = vadd.f32 %v864, %v798
      %v893 = vadd.f32 %v865, %v803
      %v894 = vadd.f32 %v866, %v806
      %v895 = vadd.f32 %v867, %v811
      %v896 = vadd.f32 %v868, %v814
      %v897 = vadd.f32 %v869, %v819
      %v898 = vadd.f32 %v870, %v822
      %v899 = vadd.f32 %v871, %v827
      %v900 = vadd.f32 %v872, %v830
      %v901 = vadd.f32 %v873, %v835
      %v902 = vadd.f32 %v874, %v838
      %v903 = vadd.f32 %v875, %v843
      %v904 = vadd.f32 %v876, %v846
      %905 = vst [vmem:[#allocation3] sm:$0xff] %v877
      %906 = vst [vmem:[#allocation3 + $0x8] sm:$0xff] %v878
      %907 = vst [vmem:[#allocation3 + $0x10] sm:$0xff] %v879
      %908 = vst [vmem:[#allocation3 + $0x18] sm:$0xff] %v880
      %909 = vst [vmem:[#allocation3 + $0x20] sm:$0xff] %v881
      %910 = vst [vmem:[#allocation3 + $0x28] sm:$0xff] %v882
      %911 = vst [vmem:[#allocation3 + $0x30] sm:$0xff] %v883
      %912 = vst [vmem:[#allocation3 + $0x38] sm:$0xff] %v884
      %913 = vst [vmem:[#allocation3 + $0x40] sm:$0xff] %v885
      %914 = vst [vmem:[#allocation3 + $0x48] sm:$0xff] %v886
      %915 = vst [vmem:[#allocation3 + $0x50] sm:$0xff] %v887
      %916 = vst [vmem:[#allocation3 + $0x58] sm:$0xff] %v888
      %917 = vst [vmem:[#allocation3 + $0x60] sm:$0xff] %v889
      %918 = vst [vmem:[#allocation3 + $0x68] sm:$0xff] %v890
      %919 = vst [vmem:[#allocation3 + $0x70] sm:$0xff] %v891
      %920 = vst [vmem:[#allocation3 + $0x78] sm:$0xff] %v892
      %921 = vst [vmem:[#allocation3 + $0x80] sm:$0xff] %v893
      %922 = vst [vmem:[#allocation3 + $0x88] sm:$0xff] %v894
      %923 = vst [vmem:[#allocation3 + $0x90] sm:$0xff] %v895
      %924 = vst [vmem:[#allocation3 + $0x98] sm:$0xff] %v896
      %925 = vst [vmem:[#allocation3 + $0xa0] sm:$0xff] %v897
      %926 = vst [vmem:[#allocation3 + $0xa8] sm:$0xff] %v898
      %927 = vst [vmem:[#allocation3 + $0xb0] sm:$0xff] %v899
      %928 = vst [vmem:[#allocation3 + $0xb8] sm:$0xff] %v900
      %929 = vst [vmem:[#allocation3 + $0xc0] sm:$0xff] %v901
      %930 = vst [vmem:[#allocation3 + $0xc8] sm:$0xff] %v902
      %931 = vst [vmem:[#allocation3 + $0xd0] sm:$0xff] %v903
      %932 = vst [vmem:[#allocation3 + $0xd8] sm:$0xff] %v904
      %s933 = scalar_lea.vmem %s1, 8
      %v934 = vld [vmem:[%s933] sm:$0xf]
      %vm935 = vcmask 1046528
      %v936 = vrot.slane %v317, 1
      %v937 = vrot.slane %v318, 1
      %v938 = vsel %vm935, %v936, %v937
      %v939 = vrot.slane %v319, 1
      %v940 = vsel %vm935, %v937, %v939
      %v941 = vrot.slane %v320, 1
      %v942 = vsel %vm935, %v939, %v941
      %v943 = vrot.slane %v321, 1
      %v944 = vsel %vm935, %v941, %v943
      %v945 = vrot.slane %v322, 1
      %v946 = vsel %vm935, %v943, %v945
      %v947 = vrot.slane %v323, 1
      %v948 = vsel %vm935, %v945, %v947
      %v949 = vrot.slane %v324, 1
      %v950 = vsel %vm935, %v947, %v949
      %v951 = vrot.slane %v325, 1
      %v952 = vsel %vm935, %v949, %v951
      %v953 = vrot.slane %v326, 1
      %v954 = vsel %vm935, %v951, %v953
      %v955 = vrot.slane %v327, 1
      %v956 = vsel %vm935, %v953, %v955
      %v957 = vrot.slane %v328, 1
      %v958 = vsel %vm935, %v955, %v957
      %v959 = vrot.slane %v329, 1
      %v960 = vsel %vm935, %v957, %v959
      %v961 = vrot.slane %v330, 1
      %v962 = vsel %vm935, %v959, %v961
      %v963 = vrot.slane %v555, 1
      %v964 = vsel %vm935, %v961, %v963
      %v966 = vsel %vm331, %v938, 0
      %v969 = vsel %vm331, %v940, 0
      %v972 = vsel %vm331, %v942, 0
      %v975 = vsel %vm331, %v944, 0
      %v978 = vsel %vm331, %v946, 0
      %v981 = vsel %vm331, %v948, 0
      %v984 = vsel %vm331, %v950, 0
      %v987 = vsel %vm331, %v952, 0
      %v990 = vsel %vm331, %v954, 0
      %v993 = vsel %vm331, %v956, 0
      %v996 = vsel %vm331, %v958, 0
      %v999 = vsel %vm331, %v960, 0
      %v1002 = vsel %vm331, %v962, 0
      %v1005 = vsel %vm331, %v964, 0
      %v1008 = vsel %vm374, %v934, 0
      %1010 = vmatprep.subr.bf16.mxu0 0
      %1011 = vmatpush1.bf16.msra.mxu0 0
      %1012 = vmatprep.subr.bf16.mxu0 0
      %1013 = vmatpush1.bf16.msra.mxu0 0
      %1014 = vmatprep.subr.bf16.mxu0 0
      %1015 = vmatpush1.bf16.msra.mxu0 0
      %1016 = vmatprep.subr.bf16.mxu0 0
      %1017 = vmatpush1.bf16.msra.mxu0 0
      %1018 = vmatprep.subr.bf16.mxu0 0
      %1019 = vmatpush1.bf16.msra.mxu0 0
      %1020 = vmatprep.subr.bf16.mxu0 0
      %1021 = vmatpush1.bf16.msra.mxu0 0
      %1022 = vmatprep.subr.bf16.mxu0 0
      %1023 = vmatpush1.bf16.msra.mxu0 0
      %1024 = vmatprep.subr.bf16.mxu0 0
      %1025 = vmatpush1.bf16.msra.mxu0 %v1008
      %1026 = vmatprep.subr.bf16.mxu0 0
      %1027 = vmatpush2.bf16.msra.mxu0 0
      %1028 = vmatprep.subr.bf16.mxu0 0
      %1029 = vmatpush2.bf16.msra.mxu0 0
      %1030 = vmatprep.subr.bf16.mxu0 0
      %1031 = vmatpush2.bf16.msra.mxu0 0
      %1032 = vmatprep.subr.bf16.mxu0 0
      %1033 = vmatpush2.bf16.msra.mxu0 0
      %1034 = vmatprep.subr.bf16.mxu0 0
      %1035 = vmatpush2.bf16.msra.mxu0 0
      %1036 = vmatprep.subr.bf16.mxu0 0
      %1037 = vmatpush2.bf16.msra.mxu0 0
      %1038 = vmatprep.subr.bf16.mxu0 0
      %1039 = vmatpush2.bf16.msra.mxu0 0
      %1040 = vmatprep.subr.bf16.mxu0 0
      %1041 = vmatpush2.bf16.msra.mxu0 0
      %1042 = vmatprep.mubr.bf16.mxu0 0
      %1043 = vmatmul.mubr.bf16.gmra.mxu0 %v966
      %v1044 = vpop.f32.mrf.mxu0
      %v1045 = vadd.f32 0.0, %v1044
      %v1046 = vpop.f32.mrf.mxu0
      %v1047 = vpop.f32.mrf.mxu0
      %v1048 = vadd.f32 0.0, %v1047
      %v1049 = vpop.f32.mrf.mxu0
      %1050 = vmatprep.mubr.bf16.mxu0 0
      %1051 = vmatmul.mubr.bf16.gmra.mxu0 %v969
      %v1052 = vpop.f32.mrf.mxu0
      %v1053 = vadd.f32 0.0, %v1052
      %v1054 = vpop.f32.mrf.mxu0
      %v1055 = vpop.f32.mrf.mxu0
      %v1056 = vadd.f32 0.0, %v1055
      %v1057 = vpop.f32.mrf.mxu0
      %1058 = vmatprep.mubr.bf16.mxu0 0
      %1059 = vmatmul.mubr.bf16.gmra.mxu0 %v972
      %v1060 = vpop.f32.mrf.mxu0
      %v1061 = vadd.f32 0.0, %v1060
      %v1062 = vpop.f32.mrf.mxu0
      %v1063 = vpop.f32.mrf.mxu0
      %v1064 = vadd.f32 0.0, %v1063
      %v1065 = vpop.f32.mrf.mxu0
      %1066 = vmatprep.mubr.bf16.mxu0 0
      %1067 = vmatmul.mubr.bf16.gmra.mxu0 %v975
      %v1068 = vpop.f32.mrf.mxu0
      %v1069 = vadd.f32 0.0, %v1068
      %v1070 = vpop.f32.mrf.mxu0
      %v1071 = vpop.f32.mrf.mxu0
      %v1072 = vadd.f32 0.0, %v1071
      %v1073 = vpop.f32.mrf.mxu0
      %1074 = vmatprep.mubr.bf16.mxu0 0
      %1075 = vmatmul.mubr.bf16.gmra.mxu0 %v978
      %v1076 = vpop.f32.mrf.mxu0
      %v1077 = vadd.f32 0.0, %v1076
      %v1078 = vpop.f32.mrf.mxu0
      %v1079 = vpop.f32.mrf.mxu0
      %v1080 = vadd.f32 0.0, %v1079
      %v1081 = vpop.f32.mrf.mxu0
      %1082 = vmatprep.mubr.bf16.mxu0 0
      %1083 = vmatmul.mubr.bf16.gmra.mxu0 %v981
      %v1084 = vpop.f32.mrf.mxu0
      %v1085 = vadd.f32 0.0, %v1084
      %v1086 = vpop.f32.mrf.mxu0
      %v1087 = vpop.f32.mrf.mxu0
      %v1088 = vadd.f32 0.0, %v1087
      %v1089 = vpop.f32.mrf.mxu0
      %1090 = vmatprep.mubr.bf16.mxu0 0
      %1091 = vmatmul.mubr.bf16.gmra.mxu0 %v984
      %v1092 = vpop.f32.mrf.mxu0
      %v1093 = vadd.f32 0.0, %v1092
      %v1094 = vpop.f32.mrf.mxu0
      %v1095 = vpop.f32.mrf.mxu0
      %v1096 = vadd.f32 0.0, %v1095
      %v1097 = vpop.f32.mrf.mxu0
      %1098 = vmatprep.mubr.bf16.mxu0 0
      %1099 = vmatmul.mubr.bf16.gmra.mxu0 %v987
      %v1100 = vpop.f32.mrf.mxu0
      %v1101 = vadd.f32 0.0, %v1100
      %v1102 = vpop.f32.mrf.mxu0
      %v1103 = vpop.f32.mrf.mxu0
      %v1104 = vadd.f32 0.0, %v1103
      %v1105 = vpop.f32.mrf.mxu0
      %1106 = vmatprep.mubr.bf16.mxu0 0
      %1107 = vmatmul.mubr.bf16.gmra.mxu0 %v990
      %v1108 = vpop.f32.mrf.mxu0
      %v1109 = vadd.f32 0.0, %v1108
      %v1110 = vpop.f32.mrf.mxu0
      %v1111 = vpop.f32.mrf.mxu0
      %v1112 = vadd.f32 0.0, %v1111
      %v1113 = vpop.f32.mrf.mxu0
      %1114 = vmatprep.mubr.bf16.mxu0 0
      %1115 = vmatmul.mubr.bf16.gmra.mxu0 %v993
      %v1116 = vpop.f32.mrf.mxu0
      %v1117 = vadd.f32 0.0, %v1116
      %v1118 = vpop.f32.mrf.mxu0
      %v1119 = vpop.f32.mrf.mxu0
      %v1120 = vadd.f32 0.0, %v1119
      %v1121 = vpop.f32.mrf.mxu0
      %1122 = vmatprep.mubr.bf16.mxu0 0
      %1123 = vmatmul.mubr.bf16.gmra.mxu0 %v996
      %v1124 = vpop.f32.mrf.mxu0
      %v1125 = vadd.f32 0.0, %v1124
      %v1126 = vpop.f32.mrf.mxu0
      %v1127 = vpop.f32.mrf.mxu0
      %v1128 = vadd.f32 0.0, %v1127
      %v1129 = vpop.f32.mrf.mxu0
      %1130 = vmatprep.mubr.bf16.mxu0 0
      %1131 = vmatmul.mubr.bf16.gmra.mxu0 %v999
      %v1132 = vpop.f32.mrf.mxu0
      %v1133 = vadd.f32 0.0, %v1132
      %v1134 = vpop.f32.mrf.mxu0
      %v1135 = vpop.f32.mrf.mxu0
      %v1136 = vadd.f32 0.0, %v1135
      %v1137 = vpop.f32.mrf.mxu0
      %1138 = vmatprep.mubr.bf16.mxu0 0
      %1139 = vmatmul.mubr.bf16.gmra.mxu0 %v1002
      %v1140 = vpop.f32.mrf.mxu0
      %v1141 = vadd.f32 0.0, %v1140
      %v1142 = vpop.f32.mrf.mxu0
      %v1143 = vpop.f32.mrf.mxu0
      %v1144 = vadd.f32 0.0, %v1143
      %v1145 = vpop.f32.mrf.mxu0
      %1146 = vmatprep.mubr.bf16.mxu0 0
      %1147 = vmatmul.mubr.bf16.gmra.mxu0 %v1005
      %v1148 = vpop.f32.mrf.mxu0
      %v1149 = vadd.f32 0.0, %v1148
      %v1150 = vpop.f32.mrf.mxu0
      %v1151 = vpop.f32.mrf.mxu0
      %v1152 = vadd.f32 0.0, %v1151
      %v1153 = vpop.f32.mrf.mxu0
      %1154 = vdwg.mxu0
      %v1155 = vld [vmem:[#allocation3] sm:$0xff]
      %v1156 = vld [vmem:[#allocation3 + $0x8] sm:$0xff]
      %v1157 = vld [vmem:[#allocation3 + $0x10] sm:$0xff]
      %v1158 = vld [vmem:[#allocation3 + $0x18] sm:$0xff]
      %v1159 = vld [vmem:[#allocation3 + $0x20] sm:$0xff]
      %v1160 = vld [vmem:[#allocation3 + $0x28] sm:$0xff]
      %v1161 = vld [vmem:[#allocation3 + $0x30] sm:$0xff]
      %v1162 = vld [vmem:[#allocation3 + $0x38] sm:$0xff]
      %v1163 = vld [vmem:[#allocation3 + $0x40] sm:$0xff]
      %v1164 = vld [vmem:[#allocation3 + $0x48] sm:$0xff]
      %v1165 = vld [vmem:[#allocation3 + $0x50] sm:$0xff]
      %v1166 = vld [vmem:[#allocation3 + $0x58] sm:$0xff]
      %v1167 = vld [vmem:[#allocation3 + $0x60] sm:$0xff]
      %v1168 = vld [vmem:[#allocation3 + $0x68] sm:$0xff]
      %v1169 = vld [vmem:[#allocation3 + $0x70] sm:$0xff]
      %v1170 = vld [vmem:[#allocation3 + $0x78] sm:$0xff]
      %v1171 = vld [vmem:[#allocation3 + $0x80] sm:$0xff]
      %v1172 = vld [vmem:[#allocation3 + $0x88] sm:$0xff]
      %v1173 = vld [vmem:[#allocation3 + $0x90] sm:$0xff]
      %v1174 = vld [vmem:[#allocation3 + $0x98] sm:$0xff]
      %v1175 = vld [vmem:[#allocation3 + $0xa0] sm:$0xff]
      %v1176 = vld [vmem:[#allocation3 + $0xa8] sm:$0xff]
      %v1177 = vld [vmem:[#allocation3 + $0xb0] sm:$0xff]
      %v1178 = vld [vmem:[#allocation3 + $0xb8] sm:$0xff]
      %v1179 = vld [vmem:[#allocation3 + $0xc0] sm:$0xff]
      %v1180 = vld [vmem:[#allocation3 + $0xc8] sm:$0xff]
      %v1181 = vld [vmem:[#allocation3 + $0xd0] sm:$0xff]
      %v1182 = vld [vmem:[#allocation3 + $0xd8] sm:$0xff]
      %v1183 = vadd.f32 %v1155, %v1045
      %v1184 = vadd.f32 %v1156, %v1048
      %v1185 = vadd.f32 %v1157, %v1053
      %v1186 = vadd.f32 %v1158, %v1056
      %v1187 = vadd.f32 %v1159, %v1061
      %v1188 = vadd.f32 %v1160, %v1064
      %v1189 = vadd.f32 %v1161, %v1069
      %v1190 = vadd.f32 %v1162, %v1072
      %v1191 = vadd.f32 %v1163, %v1077
      %v1192 = vadd.f32 %v1164, %v1080
      %v1193 = vadd.f32 %v1165, %v1085
      %v1194 = vadd.f32 %v1166, %v1088
      %v1195 = vadd.f32 %v1167, %v1093
      %v1196 = vadd.f32 %v1168, %v1096
      %v1197 = vadd.f32 %v1169, %v1101
      %v1198 = vadd.f32 %v1170, %v1104
      %v1199 = vadd.f32 %v1171, %v1109
      %v1200 = vadd.f32 %v1172, %v1112
      %v1201 = vadd.f32 %v1173, %v1117
      %v1202 = vadd.f32 %v1174, %v1120
      %v1203 = vadd.f32 %v1175, %v1125
      %v1204 = vadd.f32 %v1176, %v1128
      %v1205 = vadd.f32 %v1177, %v1133
      %v1206 = vadd.f32 %v1178, %v1136
      %v1207 = vadd.f32 %v1179, %v1141
      %v1208 = vadd.f32 %v1180, %v1144
      %v1209 = vadd.f32 %v1181, %v1149
      %v1210 = vadd.f32 %v1182, %v1152
      %1211 = vst [vmem:[#allocation3] sm:$0xff] %v1183
      %1212 = vst [vmem:[#allocation3 + $0x8] sm:$0xff] %v1184
      %1213 = vst [vmem:[#allocation3 + $0x10] sm:$0xff] %v1185
      %1214 = vst [vmem:[#allocation3 + $0x18] sm:$0xff] %v1186
      %1215 = vst [vmem:[#allocation3 + $0x20] sm:$0xff] %v1187
      %1216 = vst [vmem:[#allocation3 + $0x28] sm:$0xff] %v1188
      %1217 = vst [vmem:[#allocation3 + $0x30] sm:$0xff] %v1189
      %1218 = vst [vmem:[#allocation3 + $0x38] sm:$0xff] %v1190
      %1219 = vst [vmem:[#allocation3 + $0x40] sm:$0xff] %v1191
      %1220 = vst [vmem:[#allocation3 + $0x48] sm:$0xff] %v1192
      %1221 = vst [vmem:[#allocation3 + $0x50] sm:$0xff] %v1193
      %1222 = vst [vmem:[#allocation3 + $0x58] sm:$0xff] %v1194
      %1223 = vst [vmem:[#allocation3 + $0x60] sm:$0xff] %v1195
      %1224 = vst [vmem:[#allocation3 + $0x68] sm:$0xff] %v1196
      %1225 = vst [vmem:[#allocation3 + $0x70] sm:$0xff] %v1197
      %1226 = vst [vmem:[#allocation3 + $0x78] sm:$0xff] %v1198
      %1227 = vst [vmem:[#allocation3 + $0x80] sm:$0xff] %v1199
      %1228 = vst [vmem:[#allocation3 + $0x88] sm:$0xff] %v1200
      %1229 = vst [vmem:[#allocation3 + $0x90] sm:$0xff] %v1201
      %1230 = vst [vmem:[#allocation3 + $0x98] sm:$0xff] %v1202
      %1231 = vst [vmem:[#allocation3 + $0xa0] sm:$0xff] %v1203
      %1232 = vst [vmem:[#allocation3 + $0xa8] sm:$0xff] %v1204
      %1233 = vst [vmem:[#allocation3 + $0xb0] sm:$0xff] %v1205
      %1234 = vst [vmem:[#allocation3 + $0xb8] sm:$0xff] %v1206
      %1235 = vst [vmem:[#allocation3 + $0xc0] sm:$0xff] %v1207
      %1236 = vst [vmem:[#allocation3 + $0xc8] sm:$0xff] %v1208
      %1237 = vst [vmem:[#allocation3 + $0xd0] sm:$0xff] %v1209
      %1238 = vst [vmem:[#allocation3 + $0xd8] sm:$0xff] %v1210
      %s1239 = scalar_lea.vmem %s1, 12
      %v1240 = vld [vmem:[%s1239] sm:$0xf]
      %v1242 = vunpack.c.l.b16 %v256
      %v1243 = vpack.c.b16 %v1242, %v554
      %v1245 = vsel %vm331, %v1243, 0
      %v1248 = vsel %vm374, %v1240, 0
      %1250 = vmatprep.subr.bf16.mxu0 0
      %1251 = vmatpush1.bf16.msra.mxu0 0
      %1252 = vmatprep.subr.bf16.mxu0 0
      %1253 = vmatpush1.bf16.msra.mxu0 0
      %1254 = vmatprep.subr.bf16.mxu0 0
      %1255 = vmatpush1.bf16.msra.mxu0 0
      %1256 = vmatprep.subr.bf16.mxu0 0
      %1257 = vmatpush1.bf16.msra.mxu0 0
      %1258 = vmatprep.subr.bf16.mxu0 0
      %1259 = vmatpush1.bf16.msra.mxu0 0
      %1260 = vmatprep.subr.bf16.mxu0 0
      %1261 = vmatpush1.bf16.msra.mxu0 0
      %1262 = vmatprep.subr.bf16.mxu0 0
      %1263 = vmatpush1.bf16.msra.mxu0 0
      %1264 = vmatprep.subr.bf16.mxu0 0
      %1265 = vmatpush1.bf16.msra.mxu0 %v1248
      %1266 = vmatprep.subr.bf16.mxu0 0
      %1267 = vmatpush2.bf16.msra.mxu0 0
      %1268 = vmatprep.subr.bf16.mxu0 0
      %1269 = vmatpush2.bf16.msra.mxu0 0
      %1270 = vmatprep.subr.bf16.mxu0 0
      %1271 = vmatpush2.bf16.msra.mxu0 0
      %1272 = vmatprep.subr.bf16.mxu0 0
      %1273 = vmatpush2.bf16.msra.mxu0 0
      %1274 = vmatprep.subr.bf16.mxu0 0
      %1275 = vmatpush2.bf16.msra.mxu0 0
      %1276 = vmatprep.subr.bf16.mxu0 0
      %1277 = vmatpush2.bf16.msra.mxu0 0
      %1278 = vmatprep.subr.bf16.mxu0 0
      %1279 = vmatpush2.bf16.msra.mxu0 0
      %1280 = vmatprep.subr.bf16.mxu0 0
      %1281 = vmatpush2.bf16.msra.mxu0 0
      %1282 = vmatprep.mubr.bf16.mxu0 0
      %1283 = vmatmul.mubr.bf16.gmra.mxu0 %v336
      %v1284 = vpop.f32.mrf.mxu0
      %v1285 = vadd.f32 0.0, %v1284
      %v1286 = vpop.f32.mrf.mxu0
      %v1287 = vpop.f32.mrf.mxu0
      %v1288 = vadd.f32 0.0, %v1287
      %v1289 = vpop.f32.mrf.mxu0
      %1290 = vmatprep.mubr.bf16.mxu0 0
      %1291 = vmatmul.mubr.bf16.gmra.mxu0 %v339
      %v1292 = vpop.f32.mrf.mxu0
      %v1293 = vadd.f32 0.0, %v1292
      %v1294 = vpop.f32.mrf.mxu0
      %v1295 = vpop.f32.mrf.mxu0
      %v1296 = vadd.f32 0.0, %v1295
      %v1297 = vpop.f32.mrf.mxu0
      %1298 = vmatprep.mubr.bf16.mxu0 0
      %1299 = vmatmul.mubr.bf16.gmra.mxu0 %v342
      %v1300 = vpop.f32.mrf.mxu0
      %v1301 = vadd.f32 0.0, %v1300
      %v1302 = vpop.f32.mrf.mxu0
      %v1303 = vpop.f32.mrf.mxu0
      %v1304 = vadd.f32 0.0, %v1303
      %v1305 = vpop.f32.mrf.mxu0
      %1306 = vmatprep.mubr.bf16.mxu0 0
      %1307 = vmatmul.mubr.bf16.gmra.mxu0 %v345
      %v1308 = vpop.f32.mrf.mxu0
      %v1309 = vadd.f32 0.0, %v1308
      %v1310 = vpop.f32.mrf.mxu0
      %v1311 = vpop.f32.mrf.mxu0
      %v1312 = vadd.f32 0.0, %v1311
      %v1313 = vpop.f32.mrf.mxu0
      %1314 = vmatprep.mubr.bf16.mxu0 0
      %1315 = vmatmul.mubr.bf16.gmra.mxu0 %v348
      %v1316 = vpop.f32.mrf.mxu0
      %v1317 = vadd.f32 0.0, %v1316
      %v1318 = vpop.f32.mrf.mxu0
      %v1319 = vpop.f32.mrf.mxu0
      %v1320 = vadd.f32 0.0, %v1319
      %v1321 = vpop.f32.mrf.mxu0
      %1322 = vmatprep.mubr.bf16.mxu0 0
      %1323 = vmatmul.mubr.bf16.gmra.mxu0 %v351
      %v1324 = vpop.f32.mrf.mxu0
      %v1325 = vadd.f32 0.0, %v1324
      %v1326 = vpop.f32.mrf.mxu0
      %v1327 = vpop.f32.mrf.mxu0
      %v1328 = vadd.f32 0.0, %v1327
      %v1329 = vpop.f32.mrf.mxu0
      %1330 = vmatprep.mubr.bf16.mxu0 0
      %1331 = vmatmul.mubr.bf16.gmra.mxu0 %v354
      %v1332 = vpop.f32.mrf.mxu0
      %v1333 = vadd.f32 0.0, %v1332
      %v1334 = vpop.f32.mrf.mxu0
      %v1335 = vpop.f32.mrf.mxu0
      %v1336 = vadd.f32 0.0, %v1335
      %v1337 = vpop.f32.mrf.mxu0
      %1338 = vmatprep.mubr.bf16.mxu0 0
      %1339 = vmatmul.mubr.bf16.gmra.mxu0 %v357
      %v1340 = vpop.f32.mrf.mxu0
      %v1341 = vadd.f32 0.0, %v1340
      %v1342 = vpop.f32.mrf.mxu0
      %v1343 = vpop.f32.mrf.mxu0
      %v1344 = vadd.f32 0.0, %v1343
      %v1345 = vpop.f32.mrf.mxu0
      %1346 = vmatprep.mubr.bf16.mxu0 0
      %1347 = vmatmul.mubr.bf16.gmra.mxu0 %v360
      %v1348 = vpop.f32.mrf.mxu0
      %v1349 = vadd.f32 0.0, %v1348
      %v1350 = vpop.f32.mrf.mxu0
      %v1351 = vpop.f32.mrf.mxu0
      %v1352 = vadd.f32 0.0, %v1351
      %v1353 = vpop.f32.mrf.mxu0
      %1354 = vmatprep.mubr.bf16.mxu0 0
      %1355 = vmatmul.mubr.bf16.gmra.mxu0 %v363
      %v1356 = vpop.f32.mrf.mxu0
      %v1357 = vadd.f32 0.0, %v1356
      %v1358 = vpop.f32.mrf.mxu0
      %v1359 = vpop.f32.mrf.mxu0
      %v1360 = vadd.f32 0.0, %v1359
      %v1361 = vpop.f32.mrf.mxu0
      %1362 = vmatprep.mubr.bf16.mxu0 0
      %1363 = vmatmul.mubr.bf16.gmra.mxu0 %v366
      %v1364 = vpop.f32.mrf.mxu0
      %v1365 = vadd.f32 0.0, %v1364
      %v1366 = vpop.f32.mrf.mxu0
      %v1367 = vpop.f32.mrf.mxu0
      %v1368 = vadd.f32 0.0, %v1367
      %v1369 = vpop.f32.mrf.mxu0
      %1370 = vmatprep.mubr.bf16.mxu0 0
      %1371 = vmatmul.mubr.bf16.gmra.mxu0 %v369
      %v1372 = vpop.f32.mrf.mxu0
      %v1373 = vadd.f32 0.0, %v1372
      %v1374 = vpop.f32.mrf.mxu0
      %v1375 = vpop.f32.mrf.mxu0
      %v1376 = vadd.f32 0.0, %v1375
      %v1377 = vpop.f32.mrf.mxu0
      %1378 = vmatprep.mubr.bf16.mxu0 0
      %1379 = vmatmul.mubr.bf16.gmra.mxu0 %v372
      %v1380 = vpop.f32.mrf.mxu0
      %v1381 = vadd.f32 0.0, %v1380
      %v1382 = vpop.f32.mrf.mxu0
      %v1383 = vpop.f32.mrf.mxu0
      %v1384 = vadd.f32 0.0, %v1383
      %v1385 = vpop.f32.mrf.mxu0
      %1386 = vmatprep.mubr.bf16.mxu0 0
      %1387 = vmatmul.mubr.bf16.gmra.mxu0 %v1245
      %v1388 = vpop.f32.mrf.mxu0
      %v1389 = vadd.f32 0.0, %v1388
      %v1390 = vpop.f32.mrf.mxu0
      %v1391 = vpop.f32.mrf.mxu0
      %v1392 = vadd.f32 0.0, %v1391
      %v1393 = vpop.f32.mrf.mxu0
      %1394 = vdwg.mxu0
      %v1395 = vld [vmem:[#allocation3] sm:$0xff]
      %v1396 = vld [vmem:[#allocation3 + $0x8] sm:$0xff]
      %v1397 = vld [vmem:[#allocation3 + $0x10] sm:$0xff]
      %v1398 = vld [vmem:[#allocation3 + $0x18] sm:$0xff]
      %v1399 = vld [vmem:[#allocation3 + $0x20] sm:$0xff]
      %v1400 = vld [vmem:[#allocation3 + $0x28] sm:$0xff]
      %v1401 = vld [vmem:[#allocation3 + $0x30] sm:$0xff]
      %v1402 = vld [vmem:[#allocation3 + $0x38] sm:$0xff]
      %v1403 = vld [vmem:[#allocation3 + $0x40] sm:$0xff]
      %v1404 = vld [vmem:[#allocation3 + $0x48] sm:$0xff]
      %v1405 = vld [vmem:[#allocation3 + $0x50] sm:$0xff]
      %v1406 = vld [vmem:[#allocation3 + $0x58] sm:$0xff]
      %v1407 = vld [vmem:[#allocation3 + $0x60] sm:$0xff]
      %v1408 = vld [vmem:[#allocation3 + $0x68] sm:$0xff]
      %v1409 = vld [vmem:[#allocation3 + $0x70] sm:$0xff]
      %v1410 = vld [vmem:[#allocation3 + $0x78] sm:$0xff]
      %v1411 = vld [vmem:[#allocation3 + $0x80] sm:$0xff]
      %v1412 = vld [vmem:[#allocation3 + $0x88] sm:$0xff]
      %v1413 = vld [vmem:[#allocation3 + $0x90] sm:$0xff]
      %v1414 = vld [vmem:[#allocation3 + $0x98] sm:$0xff]
      %v1415 = vld [vmem:[#allocation3 + $0xa0] sm:$0xff]
      %v1416 = vld [vmem:[#allocation3 + $0xa8] sm:$0xff]
      %v1417 = vld [vmem:[#allocation3 + $0xb0] sm:$0xff]
      %v1418 = vld [vmem:[#allocation3 + $0xb8] sm:$0xff]
      %v1419 = vld [vmem:[#allocation3 + $0xc0] sm:$0xff]
      %v1420 = vld [vmem:[#allocation3 + $0xc8] sm:$0xff]
      %v1421 = vld [vmem:[#allocation3 + $0xd0] sm:$0xff]
      %v1422 = vld [vmem:[#allocation3 + $0xd8] sm:$0xff]
      %v1423 = vadd.f32 %v1395, %v1285
      %v1424 = vadd.f32 %v1396, %v1288
      %v1425 = vadd.f32 %v1397, %v1293
      %v1426 = vadd.f32 %v1398, %v1296
      %v1427 = vadd.f32 %v1399, %v1301
      %v1428 = vadd.f32 %v1400, %v1304
      %v1429 = vadd.f32 %v1401, %v1309
      %v1430 = vadd.f32 %v1402, %v1312
      %v1431 = vadd.f32 %v1403, %v1317
      %v1432 = vadd.f32 %v1404, %v1320
      %v1433 = vadd.f32 %v1405, %v1325
      %v1434 = vadd.f32 %v1406, %v1328
      %v1435 = vadd.f32 %v1407, %v1333
      %v1436 = vadd.f32 %v1408, %v1336
      %v1437 = vadd.f32 %v1409, %v1341
      %v1438 = vadd.f32 %v1410, %v1344
      %v1439 = vadd.f32 %v1411, %v1349
      %v1440 = vadd.f32 %v1412, %v1352
      %v1441 = vadd.f32 %v1413, %v1357
      %v1442 = vadd.f32 %v1414, %v1360
      %v1443 = vadd.f32 %v1415, %v1365
      %v1444 = vadd.f32 %v1416, %v1368
      %v1445 = vadd.f32 %v1417, %v1373
      %v1446 = vadd.f32 %v1418, %v1376
      %v1447 = vadd.f32 %v1419, %v1381
      %v1448 = vadd.f32 %v1420, %v1384
      %v1449 = vadd.f32 %v1421, %v1389
      %v1450 = vadd.f32 %v1422, %v1392
      %1451 = vst [vmem:[#allocation3] sm:$0xff] %v1423
      %1452 = vst [vmem:[#allocation3 + $0x8] sm:$0xff] %v1424
      %1453 = vst [vmem:[#allocation3 + $0x10] sm:$0xff] %v1425
      %1454 = vst [vmem:[#allocation3 + $0x18] sm:$0xff] %v1426
      %1455 = vst [vmem:[#allocation3 + $0x20] sm:$0xff] %v1427
      %1456 = vst [vmem:[#allocation3 + $0x28] sm:$0xff] %v1428
      %1457 = vst [vmem:[#allocation3 + $0x30] sm:$0xff] %v1429
      %1458 = vst [vmem:[#allocation3 + $0x38] sm:$0xff] %v1430
      %1459 = vst [vmem:[#allocation3 + $0x40] sm:$0xff] %v1431
      %1460 = vst [vmem:[#allocation3 + $0x48] sm:$0xff] %v1432
      %1461 = vst [vmem:[#allocation3 + $0x50] sm:$0xff] %v1433
      %1462 = vst [vmem:[#allocation3 + $0x58] sm:$0xff] %v1434
      %1463 = vst [vmem:[#allocation3 + $0x60] sm:$0xff] %v1435
      %1464 = vst [vmem:[#allocation3 + $0x68] sm:$0xff] %v1436
      %1465 = vst [vmem:[#allocation3 + $0x70] sm:$0xff] %v1437
      %1466 = vst [vmem:[#allocation3 + $0x78] sm:$0xff] %v1438
      %1467 = vst [vmem:[#allocation3 + $0x80] sm:$0xff] %v1439
      %1468 = vst [vmem:[#allocation3 + $0x88] sm:$0xff] %v1440
      %1469 = vst [vmem:[#allocation3 + $0x90] sm:$0xff] %v1441
      %1470 = vst [vmem:[#allocation3 + $0x98] sm:$0xff] %v1442
      %1471 = vst [vmem:[#allocation3 + $0xa0] sm:$0xff] %v1443
      %1472 = vst [vmem:[#allocation3 + $0xa8] sm:$0xff] %v1444
      %1473 = vst [vmem:[#allocation3 + $0xb0] sm:$0xff] %v1445
      %1474 = vst [vmem:[#allocation3 + $0xb8] sm:$0xff] %v1446
      %1475 = vst [vmem:[#allocation3 + $0xc0] sm:$0xff] %v1447
      %1476 = vst [vmem:[#allocation3 + $0xc8] sm:$0xff] %v1448
      %1477 = vst [vmem:[#allocation3 + $0xd0] sm:$0xff] %v1449
      %1478 = vst [vmem:[#allocation3 + $0xd8] sm:$0xff] %v1450
      %s1479 = scalar_lea.vmem %s1, 16
      %v1480 = vld [vmem:[%s1479] sm:$0xf]
      %v1482 = vunpack.c.l.b16 %v257
      %v1483 = vpack.c.b16 %v1482, %v1482
      %v1484 = vshll.u32 %v1243, 16
      %v1486 = vrot.slane %v1484, 1
      %v1487 = vsel %vm556, %v653, %v1486
      %v1488 = vshrl.u32 %v1243, 16
      %v1490 = vor.u32 %v1488, %v1486
      %v1492 = vshll.u32 %v1483, 16
      %v1494 = vrot.slane %v1492, 1
      %v1495 = vsel %vm556, %v1490, %v1494
      %v1497 = vsel %vm331, %v1487, 0
      %v1500 = vsel %vm331, %v1495, 0
      %v1503 = vsel %vm374, %v1480, 0
      %1505 = vmatprep.subr.bf16.mxu0 0
      %1506 = vmatpush1.bf16.msra.mxu0 0
      %1507 = vmatprep.subr.bf16.mxu0 0
      %1508 = vmatpush1.bf16.msra.mxu0 0
      %1509 = vmatprep.subr.bf16.mxu0 0
      %1510 = vmatpush1.bf16.msra.mxu0 0
      %1511 = vmatprep.subr.bf16.mxu0 0
      %1512 = vmatpush1.bf16.msra.mxu0 0
      %1513 = vmatprep.subr.bf16.mxu0 0
      %1514 = vmatpush1.bf16.msra.mxu0 0
      %1515 = vmatprep.subr.bf16.mxu0 0
      %1516 = vmatpush1.bf16.msra.mxu0 0
      %1517 = vmatprep.subr.bf16.mxu0 0
      %1518 = vmatpush1.bf16.msra.mxu0 0
      %1519 = vmatprep.subr.bf16.mxu0 0
      %1520 = vmatpush1.bf16.msra.mxu0 %v1503
      %1521 = vmatprep.subr.bf16.mxu0 0
      %1522 = vmatpush2.bf16.msra.mxu0 0
      %1523 = vmatprep.subr.bf16.mxu0 0
      %1524 = vmatpush2.bf16.msra.mxu0 0
      %1525 = vmatprep.subr.bf16.mxu0 0
      %1526 = vmatpush2.bf16.msra.mxu0 0
      %1527 = vmatprep.subr.bf16.mxu0 0
      %1528 = vmatpush2.bf16.msra.mxu0 0
      %1529 = vmatprep.subr.bf16.mxu0 0
      %1530 = vmatpush2.bf16.msra.mxu0 0
      %1531 = vmatprep.subr.bf16.mxu0 0
      %1532 = vmatpush2.bf16.msra.mxu0 0
      %1533 = vmatprep.subr.bf16.mxu0 0
      %1534 = vmatpush2.bf16.msra.mxu0 0
      %1535 = vmatprep.subr.bf16.mxu0 0
      %1536 = vmatpush2.bf16.msra.mxu0 0
      %1537 = vmatprep.mubr.bf16.mxu0 0
      %1538 = vmatmul.mubr.bf16.gmra.mxu0 %v663
      %v1539 = vpop.f32.mrf.mxu0
      %v1540 = vadd.f32 0.0, %v1539
      %v1541 = vpop.f32.mrf.mxu0
      %v1542 = vpop.f32.mrf.mxu0
      %v1543 = vadd.f32 0.0, %v1542
      %v1544 = vpop.f32.mrf.mxu0
      %1545 = vmatprep.mubr.bf16.mxu0 0
      %1546 = vmatmul.mubr.bf16.gmra.mxu0 %v666
      %v1547 = vpop.f32.mrf.mxu0
      %v1548 = vadd.f32 0.0, %v1547
      %v1549 = vpop.f32.mrf.mxu0
      %v1550 = vpop.f32.mrf.mxu0
      %v1551 = vadd.f32 0.0, %v1550
      %v1552 = vpop.f32.mrf.mxu0
      %1553 = vmatprep.mubr.bf16.mxu0 0
      %1554 = vmatmul.mubr.bf16.gmra.mxu0 %v669
      %v1555 = vpop.f32.mrf.mxu0
      %v1556 = vadd.f32 0.0, %v1555
      %v1557 = vpop.f32.mrf.mxu0
      %v1558 = vpop.f32.mrf.mxu0
      %v1559 = vadd.f32 0.0, %v1558
      %v1560 = vpop.f32.mrf.mxu0
      %1561 = vmatprep.mubr.bf16.mxu0 0
      %1562 = vmatmul.mubr.bf16.gmra.mxu0 %v672
      %v1563 = vpop.f32.mrf.mxu0
      %v1564 = vadd.f32 0.0, %v1563
      %v1565 = vpop.f32.mrf.mxu0
      %v1566 = vpop.f32.mrf.mxu0
      %v1567 = vadd.f32 0.0, %v1566
      %v1568 = vpop.f32.mrf.mxu0
      %1569 = vmatprep.mubr.bf16.mxu0 0
      %1570 = vmatmul.mubr.bf16.gmra.mxu0 %v675
      %v1571 = vpop.f32.mrf.mxu0
      %v1572 = vadd.f32 0.0, %v1571
      %v1573 = vpop.f32.mrf.mxu0
      %v1574 = vpop.f32.mrf.mxu0
      %v1575 = vadd.f32 0.0, %v1574
      %v1576 = vpop.f32.mrf.mxu0
      %1577 = vmatprep.mubr.bf16.mxu0 0
      %1578 = vmatmul.mubr.bf16.gmra.mxu0 %v678
      %v1579 = vpop.f32.mrf.mxu0
      %v1580 = vadd.f32 0.0, %v1579
      %v1581 = vpop.f32.mrf.mxu0
      %v1582 = vpop.f32.mrf.mxu0
      %v1583 = vadd.f32 0.0, %v1582
      %v1584 = vpop.f32.mrf.mxu0
      %1585 = vmatprep.mubr.bf16.mxu0 0
      %1586 = vmatmul.mubr.bf16.gmra.mxu0 %v681
      %v1587 = vpop.f32.mrf.mxu0
      %v1588 = vadd.f32 0.0, %v1587
      %v1589 = vpop.f32.mrf.mxu0
      %v1590 = vpop.f32.mrf.mxu0
      %v1591 = vadd.f32 0.0, %v1590
      %v1592 = vpop.f32.mrf.mxu0
      %1593 = vmatprep.mubr.bf16.mxu0 0
      %1594 = vmatmul.mubr.bf16.gmra.mxu0 %v684
      %v1595 = vpop.f32.mrf.mxu0
      %v1596 = vadd.f32 0.0, %v1595
      %v1597 = vpop.f32.mrf.mxu0
      %v1598 = vpop.f32.mrf.mxu0
      %v1599 = vadd.f32 0.0, %v1598
      %v1600 = vpop.f32.mrf.mxu0
      %1601 = vmatprep.mubr.bf16.mxu0 0
      %1602 = vmatmul.mubr.bf16.gmra.mxu0 %v687
      %v1603 = vpop.f32.mrf.mxu0
      %v1604 = vadd.f32 0.0, %v1603
      %v1605 = vpop.f32.mrf.mxu0
      %v1606 = vpop.f32.mrf.mxu0
      %v1607 = vadd.f32 0.0, %v1606
      %v1608 = vpop.f32.mrf.mxu0
      %1609 = vmatprep.mubr.bf16.mxu0 0
      %1610 = vmatmul.mubr.bf16.gmra.mxu0 %v690
      %v1611 = vpop.f32.mrf.mxu0
      %v1612 = vadd.f32 0.0, %v1611
      %v1613 = vpop.f32.mrf.mxu0
      %v1614 = vpop.f32.mrf.mxu0
      %v1615 = vadd.f32 0.0, %v1614
      %v1616 = vpop.f32.mrf.mxu0
      %1617 = vmatprep.mubr.bf16.mxu0 0
      %1618 = vmatmul.mubr.bf16.gmra.mxu0 %v693
      %v1619 = vpop.f32.mrf.mxu0
      %v1620 = vadd.f32 0.0, %v1619
      %v1621 = vpop.f32.mrf.mxu0
      %v1622 = vpop.f32.mrf.mxu0
      %v1623 = vadd.f32 0.0, %v1622
      %v1624 = vpop.f32.mrf.mxu0
      %1625 = vmatprep.mubr.bf16.mxu0 0
      %1626 = vmatmul.mubr.bf16.gmra.mxu0 %v696
      %v1627 = vpop.f32.mrf.mxu0
      %v1628 = vadd.f32 0.0, %v1627
      %v1629 = vpop.f32.mrf.mxu0
      %v1630 = vpop.f32.mrf.mxu0
      %v1631 = vadd.f32 0.0, %v1630
      %v1632 = vpop.f32.mrf.mxu0
      %1633 = vmatprep.mubr.bf16.mxu0 0
      %1634 = vmatmul.mubr.bf16.gmra.mxu0 %v1497
      %v1635 = vpop.f32.mrf.mxu0
      %v1636 = vadd.f32 0.0, %v1635
      %v1637 = vpop.f32.mrf.mxu0
      %v1638 = vpop.f32.mrf.mxu0
      %v1639 = vadd.f32 0.0, %v1638
      %v1640 = vpop.f32.mrf.mxu0
      %1641 = vmatprep.mubr.bf16.mxu0 0
      %1642 = vmatmul.mubr.bf16.gmra.mxu0 %v1500
      %v1643 = vpop.f32.mrf.mxu0
      %v1644 = vadd.f32 0.0, %v1643
      %v1645 = vpop.f32.mrf.mxu0
      %v1646 = vpop.f32.mrf.mxu0
      %v1647 = vadd.f32 0.0, %v1646
      %v1648 = vpop.f32.mrf.mxu0
      %1649 = vdwg.mxu0
      %v1650 = vld [vmem:[#allocation3] sm:$0xff]
      %v1651 = vld [vmem:[#allocation3 + $0x8] sm:$0xff]
      %v1652 = vld [vmem:[#allocation3 + $0x10] sm:$0xff]
      %v1653 = vld [vmem:[#allocation3 + $0x18] sm:$0xff]
      %v1654 = vld [vmem:[#allocation3 + $0x20] sm:$0xff]
      %v1655 = vld [vmem:[#allocation3 + $0x28] sm:$0xff]
      %v1656 = vld [vmem:[#allocation3 + $0x30] sm:$0xff]
      %v1657 = vld [vmem:[#allocation3 + $0x38] sm:$0xff]
      %v1658 = vld [vmem:[#allocation3 + $0x40] sm:$0xff]
      %v1659 = vld [vmem:[#allocation3 + $0x48] sm:$0xff]
      %v1660 = vld [vmem:[#allocation3 + $0x50] sm:$0xff]
      %v1661 = vld [vmem:[#allocation3 + $0x58] sm:$0xff]
      %v1662 = vld [vmem:[#allocation3 + $0x60] sm:$0xff]
      %v1663 = vld [vmem:[#allocation3 + $0x68] sm:$0xff]
      %v1664 = vld [vmem:[#allocation3 + $0x70] sm:$0xff]
      %v1665 = vld [vmem:[#allocation3 + $0x78] sm:$0xff]
      %v1666 = vld [vmem:[#allocation3 + $0x80] sm:$0xff]
      %v1667 = vld [vmem:[#allocation3 + $0x88] sm:$0xff]
      %v1668 = vld [vmem:[#allocation3 + $0x90] sm:$0xff]
      %v1669 = vld [vmem:[#allocation3 + $0x98] sm:$0xff]
      %v1670 = vld [vmem:[#allocation3 + $0xa0] sm:$0xff]
      %v1671 = vld [vmem:[#allocation3 + $0xa8] sm:$0xff]
      %v1672 = vld [vmem:[#allocation3 + $0xb0] sm:$0xff]
      %v1673 = vld [vmem:[#allocation3 + $0xb8] sm:$0xff]
      %v1674 = vld [vmem:[#allocation3 + $0xc0] sm:$0xff]
      %v1675 = vld [vmem:[#allocation3 + $0xc8] sm:$0xff]
      %v1676 = vld [vmem:[#allocation3 + $0xd0] sm:$0xff]
      %v1677 = vld [vmem:[#allocation3 + $0xd8] sm:$0xff]
      %v1678 = vadd.f32 %v1650, %v1540
      %v1679 = vadd.f32 %v1651, %v1543
      %v1680 = vadd.f32 %v1652, %v1548
      %v1681 = vadd.f32 %v1653, %v1551
      %v1682 = vadd.f32 %v1654, %v1556
      %v1683 = vadd.f32 %v1655, %v1559
      %v1684 = vadd.f32 %v1656, %v1564
      %v1685 = vadd.f32 %v1657, %v1567
      %v1686 = vadd.f32 %v1658, %v1572
      %v1687 = vadd.f32 %v1659, %v1575
      %v1688 = vadd.f32 %v1660, %v1580
      %v1689 = vadd.f32 %v1661, %v1583
      %v1690 = vadd.f32 %v1662, %v1588
      %v1691 = vadd.f32 %v1663, %v1591
      %v1692 = vadd.f32 %v1664, %v1596
      %v1693 = vadd.f32 %v1665, %v1599
      %v1694 = vadd.f32 %v1666, %v1604
      %v1695 = vadd.f32 %v1667, %v1607
      %v1696 = vadd.f32 %v1668, %v1612
      %v1697 = vadd.f32 %v1669, %v1615
      %v1698 = vadd.f32 %v1670, %v1620
      %v1699 = vadd.f32 %v1671, %v1623
      %v1700 = vadd.f32 %v1672, %v1628
      %v1701 = vadd.f32 %v1673, %v1631
      %v1702 = vadd.f32 %v1674, %v1636
      %v1703 = vadd.f32 %v1675, %v1639
      %v1704 = vadd.f32 %v1676, %v1644
      %v1705 = vadd.f32 %v1677, %v1647
      %1706 = vst [vmem:[#allocation3] sm:$0xff] %v1678
      %1707 = vst [vmem:[#allocation3 + $0x8] sm:$0xff] %v1679
      %1708 = vst [vmem:[#allocation3 + $0x10] sm:$0xff] %v1680
      %1709 = vst [vmem:[#allocation3 + $0x18] sm:$0xff] %v1681
      %1710 = vst [vmem:[#allocation3 + $0x20] sm:$0xff] %v1682
      %1711 = vst [vmem:[#allocation3 + $0x28] sm:$0xff] %v1683
      %1712 = vst [vmem:[#allocation3 + $0x30] sm:$0xff] %v1684
      %1713 = vst [vmem:[#allocation3 + $0x38] sm:$0xff] %v1685
      %1714 = vst [vmem:[#allocation3 + $0x40] sm:$0xff] %v1686
      %1715 = vst [vmem:[#allocation3 + $0x48] sm:$0xff] %v1687
      %1716 = vst [vmem:[#allocation3 + $0x50] sm:$0xff] %v1688
      %1717 = vst [vmem:[#allocation3 + $0x58] sm:$0xff] %v1689
      %1718 = vst [vmem:[#allocation3 + $0x60] sm:$0xff] %v1690
      %1719 = vst [vmem:[#allocation3 + $0x68] sm:$0xff] %v1691
      %1720 = vst [vmem:[#allocation3 + $0x70] sm:$0xff] %v1692
      %1721 = vst [vmem:[#allocation3 + $0x78] sm:$0xff] %v1693
      %1722 = vst [vmem:[#allocation3 + $0x80] sm:$0xff] %v1694
      %1723 = vst [vmem:[#allocation3 + $0x88] sm:$0xff] %v1695
      %1724 = vst [vmem:[#allocation3 + $0x90] sm:$0xff] %v1696
      %1725 = vst [vmem:[#allocation3 + $0x98] sm:$0xff] %v1697
      %1726 = vst [vmem:[#allocation3 + $0xa0] sm:$0xff] %v1698
      %1727 = vst [vmem:[#allocation3 + $0xa8] sm:$0xff] %v1699
      %1728 = vst [vmem:[#allocation3 + $0xb0] sm:$0xff] %v1700
      %1729 = vst [vmem:[#allocation3 + $0xb8] sm:$0xff] %v1701
      %1730 = vst [vmem:[#allocation3 + $0xc0] sm:$0xff] %v1702
      %1731 = vst [vmem:[#allocation3 + $0xc8] sm:$0xff] %v1703
      %1732 = vst [vmem:[#allocation3 + $0xd0] sm:$0xff] %v1704
      %1733 = vst [vmem:[#allocation3 + $0xd8] sm:$0xff] %v1705
      %s1734 = scalar_lea.vmem %s1, 20
      %v1735 = vld [vmem:[%s1734] sm:$0xf]
      %v1736 = vrot.slane %v1243, 1
      %v1737 = vsel %vm935, %v961, %v1736
      %v1738 = vrot.slane %v1483, 1
      %v1739 = vsel %vm935, %v1736, %v1738
      %v1741 = vsel %vm331, %v1737, 0
      %v1744 = vsel %vm331, %v1739, 0
      %v1747 = vsel %vm374, %v1735, 0
      %1749 = vmatprep.subr.bf16.mxu0 0
      %1750 = vmatpush1.bf16.msra.mxu0 0
      %1751 = vmatprep.subr.bf16.mxu0 0
      %1752 = vmatpush1.bf16.msra.mxu0 0
      %1753 = vmatprep.subr.bf16.mxu0 0
      %1754 = vmatpush1.bf16.msra.mxu0 0
      %1755 = vmatprep.subr.bf16.mxu0 0
      %1756 = vmatpush1.bf16.msra.mxu0 0
      %1757 = vmatprep.subr.bf16.mxu0 0
      %1758 = vmatpush1.bf16.msra.mxu0 0
      %1759 = vmatprep.subr.bf16.mxu0 0
      %1760 = vmatpush1.bf16.msra.mxu0 0
      %1761 = vmatprep.subr.bf16.mxu0 0
      %1762 = vmatpush1.bf16.msra.mxu0 0
      %1763 = vmatprep.subr.bf16.mxu0 0
      %1764 = vmatpush1.bf16.msra.mxu0 %v1747
      %1765 = vmatprep.subr.bf16.mxu0 0
      %1766 = vmatpush2.bf16.msra.mxu0 0
      %1767 = vmatprep.subr.bf16.mxu0 0
      %1768 = vmatpush2.bf16.msra.mxu0 0
      %1769 = vmatprep.subr.bf16.mxu0 0
      %1770 = vmatpush2.bf16.msra.mxu0 0
      %1771 = vmatprep.subr.bf16.mxu0 0
      %1772 = vmatpush2.bf16.msra.mxu0 0
      %1773 = vmatprep.subr.bf16.mxu0 0
      %1774 = vmatpush2.bf16.msra.mxu0 0
      %1775 = vmatprep.subr.bf16.mxu0 0
      %1776 = vmatpush2.bf16.msra.mxu0 0
      %1777 = vmatprep.subr.bf16.mxu0 0
      %1778 = vmatpush2.bf16.msra.mxu0 0
      %1779 = vmatprep.subr.bf16.mxu0 0
      %1780 = vmatpush2.bf16.msra.mxu0 0
      %1781 = vmatprep.mubr.bf16.mxu0 0
      %1782 = vmatmul.mubr.bf16.gmra.mxu0 %v969
      %v1783 = vpop.f32.mrf.mxu0
      %v1784 = vadd.f32 0.0, %v1783
      %v1785 = vpop.f32.mrf.mxu0
      %v1786 = vpop.f32.mrf.mxu0
      %v1787 = vadd.f32 0.0, %v1786
      %v1788 = vpop.f32.mrf.mxu0
      %1789 = vmatprep.mubr.bf16.mxu0 0
      %1790 = vmatmul.mubr.bf16.gmra.mxu0 %v972
      %v1791 = vpop.f32.mrf.mxu0
      %v1792 = vadd.f32 0.0, %v1791
      %v1793 = vpop.f32.mrf.mxu0
      %v1794 = vpop.f32.mrf.mxu0
      %v1795 = vadd.f32 0.0, %v1794
      %v1796 = vpop.f32.mrf.mxu0
      %1797 = vmatprep.mubr.bf16.mxu0 0
      %1798 = vmatmul.mubr.bf16.gmra.mxu0 %v975
      %v1799 = vpop.f32.mrf.mxu0
      %v1800 = vadd.f32 0.0, %v1799
      %v1801 = vpop.f32.mrf.mxu0
      %v1802 = vpop.f32.mrf.mxu0
      %v1803 = vadd.f32 0.0, %v1802
      %v1804 = vpop.f32.mrf.mxu0
      %1805 = vmatprep.mubr.bf16.mxu0 0
      %1806 = vmatmul.mubr.bf16.gmra.mxu0 %v978
      %v1807 = vpop.f32.mrf.mxu0
      %v1808 = vadd.f32 0.0, %v1807
      %v1809 = vpop.f32.mrf.mxu0
      %v1810 = vpop.f32.mrf.mxu0
      %v1811 = vadd.f32 0.0, %v1810
      %v1812 = vpop.f32.mrf.mxu0
      %1813 = vmatprep.mubr.bf16.mxu0 0
      %1814 = vmatmul.mubr.bf16.gmra.mxu0 %v981
      %v1815 = vpop.f32.mrf.mxu0
      %v1816 = vadd.f32 0.0, %v1815
      %v1817 = vpop.f32.mrf.mxu0
      %v1818 = vpop.f32.mrf.mxu0
      %v1819 = vadd.f32 0.0, %v1818
      %v1820 = vpop.f32.mrf.mxu0
      %1821 = vmatprep.mubr.bf16.mxu0 0
      %1822 = vmatmul.mubr.bf16.gmra.mxu0 %v984
      %v1823 = vpop.f32.mrf.mxu0
      %v1824 = vadd.f32 0.0, %v1823
      %v1825 = vpop.f32.mrf.mxu0
      %v1826 = vpop.f32.mrf.mxu0
      %v1827 = vadd.f32 0.0, %v1826
      %v1828 = vpop.f32.mrf.mxu0
      %1829 = vmatprep.mubr.bf16.mxu0 0
      %1830 = vmatmul.mubr.bf16.gmra.mxu0 %v987
      %v1831 = vpop.f32.mrf.mxu0
      %v1832 = vadd.f32 0.0, %v1831
      %v1833 = vpop.f32.mrf.mxu0
      %v1834 = vpop.f32.mrf.mxu0
      %v1835 = vadd.f32 0.0, %v1834
      %v1836 = vpop.f32.mrf.mxu0
      %1837 = vmatprep.mubr.bf16.mxu0 0
      %1838 = vmatmul.mubr.bf16.gmra.mxu0 %v990
      %v1839 = vpop.f32.mrf.mxu0
      %v1840 = vadd.f32 0.0, %v1839
      %v1841 = vpop.f32.mrf.mxu0
      %v1842 = vpop.f32.mrf.mxu0
      %v1843 = vadd.f32 0.0, %v1842
      %v1844 = vpop.f32.mrf.mxu0
      %1845 = vmatprep.mubr.bf16.mxu0 0
      %1846 = vmatmul.mubr.bf16.gmra.mxu0 %v993
      %v1847 = vpop.f32.mrf.mxu0
      %v1848 = vadd.f32 0.0, %v1847
      %v1849 = vpop.f32.mrf.mxu0
      %v1850 = vpop.f32.mrf.mxu0
      %v1851 = vadd.f32 0.0, %v1850
      %v1852 = vpop.f32.mrf.mxu0
      %1853 = vmatprep.mubr.bf16.mxu0 0
      %1854 = vmatmul.mubr.bf16.gmra.mxu0 %v996
      %v1855 = vpop.f32.mrf.mxu0
      %v1856 = vadd.f32 0.0, %v1855
      %v1857 = vpop.f32.mrf.mxu0
      %v1858 = vpop.f32.mrf.mxu0
      %v1859 = vadd.f32 0.0, %v1858
      %v1860 = vpop.f32.mrf.mxu0
      %1861 = vmatprep.mubr.bf16.mxu0 0
      %1862 = vmatmul.mubr.bf16.gmra.mxu0 %v999
      %v1863 = vpop.f32.mrf.mxu0
      %v1864 = vadd.f32 0.0, %v1863
      %v1865 = vpop.f32.mrf.mxu0
      %v1866 = vpop.f32.mrf.mxu0
      %v1867 = vadd.f32 0.0, %v1866
      %v1868 = vpop.f32.mrf.mxu0
      %1869 = vmatprep.mubr.bf16.mxu0 0
      %1870 = vmatmul.mubr.bf16.gmra.mxu0 %v1002
      %v1871 = vpop.f32.mrf.mxu0
      %v1872 = vadd.f32 0.0, %v1871
      %v1873 = vpop.f32.mrf.mxu0
      %v1874 = vpop.f32.mrf.mxu0
      %v1875 = vadd.f32 0.0, %v1874
      %v1876 = vpop.f32.mrf.mxu0
      %1877 = vmatprep.mubr.bf16.mxu0 0
      %1878 = vmatmul.mubr.bf16.gmra.mxu0 %v1741
      %v1879 = vpop.f32.mrf.mxu0
      %v1880 = vadd.f32 0.0, %v1879
      %v1881 = vpop.f32.mrf.mxu0
      %v1882 = vpop.f32.mrf.mxu0
      %v1883 = vadd.f32 0.0, %v1882
      %v1884 = vpop.f32.mrf.mxu0
      %1885 = vmatprep.mubr.bf16.mxu0 0
      %1886 = vmatmul.mubr.bf16.gmra.mxu0 %v1744
      %v1887 = vpop.f32.mrf.mxu0
      %v1888 = vadd.f32 0.0, %v1887
      %v1889 = vpop.f32.mrf.mxu0
      %v1890 = vpop.f32.mrf.mxu0
      %v1891 = vadd.f32 0.0, %v1890
      %v1892 = vpop.f32.mrf.mxu0
      %1893 = vdwg.mxu0
      %v1894 = vld [vmem:[#allocation3] sm:$0xff]
      %v1895 = vld [vmem:[#allocation3 + $0x8] sm:$0xff]
      %v1896 = vld [vmem:[#allocation3 + $0x10] sm:$0xff]
      %v1897 = vld [vmem:[#allocation3 + $0x18] sm:$0xff]
      %v1898 = vld [vmem:[#allocation3 + $0x20] sm:$0xff]
      %v1899 = vld [vmem:[#allocation3 + $0x28] sm:$0xff]
      %v1900 = vld [vmem:[#allocation3 + $0x30] sm:$0xff]
      %v1901 = vld [vmem:[#allocation3 + $0x38] sm:$0xff]
      %v1902 = vld [vmem:[#allocation3 + $0x40] sm:$0xff]
      %v1903 = vld [vmem:[#allocation3 + $0x48] sm:$0xff]
      %v1904 = vld [vmem:[#allocation3 + $0x50] sm:$0xff]
      %v1905 = vld [vmem:[#allocation3 + $0x58] sm:$0xff]
      %v1906 = vld [vmem:[#allocation3 + $0x60] sm:$0xff]
      %v1907 = vld [vmem:[#allocation3 + $0x68] sm:$0xff]
      %v1908 = vld [vmem:[#allocation3 + $0x70] sm:$0xff]
      %v1909 = vld [vmem:[#allocation3 + $0x78] sm:$0xff]
      %v1910 = vld [vmem:[#allocation3 + $0x80] sm:$0xff]
      %v1911 = vld [vmem:[#allocation3 + $0x88] sm:$0xff]
      %v1912 = vld [vmem:[#allocation3 + $0x90] sm:$0xff]
      %v1913 = vld [vmem:[#allocation3 + $0x98] sm:$0xff]
      %v1914 = vld [vmem:[#allocation3 + $0xa0] sm:$0xff]
      %v1915 = vld [vmem:[#allocation3 + $0xa8] sm:$0xff]
      %v1916 = vld [vmem:[#allocation3 + $0xb0] sm:$0xff]
      %v1917 = vld [vmem:[#allocation3 + $0xb8] sm:$0xff]
      %v1918 = vld [vmem:[#allocation3 + $0xc0] sm:$0xff]
      %v1919 = vld [vmem:[#allocation3 + $0xc8] sm:$0xff]
      %v1920 = vld [vmem:[#allocation3 + $0xd0] sm:$0xff]
      %v1921 = vld [vmem:[#allocation3 + $0xd8] sm:$0xff]
      %v1922 = vadd.f32 %v1894, %v1784
      %v1923 = vadd.f32 %v1895, %v1787
      %v1924 = vadd.f32 %v1896, %v1792
      %v1925 = vadd.f32 %v1897, %v1795
      %v1926 = vadd.f32 %v1898, %v1800
      %v1927 = vadd.f32 %v1899, %v1803
      %v1928 = vadd.f32 %v1900, %v1808
      %v1929 = vadd.f32 %v1901, %v1811
      %v1930 = vadd.f32 %v1902, %v1816
      %v1931 = vadd.f32 %v1903, %v1819
      %v1932 = vadd.f32 %v1904, %v1824
      %v1933 = vadd.f32 %v1905, %v1827
      %v1934 = vadd.f32 %v1906, %v1832
      %v1935 = vadd.f32 %v1907, %v1835
      %v1936 = vadd.f32 %v1908, %v1840
      %v1937 = vadd.f32 %v1909, %v1843
      %v1938 = vadd.f32 %v1910, %v1848
      %v1939 = vadd.f32 %v1911, %v1851
      %v1940 = vadd.f32 %v1912, %v1856
      %v1941 = vadd.f32 %v1913, %v1859
      %v1942 = vadd.f32 %v1914, %v1864
      %v1943 = vadd.f32 %v1915, %v1867
      %v1944 = vadd.f32 %v1916, %v1872
      %v1945 = vadd.f32 %v1917, %v1875
      %v1946 = vadd.f32 %v1918, %v1880
      %v1947 = vadd.f32 %v1919, %v1883
      %v1948 = vadd.f32 %v1920, %v1888
      %v1949 = vadd.f32 %v1921, %v1891
      %1950 = vst [vmem:[#allocation3] sm:$0xff] %v1922
      %1951 = vst [vmem:[#allocation3 + $0x8] sm:$0xff] %v1923
      %1952 = vst [vmem:[#allocation3 + $0x10] sm:$0xff] %v1924
      %1953 = vst [vmem:[#allocation3 + $0x18] sm:$0xff] %v1925
      %1954 = vst [vmem:[#allocation3 + $0x20] sm:$0xff] %v1926
      %1955 = vst [vmem:[#allocation3 + $0x28] sm:$0xff] %v1927
      %1956 = vst [vmem:[#allocation3 + $0x30] sm:$0xff] %v1928
      %1957 = vst [vmem:[#allocation3 + $0x38] sm:$0xff] %v1929
      %1958 = vst [vmem:[#allocation3 + $0x40] sm:$0xff] %v1930
      %1959 = vst [vmem:[#allocation3 + $0x48] sm:$0xff] %v1931
      %1960 = vst [vmem:[#allocation3 + $0x50] sm:$0xff] %v1932
      %1961 = vst [vmem:[#allocation3 + $0x58] sm:$0xff] %v1933
      %1962 = vst [vmem:[#allocation3 + $0x60] sm:$0xff] %v1934
      %1963 = vst [vmem:[#allocation3 + $0x68] sm:$0xff] %v1935
      %1964 = vst [vmem:[#allocation3 + $0x70] sm:$0xff] %v1936
      %1965 = vst [vmem:[#allocation3 + $0x78] sm:$0xff] %v1937
      %1966 = vst [vmem:[#allocation3 + $0x80] sm:$0xff] %v1938
      %1967 = vst [vmem:[#allocation3 + $0x88] sm:$0xff] %v1939
      %1968 = vst [vmem:[#allocation3 + $0x90] sm:$0xff] %v1940
      %1969 = vst [vmem:[#allocation3 + $0x98] sm:$0xff] %v1941
      %1970 = vst [vmem:[#allocation3 + $0xa0] sm:$0xff] %v1942
      %1971 = vst [vmem:[#allocation3 + $0xa8] sm:$0xff] %v1943
      %1972 = vst [vmem:[#allocation3 + $0xb0] sm:$0xff] %v1944
      %1973 = vst [vmem:[#allocation3 + $0xb8] sm:$0xff] %v1945
      %1974 = vst [vmem:[#allocation3 + $0xc0] sm:$0xff] %v1946
      %1975 = vst [vmem:[#allocation3 + $0xc8] sm:$0xff] %v1947
      %1976 = vst [vmem:[#allocation3 + $0xd0] sm:$0xff] %v1948
      %1977 = vst [vmem:[#allocation3 + $0xd8] sm:$0xff] %v1949
      %s1978 = scalar_lea.vmem %s1, 24
      %v1979 = vld [vmem:[%s1978] sm:$0xf]
      %v1981 = vunpack.c.l.b16 %v258
      %v1982 = vpack.c.b16 %v1981, %v1482
      %v1984 = vsel %vm331, %v1982, 0
      %v1987 = vsel %vm374, %v1979, 0
      %1989 = vmatprep.subr.bf16.mxu0 0
      %1990 = vmatpush1.bf16.msra.mxu0 0
      %1991 = vmatprep.subr.bf16.mxu0 0
      %1992 = vmatpush1.bf16.msra.mxu0 0
      %1993 = vmatprep.subr.bf16.mxu0 0
      %1994 = vmatpush1.bf16.msra.mxu0 0
      %1995 = vmatprep.subr.bf16.mxu0 0
      %1996 = vmatpush1.bf16.msra.mxu0 0
      %1997 = vmatprep.subr.bf16.mxu0 0
      %1998 = vmatpush1.bf16.msra.mxu0 0
      %1999 = vmatprep.subr.bf16.mxu0 0
      %2000 = vmatpush1.bf16.msra.mxu0 0
      %2001 = vmatprep.subr.bf16.mxu0 0
      %2002 = vmatpush1.bf16.msra.mxu0 0
      %2003 = vmatprep.subr.bf16.mxu0 0
      %2004 = vmatpush1.bf16.msra.mxu0 %v1987
      %2005 = vmatprep.subr.bf16.mxu0 0
      %2006 = vmatpush2.bf16.msra.mxu0 0
      %2007 = vmatprep.subr.bf16.mxu0 0
      %2008 = vmatpush2.bf16.msra.mxu0 0
      %2009 = vmatprep.subr.bf16.mxu0 0
      %2010 = vmatpush2.bf16.msra.mxu0 0
      %2011 = vmatprep.subr.bf16.mxu0 0
      %2012 = vmatpush2.bf16.msra.mxu0 0
      %2013 = vmatprep.subr.bf16.mxu0 0
      %2014 = vmatpush2.bf16.msra.mxu0 0
      %2015 = vmatprep.subr.bf16.mxu0 0
      %2016 = vmatpush2.bf16.msra.mxu0 0
      %2017 = vmatprep.subr.bf16.mxu0 0
      %2018 = vmatpush2.bf16.msra.mxu0 0
      %2019 = vmatprep.subr.bf16.mxu0 0
      %2020 = vmatpush2.bf16.msra.mxu0 0
      %2021 = vmatprep.mubr.bf16.mxu0 0
      %2022 = vmatmul.mubr.bf16.gmra.mxu0 %v339
      %v2023 = vpop.f32.mrf.mxu0
      %v2024 = vadd.f32 0.0, %v2023
      %v2025 = vpop.f32.mrf.mxu0
      %v2026 = vpop.f32.mrf.mxu0
      %v2027 = vadd.f32 0.0, %v2026
      %v2028 = vpop.f32.mrf.mxu0
      %2029 = vmatprep.mubr.bf16.mxu0 0
      %2030 = vmatmul.mubr.bf16.gmra.mxu0 %v342
      %v2031 = vpop.f32.mrf.mxu0
      %v2032 = vadd.f32 0.0, %v2031
      %v2033 = vpop.f32.mrf.mxu0
      %v2034 = vpop.f32.mrf.mxu0
      %v2035 = vadd.f32 0.0, %v2034
      %v2036 = vpop.f32.mrf.mxu0
      %2037 = vmatprep.mubr.bf16.mxu0 0
      %2038 = vmatmul.mubr.bf16.gmra.mxu0 %v345
      %v2039 = vpop.f32.mrf.mxu0
      %v2040 = vadd.f32 0.0, %v2039
      %v2041 = vpop.f32.mrf.mxu0
      %v2042 = vpop.f32.mrf.mxu0
      %v2043 = vadd.f32 0.0, %v2042
      %v2044 = vpop.f32.mrf.mxu0
      %2045 = vmatprep.mubr.bf16.mxu0 0
      %2046 = vmatmul.mubr.bf16.gmra.mxu0 %v348
      %v2047 = vpop.f32.mrf.mxu0
      %v2048 = vadd.f32 0.0, %v2047
      %v2049 = vpop.f32.mrf.mxu0
      %v2050 = vpop.f32.mrf.mxu0
      %v2051 = vadd.f32 0.0, %v2050
      %v2052 = vpop.f32.mrf.mxu0
      %2053 = vmatprep.mubr.bf16.mxu0 0
      %2054 = vmatmul.mubr.bf16.gmra.mxu0 %v351
      %v2055 = vpop.f32.mrf.mxu0
      %v2056 = vadd.f32 0.0, %v2055
      %v2057 = vpop.f32.mrf.mxu0
      %v2058 = vpop.f32.mrf.mxu0
      %v2059 = vadd.f32 0.0, %v2058
      %v2060 = vpop.f32.mrf.mxu0
      %2061 = vmatprep.mubr.bf16.mxu0 0
      %2062 = vmatmul.mubr.bf16.gmra.mxu0 %v354
      %v2063 = vpop.f32.mrf.mxu0
      %v2064 = vadd.f32 0.0, %v2063
      %v2065 = vpop.f32.mrf.mxu0
      %v2066 = vpop.f32.mrf.mxu0
      %v2067 = vadd.f32 0.0, %v2066
      %v2068 = vpop.f32.mrf.mxu0
      %2069 = vmatprep.mubr.bf16.mxu0 0
      %2070 = vmatmul.mubr.bf16.gmra.mxu0 %v357
      %v2071 = vpop.f32.mrf.mxu0
      %v2072 = vadd.f32 0.0, %v2071
      %v2073 = vpop.f32.mrf.mxu0
      %v2074 = vpop.f32.mrf.mxu0
      %v2075 = vadd.f32 0.0, %v2074
      %v2076 = vpop.f32.mrf.mxu0
      %2077 = vmatprep.mubr.bf16.mxu0 0
      %2078 = vmatmul.mubr.bf16.gmra.mxu0 %v360
      %v2079 = vpop.f32.mrf.mxu0
      %v2080 = vadd.f32 0.0, %v2079
      %v2081 = vpop.f32.mrf.mxu0
      %v2082 = vpop.f32.mrf.mxu0
      %v2083 = vadd.f32 0.0, %v2082
      %v2084 = vpop.f32.mrf.mxu0
      %2085 = vmatprep.mubr.bf16.mxu0 0
      %2086 = vmatmul.mubr.bf16.gmra.mxu0 %v363
      %v2087 = vpop.f32.mrf.mxu0
      %v2088 = vadd.f32 0.0, %v2087
      %v2089 = vpop.f32.mrf.mxu0
      %v2090 = vpop.f32.mrf.mxu0
      %v2091 = vadd.f32 0.0, %v2090
      %v2092 = vpop.f32.mrf.mxu0
      %2093 = vmatprep.mubr.bf16.mxu0 0
      %2094 = vmatmul.mubr.bf16.gmra.mxu0 %v366
      %v2095 = vpop.f32.mrf.mxu0
      %v2096 = vadd.f32 0.0, %v2095
      %v2097 = vpop.f32.mrf.mxu0
      %v2098 = vpop.f32.mrf.mxu0
      %v2099 = vadd.f32 0.0, %v2098
      %v2100 = vpop.f32.mrf.mxu0
      %2101 = vmatprep.mubr.bf16.mxu0 0
      %2102 = vmatmul.mubr.bf16.gmra.mxu0 %v369
      %v2103 = vpop.f32.mrf.mxu0
      %v2104 = vadd.f32 0.0, %v2103
      %v2105 = vpop.f32.mrf.mxu0
      %v2106 = vpop.f32.mrf.mxu0
      %v2107 = vadd.f32 0.0, %v2106
      %v2108 = vpop.f32.mrf.mxu0
      %2109 = vmatprep.mubr.bf16.mxu0 0
      %2110 = vmatmul.mubr.bf16.gmra.mxu0 %v372
      %v2111 = vpop.f32.mrf.mxu0
      %v2112 = vadd.f32 0.0, %v2111
      %v2113 = vpop.f32.mrf.mxu0
      %v2114 = vpop.f32.mrf.mxu0
      %v2115 = vadd.f32 0.0, %v2114
      %v2116 = vpop.f32.mrf.mxu0
      %2117 = vmatprep.mubr.bf16.mxu0 0
      %2118 = vmatmul.mubr.bf16.gmra.mxu0 %v1245
      %v2119 = vpop.f32.mrf.mxu0
      %v2120 = vadd.f32 0.0, %v2119
      %v2121 = vpop.f32.mrf.mxu0
      %v2122 = vpop.f32.mrf.mxu0
      %v2123 = vadd.f32 0.0, %v2122
      %v2124 = vpop.f32.mrf.mxu0
      %2125 = vmatprep.mubr.bf16.mxu0 0
      %2126 = vmatmul.mubr.bf16.gmra.mxu0 %v1984
      %v2127 = vpop.f32.mrf.mxu0
      %v2128 = vadd.f32 0.0, %v2127
      %v2129 = vpop.f32.mrf.mxu0
      %v2130 = vpop.f32.mrf.mxu0
      %v2131 = vadd.f32 0.0, %v2130
      %v2132 = vpop.f32.mrf.mxu0
      %2133 = vdwg.mxu0
      %v2134 = vld [vmem:[#allocation3] sm:$0xff]
      %v2135 = vld [vmem:[#allocation3 + $0x8] sm:$0xff]
      %v2136 = vld [vmem:[#allocation3 + $0x10] sm:$0xff]
      %v2137 = vld [vmem:[#allocation3 + $0x18] sm:$0xff]
      %v2138 = vld [vmem:[#allocation3 + $0x20] sm:$0xff]
      %v2139 = vld [vmem:[#allocation3 + $0x28] sm:$0xff]
      %v2140 = vld [vmem:[#allocation3 + $0x30] sm:$0xff]
      %v2141 = vld [vmem:[#allocation3 + $0x38] sm:$0xff]
      %v2142 = vld [vmem:[#allocation3 + $0x40] sm:$0xff]
      %v2143 = vld [vmem:[#allocation3 + $0x48] sm:$0xff]
      %v2144 = vld [vmem:[#allocation3 + $0x50] sm:$0xff]
      %v2145 = vld [vmem:[#allocation3 + $0x58] sm:$0xff]
      %v2146 = vld [vmem:[#allocation3 + $0x60] sm:$0xff]
      %v2147 = vld [vmem:[#allocation3 + $0x68] sm:$0xff]
      %v2148 = vld [vmem:[#allocation3 + $0x70] sm:$0xff]
      %v2149 = vld [vmem:[#allocation3 + $0x78] sm:$0xff]
      %v2150 = vld [vmem:[#allocation3 + $0x80] sm:$0xff]
      %v2151 = vld [vmem:[#allocation3 + $0x88] sm:$0xff]
      %v2152 = vld [vmem:[#allocation3 + $0x90] sm:$0xff]
      %v2153 = vld [vmem:[#allocation3 + $0x98] sm:$0xff]
      %v2154 = vld [vmem:[#allocation3 + $0xa0] sm:$0xff]
      %v2155 = vld [vmem:[#allocation3 + $0xa8] sm:$0xff]
      %v2156 = vld [vmem:[#allocation3 + $0xb0] sm:$0xff]
      %v2157 = vld [vmem:[#allocation3 + $0xb8] sm:$0xff]
      %v2158 = vld [vmem:[#allocation3 + $0xc0] sm:$0xff]
      %v2159 = vld [vmem:[#allocation3 + $0xc8] sm:$0xff]
      %v2160 = vld [vmem:[#allocation3 + $0xd0] sm:$0xff]
      %v2161 = vld [vmem:[#allocation3 + $0xd8] sm:$0xff]
      %v2162 = vadd.f32 %v2134, %v2024
      %v2163 = vadd.f32 %v2135, %v2027
      %v2164 = vadd.f32 %v2136, %v2032
      %v2165 = vadd.f32 %v2137, %v2035
      %v2166 = vadd.f32 %v2138, %v2040
      %v2167 = vadd.f32 %v2139, %v2043
      %v2168 = vadd.f32 %v2140, %v2048
      %v2169 = vadd.f32 %v2141, %v2051
      %v2170 = vadd.f32 %v2142, %v2056
      %v2171 = vadd.f32 %v2143, %v2059
      %v2172 = vadd.f32 %v2144, %v2064
      %v2173 = vadd.f32 %v2145, %v2067
      %v2174 = vadd.f32 %v2146, %v2072
      %v2175 = vadd.f32 %v2147, %v2075
      %v2176 = vadd.f32 %v2148, %v2080
      %v2177 = vadd.f32 %v2149, %v2083
      %v2178 = vadd.f32 %v2150, %v2088
      %v2179 = vadd.f32 %v2151, %v2091
      %v2180 = vadd.f32 %v2152, %v2096
      %v2181 = vadd.f32 %v2153, %v2099
      %v2182 = vadd.f32 %v2154, %v2104
      %v2183 = vadd.f32 %v2155, %v2107
      %v2184 = vadd.f32 %v2156, %v2112
      %v2185 = vadd.f32 %v2157, %v2115
      %v2186 = vadd.f32 %v2158, %v2120
      %v2187 = vadd.f32 %v2159, %v2123
      %v2188 = vadd.f32 %v2160, %v2128
      %v2189 = vadd.f32 %v2161, %v2131
      %2190 = vst [vmem:[#allocation3] sm:$0xff] %v2162
      %2191 = vst [vmem:[#allocation3 + $0x8] sm:$0xff] %v2163
      %2192 = vst [vmem:[#allocation3 + $0x10] sm:$0xff] %v2164
      %2193 = vst [vmem:[#allocation3 + $0x18] sm:$0xff] %v2165
      %2194 = vst [vmem:[#allocation3 + $0x20] sm:$0xff] %v2166
      %2195 = vst [vmem:[#allocation3 + $0x28] sm:$0xff] %v2167
      %2196 = vst [vmem:[#allocation3 + $0x30] sm:$0xff] %v2168
      %2197 = vst [vmem:[#allocation3 + $0x38] sm:$0xff] %v2169
      %2198 = vst [vmem:[#allocation3 + $0x40] sm:$0xff] %v2170
      %2199 = vst [vmem:[#allocation3 + $0x48] sm:$0xff] %v2171
      %2200 = vst [vmem:[#allocation3 + $0x50] sm:$0xff] %v2172
      %2201 = vst [vmem:[#allocation3 + $0x58] sm:$0xff] %v2173
      %2202 = vst [vmem:[#allocation3 + $0x60] sm:$0xff] %v2174
      %2203 = vst [vmem:[#allocation3 + $0x68] sm:$0xff] %v2175
      %2204 = vst [vmem:[#allocation3 + $0x70] sm:$0xff] %v2176
      %2205 = vst [vmem:[#allocation3 + $0x78] sm:$0xff] %v2177
      %2206 = vst [vmem:[#allocation3 + $0x80] sm:$0xff] %v2178
      %2207 = vst [vmem:[#allocation3 + $0x88] sm:$0xff] %v2179
      %2208 = vst [vmem:[#allocation3 + $0x90] sm:$0xff] %v2180
      %2209 = vst [vmem:[#allocation3 + $0x98] sm:$0xff] %v2181
      %2210 = vst [vmem:[#allocation3 + $0xa0] sm:$0xff] %v2182
      %2211 = vst [vmem:[#allocation3 + $0xa8] sm:$0xff] %v2183
      %2212 = vst [vmem:[#allocation3 + $0xb0] sm:$0xff] %v2184
      %2213 = vst [vmem:[#allocation3 + $0xb8] sm:$0xff] %v2185
      %2214 = vst [vmem:[#allocation3 + $0xc0] sm:$0xff] %v2186
      %2215 = vst [vmem:[#allocation3 + $0xc8] sm:$0xff] %v2187
      %2216 = vst [vmem:[#allocation3 + $0xd0] sm:$0xff] %v2188
      %2217 = vst [vmem:[#allocation3 + $0xd8] sm:$0xff] %v2189
      %s2218 = scalar_lea.vmem %s1, 28
      %v2219 = vld [vmem:[%s2218] sm:$0xf]
      %v2221 = vunpack.c.l.b16 %v259
      %v2222 = vpack.c.b16 %v2221, %v2221
      %v2223 = vshll.u32 %v1982, 16
      %v2225 = vrot.slane %v2223, 1
      %v2226 = vsel %vm556, %v1490, %v2225
      %v2227 = vshrl.u32 %v1982, 16
      %v2229 = vor.u32 %v2227, %v2225
      %v2231 = vshll.u32 %v2222, 16
      %v2233 = vrot.slane %v2231, 1
      %v2234 = vsel %vm556, %v2229, %v2233
      %v2236 = vsel %vm331, %v2226, 0
      %v2239 = vsel %vm331, %v2234, 0
      %v2242 = vsel %vm374, %v2219, 0
      %2244 = vmatprep.subr.bf16.mxu0 0
      %2245 = vmatpush1.bf16.msra.mxu0 0
      %2246 = vmatprep.subr.bf16.mxu0 0
      %2247 = vmatpush1.bf16.msra.mxu0 0
      %2248 = vmatprep.subr.bf16.mxu0 0
      %2249 = vmatpush1.bf16.msra.mxu0 0
      %2250 = vmatprep.subr.bf16.mxu0 0
      %2251 = vmatpush1.bf16.msra.mxu0 0
      %2252 = vmatprep.subr.bf16.mxu0 0
      %2253 = vmatpush1.bf16.msra.mxu0 0
      %2254 = vmatprep.subr.bf16.mxu0 0
      %2255 = vmatpush1.bf16.msra.mxu0 0
      %2256 = vmatprep.subr.bf16.mxu0 0
      %2257 = vmatpush1.bf16.msra.mxu0 0
      %2258 = vmatprep.subr.bf16.mxu0 0
      %2259 = vmatpush1.bf16.msra.mxu0 %v2242
      %2260 = vmatprep.subr.bf16.mxu0 0
      %2261 = vmatpush2.bf16.msra.mxu0 0
      %2262 = vmatprep.subr.bf16.mxu0 0
      %2263 = vmatpush2.bf16.msra.mxu0 0
      %2264 = vmatprep.subr.bf16.mxu0 0
      %2265 = vmatpush2.bf16.msra.mxu0 0
      %2266 = vmatprep.subr.bf16.mxu0 0
      %2267 = vmatpush2.bf16.msra.mxu0 0
      %2268 = vmatprep.subr.bf16.mxu0 0
      %2269 = vmatpush2.bf16.msra.mxu0 0
      %2270 = vmatprep.subr.bf16.mxu0 0
      %2271 = vmatpush2.bf16.msra.mxu0 0
      %2272 = vmatprep.subr.bf16.mxu0 0
      %2273 = vmatpush2.bf16.msra.mxu0 0
      %2274 = vmatprep.subr.bf16.mxu0 0
      %2275 = vmatpush2.bf16.msra.mxu0 0
      %2276 = vmatprep.mubr.bf16.mxu0 0
      %2277 = vmatmul.mubr.bf16.gmra.mxu0 %v666
      %v2278 = vpop.f32.mrf.mxu0
      %v2279 = vadd.f32 0.0, %v2278
      %v2280 = vpop.f32.mrf.mxu0
      %v2281 = vpop.f32.mrf.mxu0
      %v2282 = vadd.f32 0.0, %v2281
      %v2283 = vpop.f32.mrf.mxu0
      %2284 = vmatprep.mubr.bf16.mxu0 0
      %2285 = vmatmul.mubr.bf16.gmra.mxu0 %v669
      %v2286 = vpop.f32.mrf.mxu0
      %v2287 = vadd.f32 0.0, %v2286
      %v2288 = vpop.f32.mrf.mxu0
      %v2289 = vpop.f32.mrf.mxu0
      %v2290 = vadd.f32 0.0, %v2289
      %v2291 = vpop.f32.mrf.mxu0
      %2292 = vmatprep.mubr.bf16.mxu0 0
      %2293 = vmatmul.mubr.bf16.gmra.mxu0 %v672
      %v2294 = vpop.f32.mrf.mxu0
      %v2295 = vadd.f32 0.0, %v2294
      %v2296 = vpop.f32.mrf.mxu0
      %v2297 = vpop.f32.mrf.mxu0
      %v2298 = vadd.f32 0.0, %v2297
      %v2299 = vpop.f32.mrf.mxu0
      %2300 = vmatprep.mubr.bf16.mxu0 0
      %2301 = vmatmul.mubr.bf16.gmra.mxu0 %v675
      %v2302 = vpop.f32.mrf.mxu0
      %v2303 = vadd.f32 0.0, %v2302
      %v2304 = vpop.f32.mrf.mxu0
      %v2305 = vpop.f32.mrf.mxu0
      %v2306 = vadd.f32 0.0, %v2305
      %v2307 = vpop.f32.mrf.mxu0
      %2308 = vmatprep.mubr.bf16.mxu0 0
      %2309 = vmatmul.mubr.bf16.gmra.mxu0 %v678
      %v2310 = vpop.f32.mrf.mxu0
      %v2311 = vadd.f32 0.0, %v2310
      %v2312 = vpop.f32.mrf.mxu0
      %v2313 = vpop.f32.mrf.mxu0
      %v2314 = vadd.f32 0.0, %v2313
      %v2315 = vpop.f32.mrf.mxu0
      %2316 = vmatprep.mubr.bf16.mxu0 0
      %2317 = vmatmul.mubr.bf16.gmra.mxu0 %v681
      %v2318 = vpop.f32.mrf.mxu0
      %v2319 = vadd.f32 0.0, %v2318
      %v2320 = vpop.f32.mrf.mxu0
      %v2321 = vpop.f32.mrf.mxu0
      %v2322 = vadd.f32 0.0, %v2321
      %v2323 = vpop.f32.mrf.mxu0
      %2324 = vmatprep.mubr.bf16.mxu0 0
      %2325 = vmatmul.mubr.bf16.gmra.mxu0 %v684
      %v2326 = vpop.f32.mrf.mxu0
      %v2327 = vadd.f32 0.0, %v2326
      %v2328 = vpop.f32.mrf.mxu0
      %v2329 = vpop.f32.mrf.mxu0
      %v2330 = vadd.f32 0.0, %v2329
      %v2331 = vpop.f32.mrf.mxu0
      %2332 = vmatprep.mubr.bf16.mxu0 0
      %2333 = vmatmul.mubr.bf16.gmra.mxu0 %v687
      %v2334 = vpop.f32.mrf.mxu0
      %v2335 = vadd.f32 0.0, %v2334
      %v2336 = vpop.f32.mrf.mxu0
      %v2337 = vpop.f32.mrf.mxu0
      %v2338 = vadd.f32 0.0, %v2337
      %v2339 = vpop.f32.mrf.mxu0
      %2340 = vmatprep.mubr.bf16.mxu0 0
      %2341 = vmatmul.mubr.bf16.gmra.mxu0 %v690
      %v2342 = vpop.f32.mrf.mxu0
      %v2343 = vadd.f32 0.0, %v2342
      %v2344 = vpop.f32.mrf.mxu0
      %v2345 = vpop.f32.mrf.mxu0
      %v2346 = vadd.f32 0.0, %v2345
      %v2347 = vpop.f32.mrf.mxu0
      %2348 = vmatprep.mubr.bf16.mxu0 0
      %2349 = vmatmul.mubr.bf16.gmra.mxu0 %v693
      %v2350 = vpop.f32.mrf.mxu0
      %v2351 = vadd.f32 0.0, %v2350
      %v2352 = vpop.f32.mrf.mxu0
      %v2353 = vpop.f32.mrf.mxu0
      %v2354 = vadd.f32 0.0, %v2353
      %v2355 = vpop.f32.mrf.mxu0
      %2356 = vmatprep.mubr.bf16.mxu0 0
      %2357 = vmatmul.mubr.bf16.gmra.mxu0 %v696
      %v2358 = vpop.f32.mrf.mxu0
      %v2359 = vadd.f32 0.0, %v2358
      %v2360 = vpop.f32.mrf.mxu0
      %v2361 = vpop.f32.mrf.mxu0
      %v2362 = vadd.f32 0.0, %v2361
      %v2363 = vpop.f32.mrf.mxu0
      %2364 = vmatprep.mubr.bf16.mxu0 0
      %2365 = vmatmul.mubr.bf16.gmra.mxu0 %v1497
      %v2366 = vpop.f32.mrf.mxu0
      %v2367 = vadd.f32 0.0, %v2366
      %v2368 = vpop.f32.mrf.mxu0
      %v2369 = vpop.f32.mrf.mxu0
      %v2370 = vadd.f32 0.0, %v2369
      %v2371 = vpop.f32.mrf.mxu0
      %2372 = vmatprep.mubr.bf16.mxu0 0
      %2373 = vmatmul.mubr.bf16.gmra.mxu0 %v2236
      %v2374 = vpop.f32.mrf.mxu0
      %v2375 = vadd.f32 0.0, %v2374
      %v2376 = vpop.f32.mrf.mxu0
      %v2377 = vpop.f32.mrf.mxu0
      %v2378 = vadd.f32 0.0, %v2377
      %v2379 = vpop.f32.mrf.mxu0
      %2380 = vmatprep.mubr.bf16.mxu0 0
      %2381 = vmatmul.mubr.bf16.gmra.mxu0 %v2239
      %v2382 = vpop.f32.mrf.mxu0
      %v2383 = vadd.f32 0.0, %v2382
      %v2384 = vpop.f32.mrf.mxu0
      %v2385 = vpop.f32.mrf.mxu0
      %v2386 = vadd.f32 0.0, %v2385
      %v2387 = vpop.f32.mrf.mxu0
      %2388 = vdwg.mxu0
      %v2389 = vld [vmem:[#allocation3] sm:$0xff]
      %v2390 = vld [vmem:[#allocation3 + $0x8] sm:$0xff]
      %v2391 = vld [vmem:[#allocation3 + $0x10] sm:$0xff]
      %v2392 = vld [vmem:[#allocation3 + $0x18] sm:$0xff]
      %v2393 = vld [vmem:[#allocation3 + $0x20] sm:$0xff]
      %v2394 = vld [vmem:[#allocation3 + $0x28] sm:$0xff]
      %v2395 = vld [vmem:[#allocation3 + $0x30] sm:$0xff]
      %v2396 = vld [vmem:[#allocation3 + $0x38] sm:$0xff]
      %v2397 = vld [vmem:[#allocation3 + $0x40] sm:$0xff]
      %v2398 = vld [vmem:[#allocation3 + $0x48] sm:$0xff]
      %v2399 = vld [vmem:[#allocation3 + $0x50] sm:$0xff]
      %v2400 = vld [vmem:[#allocation3 + $0x58] sm:$0xff]
      %v2401 = vld [vmem:[#allocation3 + $0x60] sm:$0xff]
      %v2402 = vld [vmem:[#allocation3 + $0x68] sm:$0xff]
      %v2403 = vld [vmem:[#allocation3 + $0x70] sm:$0xff]
      %v2404 = vld [vmem:[#allocation3 + $0x78] sm:$0xff]
      %v2405 = vld [vmem:[#allocation3 + $0x80] sm:$0xff]
      %v2406 = vld [vmem:[#allocation3 + $0x88] sm:$0xff]
      %v2407 = vld [vmem:[#allocation3 + $0x90] sm:$0xff]
      %v2408 = vld [vmem:[#allocation3 + $0x98] sm:$0xff]
      %v2409 = vld [vmem:[#allocation3 + $0xa0] sm:$0xff]
      %v2410 = vld [vmem:[#allocation3 + $0xa8] sm:$0xff]
      %v2411 = vld [vmem:[#allocation3 + $0xb0] sm:$0xff]
      %v2412 = vld [vmem:[#allocation3 + $0xb8] sm:$0xff]
      %v2413 = vld [vmem:[#allocation3 + $0xc0] sm:$0xff]
      %v2414 = vld [vmem:[#allocation3 + $0xc8] sm:$0xff]
      %v2415 = vld [vmem:[#allocation3 + $0xd0] sm:$0xff]
      %v2416 = vld [vmem:[#allocation3 + $0xd8] sm:$0xff]
      %v2417 = vadd.f32 %v2389, %v2279
      %v2418 = vadd.f32 %v2390, %v2282
      %v2419 = vadd.f32 %v2391, %v2287
      %v2420 = vadd.f32 %v2392, %v2290
      %v2421 = vadd.f32 %v2393, %v2295
      %v2422 = vadd.f32 %v2394, %v2298
      %v2423 = vadd.f32 %v2395, %v2303
      %v2424 = vadd.f32 %v2396, %v2306
      %v2425 = vadd.f32 %v2397, %v2311
      %v2426 = vadd.f32 %v2398, %v2314
      %v2427 = vadd.f32 %v2399, %v2319
      %v2428 = vadd.f32 %v2400, %v2322
      %v2429 = vadd.f32 %v2401, %v2327
      %v2430 = vadd.f32 %v2402, %v2330
      %v2431 = vadd.f32 %v2403, %v2335
      %v2432 = vadd.f32 %v2404, %v2338
      %v2433 = vadd.f32 %v2405, %v2343
      %v2434 = vadd.f32 %v2406, %v2346
      %v2435 = vadd.f32 %v2407, %v2351
      %v2436 = vadd.f32 %v2408, %v2354
      %v2437 = vadd.f32 %v2409, %v2359
      %v2438 = vadd.f32 %v2410, %v2362
      %v2439 = vadd.f32 %v2411, %v2367
      %v2440 = vadd.f32 %v2412, %v2370
      %v2441 = vadd.f32 %v2413, %v2375
      %v2442 = vadd.f32 %v2414, %v2378
      %v2443 = vadd.f32 %v2415, %v2383
      %v2444 = vadd.f32 %v2416, %v2386
      %2445 = vst [vmem:[#allocation3] sm:$0xff] %v2417
      %2446 = vst [vmem:[#allocation3 + $0x8] sm:$0xff] %v2418
      %2447 = vst [vmem:[#allocation3 + $0x10] sm:$0xff] %v2419
      %2448 = vst [vmem:[#allocation3 + $0x18] sm:$0xff] %v2420
      %2449 = vst [vmem:[#allocation3 + $0x20] sm:$0xff] %v2421
      %2450 = vst [vmem:[#allocation3 + $0x28] sm:$0xff] %v2422
      %2451 = vst [vmem:[#allocation3 + $0x30] sm:$0xff] %v2423
      %2452 = vst [vmem:[#allocation3 + $0x38] sm:$0xff] %v2424
      %2453 = vst [vmem:[#allocation3 + $0x40] sm:$0xff] %v2425
      %2454 = vst [vmem:[#allocation3 + $0x48] sm:$0xff] %v2426
      %2455 = vst [vmem:[#allocation3 + $0x50] sm:$0xff] %v2427
      %2456 = vst [vmem:[#allocation3 + $0x58] sm:$0xff] %v2428
      %2457 = vst [vmem:[#allocation3 + $0x60] sm:$0xff] %v2429
      %2458 = vst [vmem:[#allocation3 + $0x68] sm:$0xff] %v2430
      %2459 = vst [vmem:[#allocation3 + $0x70] sm:$0xff] %v2431
      %2460 = vst [vmem:[#allocation3 + $0x78] sm:$0xff] %v2432
      %2461 = vst [vmem:[#allocation3 + $0x80] sm:$0xff] %v2433
      %2462 = vst [vmem:[#allocation3 + $0x88] sm:$0xff] %v2434
      %2463 = vst [vmem:[#allocation3 + $0x90] sm:$0xff] %v2435
      %2464 = vst [vmem:[#allocation3 + $0x98] sm:$0xff] %v2436
      %2465 = vst [vmem:[#allocation3 + $0xa0] sm:$0xff] %v2437
      %2466 = vst [vmem:[#allocation3 + $0xa8] sm:$0xff] %v2438
      %2467 = vst [vmem:[#allocation3 + $0xb0] sm:$0xff] %v2439
      %2468 = vst [vmem:[#allocation3 + $0xb8] sm:$0xff] %v2440
      %2469 = vst [vmem:[#allocation3 + $0xc0] sm:$0xff] %v2441
      %2470 = vst [vmem:[#allocation3 + $0xc8] sm:$0xff] %v2442
      %2471 = vst [vmem:[#allocation3 + $0xd0] sm:$0xff] %v2443
      %2472 = vst [vmem:[#allocation3 + $0xd8] sm:$0xff] %v2444
      %s2473 = scalar_lea.vmem %s1, 32
      %v2474 = vld [vmem:[%s2473] sm:$0xf]
      %v2475 = vrot.slane %v1982, 1
      %v2476 = vsel %vm935, %v1736, %v2475
      %v2477 = vrot.slane %v2222, 1
      %v2478 = vsel %vm935, %v2475, %v2477
      %v2480 = vsel %vm331, %v2476, 0
      %v2483 = vsel %vm331, %v2478, 0
      %v2486 = vsel %vm374, %v2474, 0
      %2488 = vmatprep.subr.bf16.mxu0 0
      %2489 = vmatpush1.bf16.msra.mxu0 0
      %2490 = vmatprep.subr.bf16.mxu0 0
      %2491 = vmatpush1.bf16.msra.mxu0 0
      %2492 = vmatprep.subr.bf16.mxu0 0
      %2493 = vmatpush1.bf16.msra.mxu0 0
      %2494 = vmatprep.subr.bf16.mxu0 0
      %2495 = vmatpush1.bf16.msra.mxu0 0
      %2496 = vmatprep.subr.bf16.mxu0 0
      %2497 = vmatpush1.bf16.msra.mxu0 0
      %2498 = vmatprep.subr.bf16.mxu0 0
      %2499 = vmatpush1.bf16.msra.mxu0 0
      %2500 = vmatprep.subr.bf16.mxu0 0
      %2501 = vmatpush1.bf16.msra.mxu0 0
      %2502 = vmatprep.subr.bf16.mxu0 0
      %2503 = vmatpush1.bf16.msra.mxu0 %v2486
      %2504 = vmatprep.subr.bf16.mxu0 0
      %2505 = vmatpush2.bf16.msra.mxu0 0
      %2506 = vmatprep.subr.bf16.mxu0 0
      %2507 = vmatpush2.bf16.msra.mxu0 0
      %2508 = vmatprep.subr.bf16.mxu0 0
      %2509 = vmatpush2.bf16.msra.mxu0 0
      %2510 = vmatprep.subr.bf16.mxu0 0
      %2511 = vmatpush2.bf16.msra.mxu0 0
      %2512 = vmatprep.subr.bf16.mxu0 0
      %2513 = vmatpush2.bf16.msra.mxu0 0
      %2514 = vmatprep.subr.bf16.mxu0 0
      %2515 = vmatpush2.bf16.msra.mxu0 0
      %2516 = vmatprep.subr.bf16.mxu0 0
      %2517 = vmatpush2.bf16.msra.mxu0 0
      %2518 = vmatprep.subr.bf16.mxu0 0
      %2519 = vmatpush2.bf16.msra.mxu0 0
      %2520 = vmatprep.mubr.bf16.mxu0 0
      %2521 = vmatmul.mubr.bf16.gmra.mxu0 %v972
      %v2522 = vpop.f32.mrf.mxu0
      %v2523 = vadd.f32 0.0, %v2522
      %v2524 = vpop.f32.mrf.mxu0
      %v2525 = vpop.f32.mrf.mxu0
      %v2526 = vadd.f32 0.0, %v2525
      %v2527 = vpop.f32.mrf.mxu0
      %2528 = vmatprep.mubr.bf16.mxu0 0
      %2529 = vmatmul.mubr.bf16.gmra.mxu0 %v975
      %v2530 = vpop.f32.mrf.mxu0
      %v2531 = vadd.f32 0.0, %v2530
      %v2532 = vpop.f32.mrf.mxu0
      %v2533 = vpop.f32.mrf.mxu0
      %v2534 = vadd.f32 0.0, %v2533
      %v2535 = vpop.f32.mrf.mxu0
      %2536 = vmatprep.mubr.bf16.mxu0 0
      %2537 = vmatmul.mubr.bf16.gmra.mxu0 %v978
      %v2538 = vpop.f32.mrf.mxu0
      %v2539 = vadd.f32 0.0, %v2538
      %v2540 = vpop.f32.mrf.mxu0
      %v2541 = vpop.f32.mrf.mxu0
      %v2542 = vadd.f32 0.0, %v2541
      %v2543 = vpop.f32.mrf.mxu0
      %2544 = vmatprep.mubr.bf16.mxu0 0
      %2545 = vmatmul.mubr.bf16.gmra.mxu0 %v981
      %v2546 = vpop.f32.mrf.mxu0
      %v2547 = vadd.f32 0.0, %v2546
      %v2548 = vpop.f32.mrf.mxu0
      %v2549 = vpop.f32.mrf.mxu0
      %v2550 = vadd.f32 0.0, %v2549
      %v2551 = vpop.f32.mrf.mxu0
      %2552 = vmatprep.mubr.bf16.mxu0 0
      %2553 = vmatmul.mubr.bf16.gmra.mxu0 %v984
      %v2554 = vpop.f32.mrf.mxu0
      %v2555 = vadd.f32 0.0, %v2554
      %v2556 = vpop.f32.mrf.mxu0
      %v2557 = vpop.f32.mrf.mxu0
      %v2558 = vadd.f32 0.0, %v2557
      %v2559 = vpop.f32.mrf.mxu0
      %2560 = vmatprep.mubr.bf16.mxu0 0
      %2561 = vmatmul.mubr.bf16.gmra.mxu0 %v987
      %v2562 = vpop.f32.mrf.mxu0
      %v2563 = vadd.f32 0.0, %v2562
      %v2564 = vpop.f32.mrf.mxu0
      %v2565 = vpop.f32.mrf.mxu0
      %v2566 = vadd.f32 0.0, %v2565
      %v2567 = vpop.f32.mrf.mxu0
      %2568 = vmatprep.mubr.bf16.mxu0 0
      %2569 = vmatmul.mubr.bf16.gmra.mxu0 %v990
      %v2570 = vpop.f32.mrf.mxu0
      %v2571 = vadd.f32 0.0, %v2570
      %v2572 = vpop.f32.mrf.mxu0
      %v2573 = vpop.f32.mrf.mxu0
      %v2574 = vadd.f32 0.0, %v2573
      %v2575 = vpop.f32.mrf.mxu0
      %2576 = vmatprep.mubr.bf16.mxu0 0
      %2577 = vmatmul.mubr.bf16.gmra.mxu0 %v993
      %v2578 = vpop.f32.mrf.mxu0
      %v2579 = vadd.f32 0.0, %v2578
      %v2580 = vpop.f32.mrf.mxu0
      %v2581 = vpop.f32.mrf.mxu0
      %v2582 = vadd.f32 0.0, %v2581
      %v2583 = vpop.f32.mrf.mxu0
      %2584 = vmatprep.mubr.bf16.mxu0 0
      %2585 = vmatmul.mubr.bf16.gmra.mxu0 %v996
      %v2586 = vpop.f32.mrf.mxu0
      %v2587 = vadd.f32 0.0, %v2586
      %v2588 = vpop.f32.mrf.mxu0
      %v2589 = vpop.f32.mrf.mxu0
      %v2590 = vadd.f32 0.0, %v2589
      %v2591 = vpop.f32.mrf.mxu0
      %2592 = vmatprep.mubr.bf16.mxu0 0
      %2593 = vmatmul.mubr.bf16.gmra.mxu0 %v999
      %v2594 = vpop.f32.mrf.mxu0
      %v2595 = vadd.f32 0.0, %v2594
      %v2596 = vpop.f32.mrf.mxu0
      %v2597 = vpop.f32.mrf.mxu0
      %v2598 = vadd.f32 0.0, %v2597
      %v2599 = vpop.f32.mrf.mxu0
      %2600 = vmatprep.mubr.bf16.mxu0 0
      %2601 = vmatmul.mubr.bf16.gmra.mxu0 %v1002
      %v2602 = vpop.f32.mrf.mxu0
      %v2603 = vadd.f32 0.0, %v2602
      %v2604 = vpop.f32.mrf.mxu0
      %v2605 = vpop.f32.mrf.mxu0
      %v2606 = vadd.f32 0.0, %v2605
      %v2607 = vpop.f32.mrf.mxu0
      %2608 = vmatprep.mubr.bf16.mxu0 0
      %2609 = vmatmul.mubr.bf16.gmra.mxu0 %v1741
      %v2610 = vpop.f32.mrf.mxu0
      %v2611 = vadd.f32 0.0, %v2610
      %v2612 = vpop.f32.mrf.mxu0
      %v2613 = vpop.f32.mrf.mxu0
      %v2614 = vadd.f32 0.0, %v2613
      %v2615 = vpop.f32.mrf.mxu0
      %2616 = vmatprep.mubr.bf16.mxu0 0
      %2617 = vmatmul.mubr.bf16.gmra.mxu0 %v2480
      %v2618 = vpop.f32.mrf.mxu0
      %v2619 = vadd.f32 0.0, %v2618
      %v2620 = vpop.f32.mrf.mxu0
      %v2621 = vpop.f32.mrf.mxu0
      %v2622 = vadd.f32 0.0, %v2621
      %v2623 = vpop.f32.mrf.mxu0
      %2624 = vmatprep.mubr.bf16.mxu0 0
      %2625 = vmatmul.mubr.bf16.gmra.mxu0 %v2483
      %v2626 = vpop.f32.mrf.mxu0
      %v2627 = vadd.f32 0.0, %v2626
      %v2628 = vpop.f32.mrf.mxu0
      %v2629 = vpop.f32.mrf.mxu0
      %v2630 = vadd.f32 0.0, %v2629
      %v2631 = vpop.f32.mrf.mxu0
      %2632 = vdwg.mxu0
      %v2633 = vld [vmem:[#allocation3] sm:$0xff]
      %v2634 = vld [vmem:[#allocation3 + $0x8] sm:$0xff]
      %v2635 = vld [vmem:[#allocation3 + $0x10] sm:$0xff]
      %v2636 = vld [vmem:[#allocation3 + $0x18] sm:$0xff]
      %v2637 = vld [vmem:[#allocation3 + $0x20] sm:$0xff]
      %v2638 = vld [vmem:[#allocation3 + $0x28] sm:$0xff]
      %v2639 = vld [vmem:[#allocation3 + $0x30] sm:$0xff]
      %v2640 = vld [vmem:[#allocation3 + $0x38] sm:$0xff]
      %v2641 = vld [vmem:[#allocation3 + $0x40] sm:$0xff]
      %v2642 = vld [vmem:[#allocation3 + $0x48] sm:$0xff]
      %v2643 = vld [vmem:[#allocation3 + $0x50] sm:$0xff]
      %v2644 = vld [vmem:[#allocation3 + $0x58] sm:$0xff]
      %v2645 = vld [vmem:[#allocation3 + $0x60] sm:$0xff]
      %v2646 = vld [vmem:[#allocation3 + $0x68] sm:$0xff]
      %v2647 = vld [vmem:[#allocation3 + $0x70] sm:$0xff]
      %v2648 = vld [vmem:[#allocation3 + $0x78] sm:$0xff]
      %v2649 = vld [vmem:[#allocation3 + $0x80] sm:$0xff]
      %v2650 = vld [vmem:[#allocation3 + $0x88] sm:$0xff]
      %v2651 = vld [vmem:[#allocation3 + $0x90] sm:$0xff]
      %v2652 = vld [vmem:[#allocation3 + $0x98] sm:$0xff]
      %v2653 = vld [vmem:[#allocation3 + $0xa0] sm:$0xff]
      %v2654 = vld [vmem:[#allocation3 + $0xa8] sm:$0xff]
      %v2655 = vld [vmem:[#allocation3 + $0xb0] sm:$0xff]
      %v2656 = vld [vmem:[#allocation3 + $0xb8] sm:$0xff]
      %v2657 = vld [vmem:[#allocation3 + $0xc0] sm:$0xff]
      %v2658 = vld [vmem:[#allocation3 + $0xc8] sm:$0xff]
      %v2659 = vld [vmem:[#allocation3 + $0xd0] sm:$0xff]
      %v2660 = vld [vmem:[#allocation3 + $0xd8] sm:$0xff]
      %v2661 = vadd.f32 %v2633, %v2523
      %v2662 = vadd.f32 %v2634, %v2526
      %v2663 = vadd.f32 %v2635, %v2531
      %v2664 = vadd.f32 %v2636, %v2534
      %v2665 = vadd.f32 %v2637, %v2539
      %v2666 = vadd.f32 %v2638, %v2542
      %v2667 = vadd.f32 %v2639, %v2547
      %v2668 = vadd.f32 %v2640, %v2550
      %v2669 = vadd.f32 %v2641, %v2555
      %v2670 = vadd.f32 %v2642, %v2558
      %v2671 = vadd.f32 %v2643, %v2563
      %v2672 = vadd.f32 %v2644, %v2566
      %v2673 = vadd.f32 %v2645, %v2571
      %v2674 = vadd.f32 %v2646, %v2574
      %v2675 = vadd.f32 %v2647, %v2579
      %v2676 = vadd.f32 %v2648, %v2582
      %v2677 = vadd.f32 %v2649, %v2587
      %v2678 = vadd.f32 %v2650, %v2590
      %v2679 = vadd.f32 %v2651, %v2595
      %v2680 = vadd.f32 %v2652, %v2598
      %v2681 = vadd.f32 %v2653, %v2603
      %v2682 = vadd.f32 %v2654, %v2606
      %v2683 = vadd.f32 %v2655, %v2611
      %v2684 = vadd.f32 %v2656, %v2614
      %v2685 = vadd.f32 %v2657, %v2619
      %v2686 = vadd.f32 %v2658, %v2622
      %v2687 = vadd.f32 %v2659, %v2627
      %v2688 = vadd.f32 %v2660, %v2630
      %2689 = vst [vmem:[#allocation3] sm:$0xff] %v2661
      %2690 = vst [vmem:[#allocation3 + $0x8] sm:$0xff] %v2662
      %2691 = vst [vmem:[#allocation3 + $0x10] sm:$0xff] %v2663
      %2692 = vst [vmem:[#allocation3 + $0x18] sm:$0xff] %v2664
      %2693 = vst [vmem:[#allocation3 + $0x20] sm:$0xff] %v2665
      %2694 = vst [vmem:[#allocation3 + $0x28] sm:$0xff] %v2666
      %2695 = vst [vmem:[#allocation3 + $0x30] sm:$0xff] %v2667
      %2696 = vst [vmem:[#allocation3 + $0x38] sm:$0xff] %v2668
      %2697 = vst [vmem:[#allocation3 + $0x40] sm:$0xff] %v2669
      %2698 = vst [vmem:[#allocation3 + $0x48] sm:$0xff] %v2670
      %2699 = vst [vmem:[#allocation3 + $0x50] sm:$0xff] %v2671
      %2700 = vst [vmem:[#allocation3 + $0x58] sm:$0xff] %v2672
      %2701 = vst [vmem:[#allocation3 + $0x60] sm:$0xff] %v2673
      %2702 = vst [vmem:[#allocation3 + $0x68] sm:$0xff] %v2674
      %2703 = vst [vmem:[#allocation3 + $0x70] sm:$0xff] %v2675
      %2704 = vst [vmem:[#allocation3 + $0x78] sm:$0xff] %v2676
      %2705 = vst [vmem:[#allocation3 + $0x80] sm:$0xff] %v2677
      %2706 = vst [vmem:[#allocation3 + $0x88] sm:$0xff] %v2678
      %2707 = vst [vmem:[#allocation3 + $0x90] sm:$0xff] %v2679
      %2708 = vst [vmem:[#allocation3 + $0x98] sm:$0xff] %v2680
      %2709 = vst [vmem:[#allocation3 + $0xa0] sm:$0xff] %v2681
      %2710 = vst [vmem:[#allocation3 + $0xa8] sm:$0xff] %v2682
      %2711 = vst [vmem:[#allocation3 + $0xb0] sm:$0xff] %v2683
      %2712 = vst [vmem:[#allocation3 + $0xb8] sm:$0xff] %v2684
      %2713 = vst [vmem:[#allocation3 + $0xc0] sm:$0xff] %v2685
      %2714 = vst [vmem:[#allocation3 + $0xc8] sm:$0xff] %v2686
      %2715 = vst [vmem:[#allocation3 + $0xd0] sm:$0xff] %v2687
      %2716 = vst [vmem:[#allocation3 + $0xd8] sm:$0xff] %v2688
      %v2717 = vld [vmem:[#allocation3] sm:$0xff]
      %v2718 = vld [vmem:[#allocation3 + $0x8] sm:$0xff]
      %v2719 = vld [vmem:[#allocation3 + $0x10] sm:$0xff]
      %v2720 = vld [vmem:[#allocation3 + $0x18] sm:$0xff]
      %v2721 = vld [vmem:[#allocation3 + $0x20] sm:$0xff]
      %v2722 = vld [vmem:[#allocation3 + $0x28] sm:$0xff]
      %v2723 = vld [vmem:[#allocation3 + $0x30] sm:$0xff]
      %v2724 = vld [vmem:[#allocation3 + $0x38] sm:$0xff]
      %v2725 = vld [vmem:[#allocation3 + $0x40] sm:$0xff]
      %v2726 = vld [vmem:[#allocation3 + $0x48] sm:$0xff]
      %v2727 = vld [vmem:[#allocation3 + $0x50] sm:$0xff]
      %v2728 = vld [vmem:[#allocation3 + $0x58] sm:$0xff]
      %v2729 = vld [vmem:[#allocation3 + $0x60] sm:$0xff]
      %v2730 = vld [vmem:[#allocation3 + $0x68] sm:$0xff]
      %v2731 = vld [vmem:[#allocation3 + $0x70] sm:$0xff]
      %v2732 = vld [vmem:[#allocation3 + $0x78] sm:$0xff]
      %v2733 = vld [vmem:[#allocation3 + $0x80] sm:$0xff]
      %v2734 = vld [vmem:[#allocation3 + $0x88] sm:$0xff]
      %v2735 = vld [vmem:[#allocation3 + $0x90] sm:$0xff]
      %v2736 = vld [vmem:[#allocation3 + $0x98] sm:$0xff]
      %v2737 = vld [vmem:[#allocation3 + $0xa0] sm:$0xff]
      %v2738 = vld [vmem:[#allocation3 + $0xa8] sm:$0xff]
      %v2739 = vld [vmem:[#allocation3 + $0xb0] sm:$0xff]
      %v2740 = vld [vmem:[#allocation3 + $0xb8] sm:$0xff]
      %v2741 = vld [vmem:[#allocation3 + $0xc0] sm:$0xff]
      %v2742 = vld [vmem:[#allocation3 + $0xc8] sm:$0xff]
      %v2743 = vld [vmem:[#allocation3 + $0xd0] sm:$0xff]
      %v2744 = vld [vmem:[#allocation3 + $0xd8] sm:$0xff]
      %v2745 = vld [vmem:[%s2] sm:$0x1]
      %v2747 = vlaneseq
      %v2748 = vshrl.u32 %v2747, 7
      %v2749 = vsub.s32 0, %v2748
      %v2750 = vrot.slane %v2745, %v2749
      %v2752 = vadd.f32 %v2717, %v2750
      %v2753 = vadd.f32 %v2718, %v2750
      %v2754 = vadd.f32 %v2719, %v2750
      %v2755 = vadd.f32 %v2720, %v2750
      %v2756 = vadd.f32 %v2721, %v2750
      %v2757 = vadd.f32 %v2722, %v2750
      %v2758 = vadd.f32 %v2723, %v2750
      %v2759 = vadd.f32 %v2724, %v2750
      %v2760 = vadd.f32 %v2725, %v2750
      %v2761 = vadd.f32 %v2726, %v2750
      %v2762 = vadd.f32 %v2727, %v2750
      %v2763 = vadd.f32 %v2728, %v2750
      %v2764 = vadd.f32 %v2729, %v2750
      %v2765 = vadd.f32 %v2730, %v2750
      %v2766 = vadd.f32 %v2731, %v2750
      %v2767 = vadd.f32 %v2732, %v2750
      %v2768 = vadd.f32 %v2733, %v2750
      %v2769 = vadd.f32 %v2734, %v2750
      %v2770 = vadd.f32 %v2735, %v2750
      %v2771 = vadd.f32 %v2736, %v2750
      %v2772 = vadd.f32 %v2737, %v2750
      %v2773 = vadd.f32 %v2738, %v2750
      %v2774 = vadd.f32 %v2739, %v2750
      %v2775 = vadd.f32 %v2740, %v2750
      %v2776 = vadd.f32 %v2741, %v2750
      %v2777 = vadd.f32 %v2742, %v2750
      %v2778 = vadd.f32 %v2743, %v2750
      %v2779 = vadd.f32 %v2744, %v2750
      %v2780 = vmax.f32 %v2752, 0.0
      %v2781 = vmax.f32 %v2753, 0.0
      %v2782 = vmax.f32 %v2754, 0.0
      %v2783 = vmax.f32 %v2755, 0.0
      %v2784 = vmax.f32 %v2756, 0.0
      %v2785 = vmax.f32 %v2757, 0.0
      %v2786 = vmax.f32 %v2758, 0.0
      %v2787 = vmax.f32 %v2759, 0.0
      %v2788 = vmax.f32 %v2760, 0.0
      %v2789 = vmax.f32 %v2761, 0.0
      %v2790 = vmax.f32 %v2762, 0.0
      %v2791 = vmax.f32 %v2763, 0.0
      %v2792 = vmax.f32 %v2764, 0.0
      %v2793 = vmax.f32 %v2765, 0.0
      %v2794 = vmax.f32 %v2766, 0.0
      %v2795 = vmax.f32 %v2767, 0.0
      %v2796 = vmax.f32 %v2768, 0.0
      %v2797 = vmax.f32 %v2769, 0.0
      %v2798 = vmax.f32 %v2770, 0.0
      %v2799 = vmax.f32 %v2771, 0.0
      %v2800 = vmax.f32 %v2772, 0.0
      %v2801 = vmax.f32 %v2773, 0.0
      %v2802 = vmax.f32 %v2774, 0.0
      %v2803 = vmax.f32 %v2775, 0.0
      %v2804 = vmax.f32 %v2776, 0.0
      %v2805 = vmax.f32 %v2777, 0.0
      %v2806 = vmax.f32 %v2778, 0.0
      %v2807 = vmax.f32 %v2779, 0.0
      %v2808 = vpack.c.bf16 %v2781, %v2780
      %v2809 = vpack.c.bf16 %v2783, %v2782
      %v2810 = vpack.c.bf16 %v2785, %v2784
      %v2811 = vpack.c.bf16 %v2787, %v2786
      %v2812 = vpack.c.bf16 %v2789, %v2788
      %v2813 = vpack.c.bf16 %v2791, %v2790
      %v2814 = vpack.c.bf16 %v2793, %v2792
      %v2815 = vpack.c.bf16 %v2795, %v2794
      %v2816 = vpack.c.bf16 %v2797, %v2796
      %v2817 = vpack.c.bf16 %v2799, %v2798
      %v2818 = vpack.c.bf16 %v2801, %v2800
      %v2819 = vpack.c.bf16 %v2803, %v2802
      %v2820 = vpack.c.bf16 %v2805, %v2804
      %v2821 = vpack.c.bf16 %v2807, %v2806
      %v2836 = vunpack.c.l.b16 %v2808
      %v2837 = vunpack.c.h.b16 %v2808
      %v2838 = vunpack.c.l.b16 %v2809
      %v2839 = vunpack.c.h.b16 %v2809
      %v2840 = vunpack.c.l.b16 %v2810
      %v2841 = vunpack.c.h.b16 %v2810
      %v2842 = vunpack.c.l.b16 %v2811
      %v2843 = vunpack.c.h.b16 %v2811
      %v2844 = vunpack.c.l.b16 %v2812
      %v2845 = vunpack.c.h.b16 %v2812
      %v2846 = vunpack.c.l.b16 %v2813
      %v2847 = vunpack.c.h.b16 %v2813
      %v2848 = vunpack.c.l.b16 %v2814
      %v2849 = vunpack.c.h.b16 %v2814
      %v2850 = vunpack.c.l.b16 %v2815
      %v2851 = vunpack.c.h.b16 %v2815
      %v2852 = vunpack.c.l.b16 %v2816
      %v2853 = vunpack.c.h.b16 %v2816
      %v2854 = vunpack.c.l.b16 %v2817
      %v2855 = vunpack.c.h.b16 %v2817
      %v2856 = vunpack.c.l.b16 %v2818
      %v2857 = vunpack.c.h.b16 %v2818
      %v2858 = vunpack.c.l.b16 %v2819
      %v2859 = vunpack.c.h.b16 %v2819
      %v2860 = vunpack.c.l.b16 %v2820
      %v2861 = vunpack.c.h.b16 %v2820
      %v2862 = vunpack.c.l.b16 %v2821
      %v2863 = vunpack.c.h.b16 %v2821
      %v2864 = vpack.c.b16 %v2836, %v2836
      %v2865 = vpack.c.b16 %v2837, %v2837
      %v2866 = vpack.c.b16 %v2838, %v2838
      %v2867 = vpack.c.b16 %v2839, %v2839
      %v2868 = vpack.c.b16 %v2840, %v2840
      %v2869 = vpack.c.b16 %v2841, %v2841
      %v2870 = vpack.c.b16 %v2842, %v2842
      %v2871 = vpack.c.b16 %v2843, %v2843
      %v2872 = vpack.c.b16 %v2844, %v2844
      %v2873 = vpack.c.b16 %v2845, %v2845
      %v2874 = vpack.c.b16 %v2846, %v2846
      %v2875 = vpack.c.b16 %v2847, %v2847
      %v2876 = vpack.c.b16 %v2848, %v2848
      %v2877 = vpack.c.b16 %v2849, %v2849
      %v2878 = vpack.c.b16 %v2850, %v2850
      %v2879 = vpack.c.b16 %v2851, %v2851
      %v2880 = vpack.c.b16 %v2852, %v2852
      %v2881 = vpack.c.b16 %v2853, %v2853
      %v2882 = vpack.c.b16 %v2854, %v2854
      %v2883 = vpack.c.b16 %v2855, %v2855
      %v2884 = vpack.c.b16 %v2856, %v2856
      %v2885 = vpack.c.b16 %v2857, %v2857
      %v2886 = vpack.c.b16 %v2858, %v2858
      %v2887 = vpack.c.b16 %v2859, %v2859
      %v2888 = vpack.c.b16 %v2860, %v2860
      %v2889 = vpack.c.b16 %v2861, %v2861
      %v2890 = vpack.c.b16 %v2862, %v2862
      %v2891 = vpack.c.b16 %v2863, %v2863
      %2920 = vst [vmem:[#allocation2] sm:$0xf] %v2864
      %2921 = vst [vmem:[#allocation2 + $0x4] sm:$0xf] %v2865
      %2922 = vst [vmem:[#allocation2 + $0x8] sm:$0xf] %v2866
      %2923 = vst [vmem:[#allocation2 + $0xc] sm:$0xf] %v2867
      %2924 = vst [vmem:[#allocation2 + $0x10] sm:$0xf] %v2868
      %2925 = vst [vmem:[#allocation2 + $0x14] sm:$0xf] %v2869
      %2926 = vst [vmem:[#allocation2 + $0x18] sm:$0xf] %v2870
      %2927 = vst [vmem:[#allocation2 + $0x1c] sm:$0xf] %v2871
      %2928 = vst [vmem:[#allocation2 + $0x20] sm:$0xf] %v2872
      %2929 = vst [vmem:[#allocation2 + $0x24] sm:$0xf] %v2873
      %2930 = vst [vmem:[#allocation2 + $0x28] sm:$0xf] %v2874
      %2931 = vst [vmem:[#allocation2 + $0x2c] sm:$0xf] %v2875
      %2932 = vst [vmem:[#allocation2 + $0x30] sm:$0xf] %v2876
      %2933 = vst [vmem:[#allocation2 + $0x34] sm:$0xf] %v2877
      %2934 = vst [vmem:[#allocation2 + $0x38] sm:$0xf] %v2878
      %2935 = vst [vmem:[#allocation2 + $0x3c] sm:$0xf] %v2879
      %2936 = vst [vmem:[#allocation2 + $0x40] sm:$0xf] %v2880
      %2937 = vst [vmem:[#allocation2 + $0x44] sm:$0xf] %v2881
      %2938 = vst [vmem:[#allocation2 + $0x48] sm:$0xf] %v2882
      %2939 = vst [vmem:[#allocation2 + $0x4c] sm:$0xf] %v2883
      %2940 = vst [vmem:[#allocation2 + $0x50] sm:$0xf] %v2884
      %2941 = vst [vmem:[#allocation2 + $0x54] sm:$0xf] %v2885
      %2942 = vst [vmem:[#allocation2 + $0x58] sm:$0xf] %v2886
      %2943 = vst [vmem:[#allocation2 + $0x5c] sm:$0xf] %v2887
      %2944 = vst [vmem:[#allocation2 + $0x60] sm:$0xf] %v2888
      %2945 = vst [vmem:[#allocation2 + $0x64] sm:$0xf] %v2889
      %2946 = vst [vmem:[#allocation2 + $0x68] sm:$0xf] %v2890
      %2947 = vst [vmem:[#allocation2 + $0x6c] sm:$0xf] %v2891
      %v2948 = vld [vmem:[#allocation2] sm:$0xf]
      %v2949 = vld [vmem:[#allocation2 + $0x4] sm:$0xf]
      %v2950 = vld [vmem:[#allocation2 + $0x8] sm:$0xf]
      %v2951 = vld [vmem:[#allocation2 + $0xc] sm:$0xf]
      %v2952 = vld [vmem:[#allocation2 + $0x10] sm:$0xf]
      %v2953 = vld [vmem:[#allocation2 + $0x14] sm:$0xf]
      %v2954 = vld [vmem:[#allocation2 + $0x18] sm:$0xf]
      %v2955 = vld [vmem:[#allocation2 + $0x1c] sm:$0xf]
      %v2956 = vld [vmem:[#allocation2 + $0x20] sm:$0xf]
      %v2957 = vld [vmem:[#allocation2 + $0x24] sm:$0xf]
      %v2958 = vld [vmem:[#allocation2 + $0x28] sm:$0xf]
      %v2959 = vld [vmem:[#allocation2 + $0x2c] sm:$0xf]
      %v2960 = vld [vmem:[#allocation2 + $0x30] sm:$0xf]
      %v2961 = vld [vmem:[#allocation2 + $0x34] sm:$0xf]
      %v2962 = vld [vmem:[#allocation2 + $0x38] sm:$0xf]
      %v2963 = vld [vmem:[#allocation2 + $0x3c] sm:$0xf]
      %v2964 = vld [vmem:[#allocation2 + $0x40] sm:$0xf]
      %v2965 = vld [vmem:[#allocation2 + $0x44] sm:$0xf]
      %v2966 = vld [vmem:[#allocation2 + $0x48] sm:$0xf]
      %v2967 = vld [vmem:[#allocation2 + $0x4c] sm:$0xf]
      %v2968 = vld [vmem:[#allocation2 + $0x50] sm:$0xf]
      %v2969 = vld [vmem:[#allocation2 + $0x54] sm:$0xf]
      %v2970 = vld [vmem:[#allocation2 + $0x58] sm:$0xf]
      %v2971 = vld [vmem:[#allocation2 + $0x5c] sm:$0xf]
      %v2972 = vld [vmem:[#allocation2 + $0x60] sm:$0xf]
      %v2973 = vld [vmem:[#allocation2 + $0x64] sm:$0xf]
      %v2974 = vld [vmem:[#allocation2 + $0x68] sm:$0xf]
      %v2975 = vld [vmem:[#allocation2 + $0x6c] sm:$0xf]
      %v2976 = vld [vmem:[#allocation2 + $0x70] sm:$0xf]
      %v2977 = vld [vmem:[%s3] sm:$0xf]
      %v2978 = vld [vmem:[%s3 + $0x4] sm:$0xf]
      %v2979 = vld [vmem:[%s3 + $0x8] sm:$0xf]
      %v2980 = vld [vmem:[%s3 + $0xc] sm:$0xf]
      %v2981 = vld [vmem:[%s3 + $0x10] sm:$0xf]
      %v2982 = vld [vmem:[%s3 + $0x14] sm:$0xf]
      %v2983 = vld [vmem:[%s3 + $0x18] sm:$0xf]
      %v2984 = vld [vmem:[%s3 + $0x1c] sm:$0xf]
      %v2985 = vld [vmem:[%s3 + $0x20] sm:$0xf]
      %v2986 = vld [vmem:[%s3 + $0x24] sm:$0xf]
      %v2987 = vld [vmem:[%s3 + $0x28] sm:$0xf]
      %v2988 = vld [vmem:[%s3 + $0x2c] sm:$0xf]
      %v2989 = vld [vmem:[%s3 + $0x30] sm:$0xf]
      %v2990 = vld [vmem:[%s3 + $0x34] sm:$0xf]
      %v2991 = vld [vmem:[%s3 + $0x38] sm:$0xf]
      %v2992 = vld [vmem:[%s3 + $0x3c] sm:$0xf]
      %v3017 = vunpack.c.l.b16 %v2948
      %v3018 = vunpack.c.l.b16 %v2949
      %v3019 = vunpack.c.l.b16 %v2950
      %v3020 = vunpack.c.l.b16 %v2951
      %v3021 = vunpack.c.l.b16 %v2952
      %v3022 = vunpack.c.l.b16 %v2953
      %v3023 = vunpack.c.l.b16 %v2954
      %v3024 = vunpack.c.l.b16 %v2955
      %v3025 = vunpack.c.l.b16 %v2956
      %v3026 = vunpack.c.l.b16 %v2957
      %v3027 = vunpack.c.l.b16 %v2958
      %v3028 = vunpack.c.l.b16 %v2959
      %v3029 = vunpack.c.l.b16 %v2960
      %v3030 = vunpack.c.l.b16 %v2961
      %v3031 = vunpack.c.l.b16 %v2962
      %v3032 = vunpack.c.l.b16 %v2963
      %v3033 = vunpack.c.l.b16 %v2964
      %v3034 = vunpack.c.l.b16 %v2965
      %v3035 = vunpack.c.l.b16 %v2966
      %v3036 = vunpack.c.l.b16 %v2967
      %v3037 = vunpack.c.l.b16 %v2968
      %v3038 = vunpack.c.l.b16 %v2969
      %v3039 = vunpack.c.l.b16 %v2970
      %v3040 = vunpack.c.l.b16 %v2971
      %v3041 = vpack.c.b16 %v3018, %v3017
      %v3042 = vpack.c.b16 %v3020, %v3019
      %v3043 = vpack.c.b16 %v3022, %v3021
      %v3044 = vpack.c.b16 %v3024, %v3023
      %v3045 = vpack.c.b16 %v3026, %v3025
      %v3046 = vpack.c.b16 %v3028, %v3027
      %v3047 = vpack.c.b16 %v3030, %v3029
      %v3048 = vpack.c.b16 %v3032, %v3031
      %v3049 = vpack.c.b16 %v3034, %v3033
      %v3050 = vpack.c.b16 %v3036, %v3035
      %v3051 = vpack.c.b16 %v3038, %v3037
      %v3052 = vpack.c.b16 %v3040, %v3039
      %v3081 = vunpack.c.l.b16 %v2977
      %v3082 = vunpack.c.l.b16 %v2978
      %v3083 = vunpack.c.l.b16 %v2979
      %v3084 = vunpack.c.l.b16 %v2980
      %v3085 = vunpack.c.l.b16 %v2981
      %v3086 = vunpack.c.l.b16 %v2982
      %v3087 = vunpack.c.l.b16 %v2983
      %v3088 = vunpack.c.l.b16 %v2984
      %v3089 = vunpack.c.l.b16 %v2985
      %v3090 = vunpack.c.l.b16 %v2986
      %v3091 = vunpack.c.l.b16 %v2987
      %v3092 = vunpack.c.l.b16 %v2988
      %v3093 = vunpack.c.l.b16 %v2989
      %v3094 = vunpack.c.l.b16 %v2990
      %v3095 = vunpack.c.l.b16 %v2991
      %v3096 = vunpack.c.l.b16 %v2992
      %v3097 = vpack.c.b16 %v3082, %v3081
      %v3098 = vpack.c.b16 %v3084, %v3083
      %v3099 = vpack.c.b16 %v3086, %v3085
      %v3100 = vpack.c.b16 %v3088, %v3087
      %v3101 = vpack.c.b16 %v3090, %v3089
      %v3102 = vpack.c.b16 %v3092, %v3091
      %v3103 = vpack.c.b16 %v3094, %v3093
      %v3104 = vpack.c.b16 %v3096, %v3095
      %3113 = vmatprep.subr.bf16.mxu0 0
      %3114 = vmatpush1.bf16.msra.mxu0 %v3104
      %3115 = vmatprep.subr.bf16.mxu0 0
      %3116 = vmatpush1.bf16.msra.mxu0 %v3103
      %3117 = vmatprep.subr.bf16.mxu0 0
      %3118 = vmatpush1.bf16.msra.mxu0 %v3102
      %3119 = vmatprep.subr.bf16.mxu0 0
      %3120 = vmatpush1.bf16.msra.mxu0 %v3101
      %3121 = vmatprep.subr.bf16.mxu0 0
      %3122 = vmatpush1.bf16.msra.mxu0 %v3100
      %3123 = vmatprep.subr.bf16.mxu0 0
      %3124 = vmatpush1.bf16.msra.mxu0 %v3099
      %3125 = vmatprep.subr.bf16.mxu0 0
      %3126 = vmatpush1.bf16.msra.mxu0 %v3098
      %3127 = vmatprep.subr.bf16.mxu0 0
      %3128 = vmatpush1.bf16.msra.mxu0 %v3097
      %3129 = vmatprep.subr.bf16.mxu0 0
      %3130 = vmatpush2.bf16.msra.mxu0 0
      %3131 = vmatprep.subr.bf16.mxu0 0
      %3132 = vmatpush2.bf16.msra.mxu0 0
      %3133 = vmatprep.subr.bf16.mxu0 0
      %3134 = vmatpush2.bf16.msra.mxu0 0
      %3135 = vmatprep.subr.bf16.mxu0 0
      %3136 = vmatpush2.bf16.msra.mxu0 0
      %3137 = vmatprep.subr.bf16.mxu0 0
      %3138 = vmatpush2.bf16.msra.mxu0 0
      %3139 = vmatprep.subr.bf16.mxu0 0
      %3140 = vmatpush2.bf16.msra.mxu0 0
      %3141 = vmatprep.subr.bf16.mxu0 0
      %3142 = vmatpush2.bf16.msra.mxu0 0
      %3143 = vmatprep.subr.bf16.mxu0 0
      %3144 = vmatpush2.bf16.msra.mxu0 0
      %3145 = vmatprep.mubr.bf16.mxu0 0
      %3146 = vmatmul.mubr.bf16.gmra.mxu0 %v3041
      %v3147 = vpop.f32.mrf.mxu0
      %v3148 = vadd.f32 0.0, %v3147
      %v3149 = vpop.f32.mrf.mxu0
      %v3150 = vpop.f32.mrf.mxu0
      %v3151 = vadd.f32 0.0, %v3150
      %v3152 = vpop.f32.mrf.mxu0
      %3153 = vmatprep.mubr.bf16.mxu0 0
      %3154 = vmatmul.mubr.bf16.gmra.mxu0 %v3042
      %v3155 = vpop.f32.mrf.mxu0
      %v3156 = vadd.f32 0.0, %v3155
      %v3157 = vpop.f32.mrf.mxu0
      %v3158 = vpop.f32.mrf.mxu0
      %v3159 = vadd.f32 0.0, %v3158
      %v3160 = vpop.f32.mrf.mxu0
      %3161 = vmatprep.mubr.bf16.mxu0 0
      %3162 = vmatmul.mubr.bf16.gmra.mxu0 %v3043
      %v3163 = vpop.f32.mrf.mxu0
      %v3164 = vadd.f32 0.0, %v3163
      %v3165 = vpop.f32.mrf.mxu0
      %v3166 = vpop.f32.mrf.mxu0
      %v3167 = vadd.f32 0.0, %v3166
      %v3168 = vpop.f32.mrf.mxu0
      %3169 = vmatprep.mubr.bf16.mxu0 0
      %3170 = vmatmul.mubr.bf16.gmra.mxu0 %v3044
      %v3171 = vpop.f32.mrf.mxu0
      %v3172 = vadd.f32 0.0, %v3171
      %v3173 = vpop.f32.mrf.mxu0
      %v3174 = vpop.f32.mrf.mxu0
      %v3175 = vadd.f32 0.0, %v3174
      %v3176 = vpop.f32.mrf.mxu0
      %3177 = vmatprep.mubr.bf16.mxu0 0
      %3178 = vmatmul.mubr.bf16.gmra.mxu0 %v3045
      %v3179 = vpop.f32.mrf.mxu0
      %v3180 = vadd.f32 0.0, %v3179
      %v3181 = vpop.f32.mrf.mxu0
      %v3182 = vpop.f32.mrf.mxu0
      %v3183 = vadd.f32 0.0, %v3182
      %v3184 = vpop.f32.mrf.mxu0
      %3185 = vmatprep.mubr.bf16.mxu0 0
      %3186 = vmatmul.mubr.bf16.gmra.mxu0 %v3046
      %v3187 = vpop.f32.mrf.mxu0
      %v3188 = vadd.f32 0.0, %v3187
      %v3189 = vpop.f32.mrf.mxu0
      %v3190 = vpop.f32.mrf.mxu0
      %v3191 = vadd.f32 0.0, %v3190
      %v3192 = vpop.f32.mrf.mxu0
      %3193 = vmatprep.mubr.bf16.mxu0 0
      %3194 = vmatmul.mubr.bf16.gmra.mxu0 %v3047
      %v3195 = vpop.f32.mrf.mxu0
      %v3196 = vadd.f32 0.0, %v3195
      %v3197 = vpop.f32.mrf.mxu0
      %v3198 = vpop.f32.mrf.mxu0
      %v3199 = vadd.f32 0.0, %v3198
      %v3200 = vpop.f32.mrf.mxu0
      %3201 = vmatprep.mubr.bf16.mxu0 0
      %3202 = vmatmul.mubr.bf16.gmra.mxu0 %v3048
      %v3203 = vpop.f32.mrf.mxu0
      %v3204 = vadd.f32 0.0, %v3203
      %v3205 = vpop.f32.mrf.mxu0
      %v3206 = vpop.f32.mrf.mxu0
      %v3207 = vadd.f32 0.0, %v3206
      %v3208 = vpop.f32.mrf.mxu0
      %3209 = vmatprep.mubr.bf16.mxu0 0
      %3210 = vmatmul.mubr.bf16.gmra.mxu0 %v3049
      %v3211 = vpop.f32.mrf.mxu0
      %v3212 = vadd.f32 0.0, %v3211
      %v3213 = vpop.f32.mrf.mxu0
      %v3214 = vpop.f32.mrf.mxu0
      %v3215 = vadd.f32 0.0, %v3214
      %v3216 = vpop.f32.mrf.mxu0
      %3217 = vmatprep.mubr.bf16.mxu0 0
      %3218 = vmatmul.mubr.bf16.gmra.mxu0 %v3050
      %v3219 = vpop.f32.mrf.mxu0
      %v3220 = vadd.f32 0.0, %v3219
      %v3221 = vpop.f32.mrf.mxu0
      %v3222 = vpop.f32.mrf.mxu0
      %v3223 = vadd.f32 0.0, %v3222
      %v3224 = vpop.f32.mrf.mxu0
      %3225 = vmatprep.mubr.bf16.mxu0 0
      %3226 = vmatmul.mubr.bf16.gmra.mxu0 %v3051
      %v3227 = vpop.f32.mrf.mxu0
      %v3228 = vadd.f32 0.0, %v3227
      %v3229 = vpop.f32.mrf.mxu0
      %v3230 = vpop.f32.mrf.mxu0
      %v3231 = vadd.f32 0.0, %v3230
      %v3232 = vpop.f32.mrf.mxu0
      %3233 = vmatprep.mubr.bf16.mxu0 0
      %3234 = vmatmul.mubr.bf16.gmra.mxu0 %v3052
      %v3235 = vpop.f32.mrf.mxu0
      %v3236 = vadd.f32 0.0, %v3235
      %v3237 = vpop.f32.mrf.mxu0
      %v3238 = vpop.f32.mrf.mxu0
      %v3239 = vadd.f32 0.0, %v3238
      %v3240 = vpop.f32.mrf.mxu0
      %3241 = vdwg.mxu0
      %3242 = vst [vmem:[#allocation4] sm:$0xff] %v3148
      %3243 = vst [vmem:[#allocation4 + $0x8] sm:$0xff] %v3151
      %3244 = vst [vmem:[#allocation4 + $0x10] sm:$0xff] %v3156
      %3245 = vst [vmem:[#allocation4 + $0x18] sm:$0xff] %v3159
      %3246 = vst [vmem:[#allocation4 + $0x20] sm:$0xff] %v3164
      %3247 = vst [vmem:[#allocation4 + $0x28] sm:$0xff] %v3167
      %3248 = vst [vmem:[#allocation4 + $0x30] sm:$0xff] %v3172
      %3249 = vst [vmem:[#allocation4 + $0x38] sm:$0xff] %v3175
      %3250 = vst [vmem:[#allocation4 + $0x40] sm:$0xff] %v3180
      %3251 = vst [vmem:[#allocation4 + $0x48] sm:$0xff] %v3183
      %3252 = vst [vmem:[#allocation4 + $0x50] sm:$0xff] %v3188
      %3253 = vst [vmem:[#allocation4 + $0x58] sm:$0xff] %v3191
      %3254 = vst [vmem:[#allocation4 + $0x60] sm:$0xff] %v3196
      %3255 = vst [vmem:[#allocation4 + $0x68] sm:$0xff] %v3199
      %3256 = vst [vmem:[#allocation4 + $0x70] sm:$0xff] %v3204
      %3257 = vst [vmem:[#allocation4 + $0x78] sm:$0xff] %v3207
      %3258 = vst [vmem:[#allocation4 + $0x80] sm:$0xff] %v3212
      %3259 = vst [vmem:[#allocation4 + $0x88] sm:$0xff] %v3215
      %3260 = vst [vmem:[#allocation4 + $0x90] sm:$0xff] %v3220
      %3261 = vst [vmem:[#allocation4 + $0x98] sm:$0xff] %v3223
      %3262 = vst [vmem:[#allocation4 + $0xa0] sm:$0xff] %v3228
      %3263 = vst [vmem:[#allocation4 + $0xa8] sm:$0xff] %v3231
      %3264 = vst [vmem:[#allocation4 + $0xb0] sm:$0xff] %v3236
      %3265 = vst [vmem:[#allocation4 + $0xb8] sm:$0xff] %v3239
      %s3266 = scalar_lea.vmem %s3, 64
      %v3267 = vld [vmem:[%s3266] sm:$0xf]
      %v3268 = vld [vmem:[%s3266 + $0x4] sm:$0xf]
      %v3269 = vld [vmem:[%s3266 + $0x8] sm:$0xf]
      %v3270 = vld [vmem:[%s3266 + $0xc] sm:$0xf]
      %v3271 = vld [vmem:[%s3266 + $0x10] sm:$0xf]
      %v3272 = vld [vmem:[%s3266 + $0x14] sm:$0xf]
      %v3273 = vld [vmem:[%s3266 + $0x18] sm:$0xf]
      %v3274 = vld [vmem:[%s3266 + $0x1c] sm:$0xf]
      %v3275 = vld [vmem:[%s3266 + $0x20] sm:$0xf]
      %v3276 = vld [vmem:[%s3266 + $0x24] sm:$0xf]
      %v3277 = vld [vmem:[%s3266 + $0x28] sm:$0xf]
      %v3278 = vld [vmem:[%s3266 + $0x2c] sm:$0xf]
      %v3279 = vld [vmem:[%s3266 + $0x30] sm:$0xf]
      %v3280 = vld [vmem:[%s3266 + $0x34] sm:$0xf]
      %v3281 = vld [vmem:[%s3266 + $0x38] sm:$0xf]
      %v3282 = vld [vmem:[%s3266 + $0x3c] sm:$0xf]
      %v3284 = vunpack.c.l.b16 %v2972
      %v3285 = vpack.c.b16 %v3284, %v3284
      %v3287 = vshrl.u32 %v3041, 16
      %v3289 = vshll.u32 %v3041, 16
      %v3291 = vrot.slane %v3289, 1
      %v3292 = vor.u32 %v3287, %v3291
      %v3294 = vshll.u32 %v3042, 16
      %v3296 = vrot.slane %v3294, 1
      %v3297 = vsel %vm556, %v3292, %v3296
      %v3298 = vshrl.u32 %v3042, 16
      %v3300 = vor.u32 %v3298, %v3296
      %v3302 = vshll.u32 %v3043, 16
      %v3304 = vrot.slane %v3302, 1
      %v3305 = vsel %vm556, %v3300, %v3304
      %v3306 = vshrl.u32 %v3043, 16
      %v3308 = vor.u32 %v3306, %v3304
      %v3310 = vshll.u32 %v3044, 16
      %v3312 = vrot.slane %v3310, 1
      %v3313 = vsel %vm556, %v3308, %v3312
      %v3314 = vshrl.u32 %v3044, 16
      %v3316 = vor.u32 %v3314, %v3312
      %v3318 = vshll.u32 %v3045, 16
      %v3320 = vrot.slane %v3318, 1
      %v3321 = vsel %vm556, %v3316, %v3320
      %v3322 = vshrl.u32 %v3045, 16
      %v3324 = vor.u32 %v3322, %v3320
      %v3326 = vshll.u32 %v3046, 16
      %v3328 = vrot.slane %v3326, 1
      %v3329 = vsel %vm556, %v3324, %v3328
      %v3330 = vshrl.u32 %v3046, 16
      %v3332 = vor.u32 %v3330, %v3328
      %v3334 = vshll.u32 %v3047, 16
      %v3336 = vrot.slane %v3334, 1
      %v3337 = vsel %vm556, %v3332, %v3336
      %v3338 = vshrl.u32 %v3047, 16
      %v3340 = vor.u32 %v3338, %v3336
      %v3342 = vshll.u32 %v3048, 16
      %v3344 = vrot.slane %v3342, 1
      %v3345 = vsel %vm556, %v3340, %v3344
      %v3346 = vshrl.u32 %v3048, 16
      %v3348 = vor.u32 %v3346, %v3344
      %v3350 = vshll.u32 %v3049, 16
      %v3352 = vrot.slane %v3350, 1
      %v3353 = vsel %vm556, %v3348, %v3352
      %v3354 = vshrl.u32 %v3049, 16
      %v3356 = vor.u32 %v3354, %v3352
      %v3358 = vshll.u32 %v3050, 16
      %v3360 = vrot.slane %v3358, 1
      %v3361 = vsel %vm556, %v3356, %v3360
      %v3362 = vshrl.u32 %v3050, 16
      %v3364 = vor.u32 %v3362, %v3360
      %v3366 = vshll.u32 %v3051, 16
      %v3368 = vrot.slane %v3366, 1
      %v3369 = vsel %vm556, %v3364, %v3368
      %v3370 = vshrl.u32 %v3051, 16
      %v3372 = vor.u32 %v3370, %v3368
      %v3374 = vshll.u32 %v3052, 16
      %v3376 = vrot.slane %v3374, 1
      %v3377 = vsel %vm556, %v3372, %v3376
      %v3378 = vshrl.u32 %v3052, 16
      %v3380 = vor.u32 %v3378, %v3376
      %v3382 = vshll.u32 %v3285, 16
      %v3384 = vrot.slane %v3382, 1
      %v3385 = vsel %vm556, %v3380, %v3384
      %v3414 = vunpack.c.l.b16 %v3267
      %v3415 = vunpack.c.l.b16 %v3268
      %v3416 = vunpack.c.l.b16 %v3269
      %v3417 = vunpack.c.l.b16 %v3270
      %v3418 = vunpack.c.l.b16 %v3271
      %v3419 = vunpack.c.l.b16 %v3272
      %v3420 = vunpack.c.l.b16 %v3273
      %v3421 = vunpack.c.l.b16 %v3274
      %v3422 = vunpack.c.l.b16 %v3275
      %v3423 = vunpack.c.l.b16 %v3276
      %v3424 = vunpack.c.l.b16 %v3277
      %v3425 = vunpack.c.l.b16 %v3278
      %v3426 = vunpack.c.l.b16 %v3279
      %v3427 = vunpack.c.l.b16 %v3280
      %v3428 = vunpack.c.l.b16 %v3281
      %v3429 = vunpack.c.l.b16 %v3282
      %v3430 = vpack.c.b16 %v3415, %v3414
      %v3431 = vpack.c.b16 %v3417, %v3416
      %v3432 = vpack.c.b16 %v3419, %v3418
      %v3433 = vpack.c.b16 %v3421, %v3420
      %v3434 = vpack.c.b16 %v3423, %v3422
      %v3435 = vpack.c.b16 %v3425, %v3424
      %v3436 = vpack.c.b16 %v3427, %v3426
      %v3437 = vpack.c.b16 %v3429, %v3428
      %3446 = vmatprep.subr.bf16.mxu0 0
      %3447 = vmatpush1.bf16.msra.mxu0 %v3437
      %3448 = vmatprep.subr.bf16.mxu0 0
      %3449 = vmatpush1.bf16.msra.mxu0 %v3436
      %3450 = vmatprep.subr.bf16.mxu0 0
      %3451 = vmatpush1.bf16.msra.mxu0 %v3435
      %3452 = vmatprep.subr.bf16.mxu0 0
      %3453 = vmatpush1.bf16.msra.mxu0 %v3434
      %3454 = vmatprep.subr.bf16.mxu0 0
      %3455 = vmatpush1.bf16.msra.mxu0 %v3433
      %3456 = vmatprep.subr.bf16.mxu0 0
      %3457 = vmatpush1.bf16.msra.mxu0 %v3432
      %3458 = vmatprep.subr.bf16.mxu0 0
      %3459 = vmatpush1.bf16.msra.mxu0 %v3431
      %3460 = vmatprep.subr.bf16.mxu0 0
      %3461 = vmatpush1.bf16.msra.mxu0 %v3430
      %3462 = vmatprep.subr.bf16.mxu0 0
      %3463 = vmatpush2.bf16.msra.mxu0 0
      %3464 = vmatprep.subr.bf16.mxu0 0
      %3465 = vmatpush2.bf16.msra.mxu0 0
      %3466 = vmatprep.subr.bf16.mxu0 0
      %3467 = vmatpush2.bf16.msra.mxu0 0
      %3468 = vmatprep.subr.bf16.mxu0 0
      %3469 = vmatpush2.bf16.msra.mxu0 0
      %3470 = vmatprep.subr.bf16.mxu0 0
      %3471 = vmatpush2.bf16.msra.mxu0 0
      %3472 = vmatprep.subr.bf16.mxu0 0
      %3473 = vmatpush2.bf16.msra.mxu0 0
      %3474 = vmatprep.subr.bf16.mxu0 0
      %3475 = vmatpush2.bf16.msra.mxu0 0
      %3476 = vmatprep.subr.bf16.mxu0 0
      %3477 = vmatpush2.bf16.msra.mxu0 0
      %3478 = vmatprep.mubr.bf16.mxu0 0
      %3479 = vmatmul.mubr.bf16.gmra.mxu0 %v3297
      %v3480 = vpop.f32.mrf.mxu0
      %v3481 = vadd.f32 0.0, %v3480
      %v3482 = vpop.f32.mrf.mxu0
      %v3483 = vpop.f32.mrf.mxu0
      %v3484 = vadd.f32 0.0, %v3483
      %v3485 = vpop.f32.mrf.mxu0
      %3486 = vmatprep.mubr.bf16.mxu0 0
      %3487 = vmatmul.mubr.bf16.gmra.mxu0 %v3305
      %v3488 = vpop.f32.mrf.mxu0
      %v3489 = vadd.f32 0.0, %v3488
      %v3490 = vpop.f32.mrf.mxu0
      %v3491 = vpop.f32.mrf.mxu0
      %v3492 = vadd.f32 0.0, %v3491
      %v3493 = vpop.f32.mrf.mxu0
      %3494 = vmatprep.mubr.bf16.mxu0 0
      %3495 = vmatmul.mubr.bf16.gmra.mxu0 %v3313
      %v3496 = vpop.f32.mrf.mxu0
      %v3497 = vadd.f32 0.0, %v3496
      %v3498 = vpop.f32.mrf.mxu0
      %v3499 = vpop.f32.mrf.mxu0
      %v3500 = vadd.f32 0.0, %v3499
      %v3501 = vpop.f32.mrf.mxu0
      %3502 = vmatprep.mubr.bf16.mxu0 0
      %3503 = vmatmul.mubr.bf16.gmra.mxu0 %v3321
      %v3504 = vpop.f32.mrf.mxu0
      %v3505 = vadd.f32 0.0, %v3504
      %v3506 = vpop.f32.mrf.mxu0
      %v3507 = vpop.f32.mrf.mxu0
      %v3508 = vadd.f32 0.0, %v3507
      %v3509 = vpop.f32.mrf.mxu0
      %3510 = vmatprep.mubr.bf16.mxu0 0
      %3511 = vmatmul.mubr.bf16.gmra.mxu0 %v3329
      %v3512 = vpop.f32.mrf.mxu0
      %v3513 = vadd.f32 0.0, %v3512
      %v3514 = vpop.f32.mrf.mxu0
      %v3515 = vpop.f32.mrf.mxu0
      %v3516 = vadd.f32 0.0, %v3515
      %v3517 = vpop.f32.mrf.mxu0
      %3518 = vmatprep.mubr.bf16.mxu0 0
      %3519 = vmatmul.mubr.bf16.gmra.mxu0 %v3337
      %v3520 = vpop.f32.mrf.mxu0
      %v3521 = vadd.f32 0.0, %v3520
      %v3522 = vpop.f32.mrf.mxu0
      %v3523 = vpop.f32.mrf.mxu0
      %v3524 = vadd.f32 0.0, %v3523
      %v3525 = vpop.f32.mrf.mxu0
      %3526 = vmatprep.mubr.bf16.mxu0 0
      %3527 = vmatmul.mubr.bf16.gmra.mxu0 %v3345
      %v3528 = vpop.f32.mrf.mxu0
      %v3529 = vadd.f32 0.0, %v3528
      %v3530 = vpop.f32.mrf.mxu0
      %v3531 = vpop.f32.mrf.mxu0
      %v3532 = vadd.f32 0.0, %v3531
      %v3533 = vpop.f32.mrf.mxu0
      %3534 = vmatprep.mubr.bf16.mxu0 0
      %3535 = vmatmul.mubr.bf16.gmra.mxu0 %v3353
      %v3536 = vpop.f32.mrf.mxu0
      %v3537 = vadd.f32 0.0, %v3536
      %v3538 = vpop.f32.mrf.mxu0
      %v3539 = vpop.f32.mrf.mxu0
      %v3540 = vadd.f32 0.0, %v3539
      %v3541 = vpop.f32.mrf.mxu0
      %3542 = vmatprep.mubr.bf16.mxu0 0
      %3543 = vmatmul.mubr.bf16.gmra.mxu0 %v3361
      %v3544 = vpop.f32.mrf.mxu0
      %v3545 = vadd.f32 0.0, %v3544
      %v3546 = vpop.f32.mrf.mxu0
      %v3547 = vpop.f32.mrf.mxu0
      %v3548 = vadd.f32 0.0, %v3547
      %v3549 = vpop.f32.mrf.mxu0
      %3550 = vmatprep.mubr.bf16.mxu0 0
      %3551 = vmatmul.mubr.bf16.gmra.mxu0 %v3369
      %v3552 = vpop.f32.mrf.mxu0
      %v3553 = vadd.f32 0.0, %v3552
      %v3554 = vpop.f32.mrf.mxu0
      %v3555 = vpop.f32.mrf.mxu0
      %v3556 = vadd.f32 0.0, %v3555
      %v3557 = vpop.f32.mrf.mxu0
      %3558 = vmatprep.mubr.bf16.mxu0 0
      %3559 = vmatmul.mubr.bf16.gmra.mxu0 %v3377
      %v3560 = vpop.f32.mrf.mxu0
      %v3561 = vadd.f32 0.0, %v3560
      %v3562 = vpop.f32.mrf.mxu0
      %v3563 = vpop.f32.mrf.mxu0
      %v3564 = vadd.f32 0.0, %v3563
      %v3565 = vpop.f32.mrf.mxu0
      %3566 = vmatprep.mubr.bf16.mxu0 0
      %3567 = vmatmul.mubr.bf16.gmra.mxu0 %v3385
      %v3568 = vpop.f32.mrf.mxu0
      %v3569 = vadd.f32 0.0, %v3568
      %v3570 = vpop.f32.mrf.mxu0
      %v3571 = vpop.f32.mrf.mxu0
      %v3572 = vadd.f32 0.0, %v3571
      %v3573 = vpop.f32.mrf.mxu0
      %3574 = vdwg.mxu0
      %v3575 = vld [vmem:[#allocation4] sm:$0xff]
      %v3576 = vld [vmem:[#allocation4 + $0x8] sm:$0xff]
      %v3577 = vld [vmem:[#allocation4 + $0x10] sm:$0xff]
      %v3578 = vld [vmem:[#allocation4 + $0x18] sm:$0xff]
      %v3579 = vld [vmem:[#allocation4 + $0x20] sm:$0xff]
      %v3580 = vld [vmem:[#allocation4 + $0x28] sm:$0xff]
      %v3581 = vld [vmem:[#allocation4 + $0x30] sm:$0xff]
      %v3582 = vld [vmem:[#allocation4 + $0x38] sm:$0xff]
      %v3583 = vld [vmem:[#allocation4 + $0x40] sm:$0xff]
      %v3584 = vld [vmem:[#allocation4 + $0x48] sm:$0xff]
      %v3585 = vld [vmem:[#allocation4 + $0x50] sm:$0xff]
      %v3586 = vld [vmem:[#allocation4 + $0x58] sm:$0xff]
      %v3587 = vld [vmem:[#allocation4 + $0x60] sm:$0xff]
      %v3588 = vld [vmem:[#allocation4 + $0x68] sm:$0xff]
      %v3589 = vld [vmem:[#allocation4 + $0x70] sm:$0xff]
      %v3590 = vld [vmem:[#allocation4 + $0x78] sm:$0xff]
      %v3591 = vld [vmem:[#allocation4 + $0x80] sm:$0xff]
      %v3592 = vld [vmem:[#allocation4 + $0x88] sm:$0xff]
      %v3593 = vld [vmem:[#allocation4 + $0x90] sm:$0xff]
      %v3594 = vld [vmem:[#allocation4 + $0x98] sm:$0xff]
      %v3595 = vld [vmem:[#allocation4 + $0xa0] sm:$0xff]
      %v3596 = vld [vmem:[#allocation4 + $0xa8] sm:$0xff]
      %v3597 = vld [vmem:[#allocation4 + $0xb0] sm:$0xff]
      %v3598 = vld [vmem:[#allocation4 + $0xb8] sm:$0xff]
      %v3599 = vadd.f32 %v3575, %v3481
      %v3600 = vadd.f32 %v3576, %v3484
      %v3601 = vadd.f32 %v3577, %v3489
      %v3602 = vadd.f32 %v3578, %v3492
      %v3603 = vadd.f32 %v3579, %v3497
      %v3604 = vadd.f32 %v3580, %v3500
      %v3605 = vadd.f32 %v3581, %v3505
      %v3606 = vadd.f32 %v3582, %v3508
      %v3607 = vadd.f32 %v3583, %v3513
      %v3608 = vadd.f32 %v3584, %v3516
      %v3609 = vadd.f32 %v3585, %v3521
      %v3610 = vadd.f32 %v3586, %v3524
      %v3611 = vadd.f32 %v3587, %v3529
      %v3612 = vadd.f32 %v3588, %v3532
      %v3613 = vadd.f32 %v3589, %v3537
      %v3614 = vadd.f32 %v3590, %v3540
      %v3615 = vadd.f32 %v3591, %v3545
      %v3616 = vadd.f32 %v3592, %v3548
      %v3617 = vadd.f32 %v3593, %v3553
      %v3618 = vadd.f32 %v3594, %v3556
      %v3619 = vadd.f32 %v3595, %v3561
      %v3620 = vadd.f32 %v3596, %v3564
      %v3621 = vadd.f32 %v3597, %v3569
      %v3622 = vadd.f32 %v3598, %v3572
      %3623 = vst [vmem:[#allocation4] sm:$0xff] %v3599
      %3624 = vst [vmem:[#allocation4 + $0x8] sm:$0xff] %v3600
      %3625 = vst [vmem:[#allocation4 + $0x10] sm:$0xff] %v3601
      %3626 = vst [vmem:[#allocation4 + $0x18] sm:$0xff] %v3602
      %3627 = vst [vmem:[#allocation4 + $0x20] sm:$0xff] %v3603
      %3628 = vst [vmem:[#allocation4 + $0x28] sm:$0xff] %v3604
      %3629 = vst [vmem:[#allocation4 + $0x30] sm:$0xff] %v3605
      %3630 = vst [vmem:[#allocation4 + $0x38] sm:$0xff] %v3606
      %3631 = vst [vmem:[#allocation4 + $0x40] sm:$0xff] %v3607
      %3632 = vst [vmem:[#allocation4 + $0x48] sm:$0xff] %v3608
      %3633 = vst [vmem:[#allocation4 + $0x50] sm:$0xff] %v3609
      %3634 = vst [vmem:[#allocation4 + $0x58] sm:$0xff] %v3610
      %3635 = vst [vmem:[#allocation4 + $0x60] sm:$0xff] %v3611
      %3636 = vst [vmem:[#allocation4 + $0x68] sm:$0xff] %v3612
      %3637 = vst [vmem:[#allocation4 + $0x70] sm:$0xff] %v3613
      %3638 = vst [vmem:[#allocation4 + $0x78] sm:$0xff] %v3614
      %3639 = vst [vmem:[#allocation4 + $0x80] sm:$0xff] %v3615
      %3640 = vst [vmem:[#allocation4 + $0x88] sm:$0xff] %v3616
      %3641 = vst [vmem:[#allocation4 + $0x90] sm:$0xff] %v3617
      %3642 = vst [vmem:[#allocation4 + $0x98] sm:$0xff] %v3618
      %3643 = vst [vmem:[#allocation4 + $0xa0] sm:$0xff] %v3619
      %3644 = vst [vmem:[#allocation4 + $0xa8] sm:$0xff] %v3620
      %3645 = vst [vmem:[#allocation4 + $0xb0] sm:$0xff] %v3621
      %3646 = vst [vmem:[#allocation4 + $0xb8] sm:$0xff] %v3622
      %s3647 = scalar_lea.vmem %s3, 128
      %v3648 = vld [vmem:[%s3647] sm:$0xf]
      %v3649 = vld [vmem:[%s3647 + $0x4] sm:$0xf]
      %v3650 = vld [vmem:[%s3647 + $0x8] sm:$0xf]
      %v3651 = vld [vmem:[%s3647 + $0xc] sm:$0xf]
      %v3652 = vld [vmem:[%s3647 + $0x10] sm:$0xf]
      %v3653 = vld [vmem:[%s3647 + $0x14] sm:$0xf]
      %v3654 = vld [vmem:[%s3647 + $0x18] sm:$0xf]
      %v3655 = vld [vmem:[%s3647 + $0x1c] sm:$0xf]
      %v3656 = vld [vmem:[%s3647 + $0x20] sm:$0xf]
      %v3657 = vld [vmem:[%s3647 + $0x24] sm:$0xf]
      %v3658 = vld [vmem:[%s3647 + $0x28] sm:$0xf]
      %v3659 = vld [vmem:[%s3647 + $0x2c] sm:$0xf]
      %v3660 = vld [vmem:[%s3647 + $0x30] sm:$0xf]
      %v3661 = vld [vmem:[%s3647 + $0x34] sm:$0xf]
      %v3662 = vld [vmem:[%s3647 + $0x38] sm:$0xf]
      %v3663 = vld [vmem:[%s3647 + $0x3c] sm:$0xf]
      %v3664 = vrot.slane %v3041, 1
      %v3665 = vrot.slane %v3042, 1
      %v3666 = vsel %vm935, %v3664, %v3665
      %v3667 = vrot.slane %v3043, 1
      %v3668 = vsel %vm935, %v3665, %v3667
      %v3669 = vrot.slane %v3044, 1
      %v3670 = vsel %vm935, %v3667, %v3669
      %v3671 = vrot.slane %v3045, 1
      %v3672 = vsel %vm935, %v3669, %v3671
      %v3673 = vrot.slane %v3046, 1
      %v3674 = vsel %vm935, %v3671, %v3673
      %v3675 = vrot.slane %v3047, 1
      %v3676 = vsel %vm935, %v3673, %v3675
      %v3677 = vrot.slane %v3048, 1
      %v3678 = vsel %vm935, %v3675, %v3677
      %v3679 = vrot.slane %v3049, 1
      %v3680 = vsel %vm935, %v3677, %v3679
      %v3681 = vrot.slane %v3050, 1
      %v3682 = vsel %vm935, %v3679, %v3681
      %v3683 = vrot.slane %v3051, 1
      %v3684 = vsel %vm935, %v3681, %v3683
      %v3685 = vrot.slane %v3052, 1
      %v3686 = vsel %vm935, %v3683, %v3685
      %v3687 = vrot.slane %v3285, 1
      %v3688 = vsel %vm935, %v3685, %v3687
      %v3717 = vunpack.c.l.b16 %v3648
      %v3718 = vunpack.c.l.b16 %v3649
      %v3719 = vunpack.c.l.b16 %v3650
      %v3720 = vunpack.c.l.b16 %v3651
      %v3721 = vunpack.c.l.b16 %v3652
      %v3722 = vunpack.c.l.b16 %v3653
      %v3723 = vunpack.c.l.b16 %v3654
      %v3724 = vunpack.c.l.b16 %v3655
      %v3725 = vunpack.c.l.b16 %v3656
      %v3726 = vunpack.c.l.b16 %v3657
      %v3727 = vunpack.c.l.b16 %v3658
      %v3728 = vunpack.c.l.b16 %v3659
      %v3729 = vunpack.c.l.b16 %v3660
      %v3730 = vunpack.c.l.b16 %v3661
      %v3731 = vunpack.c.l.b16 %v3662
      %v3732 = vunpack.c.l.b16 %v3663
      %v3733 = vpack.c.b16 %v3718, %v3717
      %v3734 = vpack.c.b16 %v3720, %v3719
      %v3735 = vpack.c.b16 %v3722, %v3721
      %v3736 = vpack.c.b16 %v3724, %v3723
      %v3737 = vpack.c.b16 %v3726, %v3725
      %v3738 = vpack.c.b16 %v3728, %v3727
      %v3739 = vpack.c.b16 %v3730, %v3729
      %v3740 = vpack.c.b16 %v3732, %v3731
      %3749 = vmatprep.subr.bf16.mxu0 0
      %3750 = vmatpush1.bf16.msra.mxu0 %v3740
      %3751 = vmatprep.subr.bf16.mxu0 0
      %3752 = vmatpush1.bf16.msra.mxu0 %v3739
      %3753 = vmatprep.subr.bf16.mxu0 0
      %3754 = vmatpush1.bf16.msra.mxu0 %v3738
      %3755 = vmatprep.subr.bf16.mxu0 0
      %3756 = vmatpush1.bf16.msra.mxu0 %v3737
      %3757 = vmatprep.subr.bf16.mxu0 0
      %3758 = vmatpush1.bf16.msra.mxu0 %v3736
      %3759 = vmatprep.subr.bf16.mxu0 0
      %3760 = vmatpush1.bf16.msra.mxu0 %v3735
      %3761 = vmatprep.subr.bf16.mxu0 0
      %3762 = vmatpush1.bf16.msra.mxu0 %v3734
      %3763 = vmatprep.subr.bf16.mxu0 0
      %3764 = vmatpush1.bf16.msra.mxu0 %v3733
      %3765 = vmatprep.subr.bf16.mxu0 0
      %3766 = vmatpush2.bf16.msra.mxu0 0
      %3767 = vmatprep.subr.bf16.mxu0 0
      %3768 = vmatpush2.bf16.msra.mxu0 0
      %3769 = vmatprep.subr.bf16.mxu0 0
      %3770 = vmatpush2.bf16.msra.mxu0 0
      %3771 = vmatprep.subr.bf16.mxu0 0
      %3772 = vmatpush2.bf16.msra.mxu0 0
      %3773 = vmatprep.subr.bf16.mxu0 0
      %3774 = vmatpush2.bf16.msra.mxu0 0
      %3775 = vmatprep.subr.bf16.mxu0 0
      %3776 = vmatpush2.bf16.msra.mxu0 0
      %3777 = vmatprep.subr.bf16.mxu0 0
      %3778 = vmatpush2.bf16.msra.mxu0 0
      %3779 = vmatprep.subr.bf16.mxu0 0
      %3780 = vmatpush2.bf16.msra.mxu0 0
      %3781 = vmatprep.mubr.bf16.mxu0 0
      %3782 = vmatmul.mubr.bf16.gmra.mxu0 %v3666
      %v3783 = vpop.f32.mrf.mxu0
      %v3784 = vadd.f32 0.0, %v3783
      %v3785 = vpop.f32.mrf.mxu0
      %v3786 = vpop.f32.mrf.mxu0
      %v3787 = vadd.f32 0.0, %v3786
      %v3788 = vpop.f32.mrf.mxu0
      %3789 = vmatprep.mubr.bf16.mxu0 0
      %3790 = vmatmul.mubr.bf16.gmra.mxu0 %v3668
      %v3791 = vpop.f32.mrf.mxu0
      %v3792 = vadd.f32 0.0, %v3791
      %v3793 = vpop.f32.mrf.mxu0
      %v3794 = vpop.f32.mrf.mxu0
      %v3795 = vadd.f32 0.0, %v3794
      %v3796 = vpop.f32.mrf.mxu0
      %3797 = vmatprep.mubr.bf16.mxu0 0
      %3798 = vmatmul.mubr.bf16.gmra.mxu0 %v3670
      %v3799 = vpop.f32.mrf.mxu0
      %v3800 = vadd.f32 0.0, %v3799
      %v3801 = vpop.f32.mrf.mxu0
      %v3802 = vpop.f32.mrf.mxu0
      %v3803 = vadd.f32 0.0, %v3802
      %v3804 = vpop.f32.mrf.mxu0
      %3805 = vmatprep.mubr.bf16.mxu0 0
      %3806 = vmatmul.mubr.bf16.gmra.mxu0 %v3672
      %v3807 = vpop.f32.mrf.mxu0
      %v3808 = vadd.f32 0.0, %v3807
      %v3809 = vpop.f32.mrf.mxu0
      %v3810 = vpop.f32.mrf.mxu0
      %v3811 = vadd.f32 0.0, %v3810
      %v3812 = vpop.f32.mrf.mxu0
      %3813 = vmatprep.mubr.bf16.mxu0 0
      %3814 = vmatmul.mubr.bf16.gmra.mxu0 %v3674
      %v3815 = vpop.f32.mrf.mxu0
      %v3816 = vadd.f32 0.0, %v3815
      %v3817 = vpop.f32.mrf.mxu0
      %v3818 = vpop.f32.mrf.mxu0
      %v3819 = vadd.f32 0.0, %v3818
      %v3820 = vpop.f32.mrf.mxu0
      %3821 = vmatprep.mubr.bf16.mxu0 0
      %3822 = vmatmul.mubr.bf16.gmra.mxu0 %v3676
      %v3823 = vpop.f32.mrf.mxu0
      %v3824 = vadd.f32 0.0, %v3823
      %v3825 = vpop.f32.mrf.mxu0
      %v3826 = vpop.f32.mrf.mxu0
      %v3827 = vadd.f32 0.0, %v3826
      %v3828 = vpop.f32.mrf.mxu0
      %3829 = vmatprep.mubr.bf16.mxu0 0
      %3830 = vmatmul.mubr.bf16.gmra.mxu0 %v3678
      %v3831 = vpop.f32.mrf.mxu0
      %v3832 = vadd.f32 0.0, %v3831
      %v3833 = vpop.f32.mrf.mxu0
      %v3834 = vpop.f32.mrf.mxu0
      %v3835 = vadd.f32 0.0, %v3834
      %v3836 = vpop.f32.mrf.mxu0
      %3837 = vmatprep.mubr.bf16.mxu0 0
      %3838 = vmatmul.mubr.bf16.gmra.mxu0 %v3680
      %v3839 = vpop.f32.mrf.mxu0
      %v3840 = vadd.f32 0.0, %v3839
      %v3841 = vpop.f32.mrf.mxu0
      %v3842 = vpop.f32.mrf.mxu0
      %v3843 = vadd.f32 0.0, %v3842
      %v3844 = vpop.f32.mrf.mxu0
      %3845 = vmatprep.mubr.bf16.mxu0 0
      %3846 = vmatmul.mubr.bf16.gmra.mxu0 %v3682
      %v3847 = vpop.f32.mrf.mxu0
      %v3848 = vadd.f32 0.0, %v3847
      %v3849 = vpop.f32.mrf.mxu0
      %v3850 = vpop.f32.mrf.mxu0
      %v3851 = vadd.f32 0.0, %v3850
      %v3852 = vpop.f32.mrf.mxu0
      %3853 = vmatprep.mubr.bf16.mxu0 0
      %3854 = vmatmul.mubr.bf16.gmra.mxu0 %v3684
      %v3855 = vpop.f32.mrf.mxu0
      %v3856 = vadd.f32 0.0, %v3855
      %v3857 = vpop.f32.mrf.mxu0
      %v3858 = vpop.f32.mrf.mxu0
      %v3859 = vadd.f32 0.0, %v3858
      %v3860 = vpop.f32.mrf.mxu0
      %3861 = vmatprep.mubr.bf16.mxu0 0
      %3862 = vmatmul.mubr.bf16.gmra.mxu0 %v3686
      %v3863 = vpop.f32.mrf.mxu0
      %v3864 = vadd.f32 0.0, %v3863
      %v3865 = vpop.f32.mrf.mxu0
      %v3866 = vpop.f32.mrf.mxu0
      %v3867 = vadd.f32 0.0, %v3866
      %v3868 = vpop.f32.mrf.mxu0
      %3869 = vmatprep.mubr.bf16.mxu0 0
      %3870 = vmatmul.mubr.bf16.gmra.mxu0 %v3688
      %v3871 = vpop.f32.mrf.mxu0
      %v3872 = vadd.f32 0.0, %v3871
      %v3873 = vpop.f32.mrf.mxu0
      %v3874 = vpop.f32.mrf.mxu0
      %v3875 = vadd.f32 0.0, %v3874
      %v3876 = vpop.f32.mrf.mxu0
      %3877 = vdwg.mxu0
      %v3878 = vld [vmem:[#allocation4] sm:$0xff]
      %v3879 = vld [vmem:[#allocation4 + $0x8] sm:$0xff]
      %v3880 = vld [vmem:[#allocation4 + $0x10] sm:$0xff]
      %v3881 = vld [vmem:[#allocation4 + $0x18] sm:$0xff]
      %v3882 = vld [vmem:[#allocation4 + $0x20] sm:$0xff]
      %v3883 = vld [vmem:[#allocation4 + $0x28] sm:$0xff]
      %v3884 = vld [vmem:[#allocation4 + $0x30] sm:$0xff]
      %v3885 = vld [vmem:[#allocation4 + $0x38] sm:$0xff]
      %v3886 = vld [vmem:[#allocation4 + $0x40] sm:$0xff]
      %v3887 = vld [vmem:[#allocation4 + $0x48] sm:$0xff]
      %v3888 = vld [vmem:[#allocation4 + $0x50] sm:$0xff]
      %v3889 = vld [vmem:[#allocation4 + $0x58] sm:$0xff]
      %v3890 = vld [vmem:[#allocation4 + $0x60] sm:$0xff]
      %v3891 = vld [vmem:[#allocation4 + $0x68] sm:$0xff]
      %v3892 = vld [vmem:[#allocation4 + $0x70] sm:$0xff]
      %v3893 = vld [vmem:[#allocation4 + $0x78] sm:$0xff]
      %v3894 = vld [vmem:[#allocation4 + $0x80] sm:$0xff]
      %v3895 = vld [vmem:[#allocation4 + $0x88] sm:$0xff]
      %v3896 = vld [vmem:[#allocation4 + $0x90] sm:$0xff]
      %v3897 = vld [vmem:[#allocation4 + $0x98] sm:$0xff]
      %v3898 = vld [vmem:[#allocation4 + $0xa0] sm:$0xff]
      %v3899 = vld [vmem:[#allocation4 + $0xa8] sm:$0xff]
      %v3900 = vld [vmem:[#allocation4 + $0xb0] sm:$0xff]
      %v3901 = vld [vmem:[#allocation4 + $0xb8] sm:$0xff]
      %v3902 = vadd.f32 %v3878, %v3784
      %v3903 = vadd.f32 %v3879, %v3787
      %v3904 = vadd.f32 %v3880, %v3792
      %v3905 = vadd.f32 %v3881, %v3795
      %v3906 = vadd.f32 %v3882, %v3800
      %v3907 = vadd.f32 %v3883, %v3803
      %v3908 = vadd.f32 %v3884, %v3808
      %v3909 = vadd.f32 %v3885, %v3811
      %v3910 = vadd.f32 %v3886, %v3816
      %v3911 = vadd.f32 %v3887, %v3819
      %v3912 = vadd.f32 %v3888, %v3824
      %v3913 = vadd.f32 %v3889, %v3827
      %v3914 = vadd.f32 %v3890, %v3832
      %v3915 = vadd.f32 %v3891, %v3835
      %v3916 = vadd.f32 %v3892, %v3840
      %v3917 = vadd.f32 %v3893, %v3843
      %v3918 = vadd.f32 %v3894, %v3848
      %v3919 = vadd.f32 %v3895, %v3851
      %v3920 = vadd.f32 %v3896, %v3856
      %v3921 = vadd.f32 %v3897, %v3859
      %v3922 = vadd.f32 %v3898, %v3864
      %v3923 = vadd.f32 %v3899, %v3867
      %v3924 = vadd.f32 %v3900, %v3872
      %v3925 = vadd.f32 %v3901, %v3875
      %3926 = vst [vmem:[#allocation4] sm:$0xff] %v3902
      %3927 = vst [vmem:[#allocation4 + $0x8] sm:$0xff] %v3903
      %3928 = vst [vmem:[#allocation4 + $0x10] sm:$0xff] %v3904
      %3929 = vst [vmem:[#allocation4 + $0x18] sm:$0xff] %v3905
      %3930 = vst [vmem:[#allocation4 + $0x20] sm:$0xff] %v3906
      %3931 = vst [vmem:[#allocation4 + $0x28] sm:$0xff] %v3907
      %3932 = vst [vmem:[#allocation4 + $0x30] sm:$0xff] %v3908
      %3933 = vst [vmem:[#allocation4 + $0x38] sm:$0xff] %v3909
      %3934 = vst [vmem:[#allocation4 + $0x40] sm:$0xff] %v3910
      %3935 = vst [vmem:[#allocation4 + $0x48] sm:$0xff] %v3911
      %3936 = vst [vmem:[#allocation4 + $0x50] sm:$0xff] %v3912
      %3937 = vst [vmem:[#allocation4 + $0x58] sm:$0xff] %v3913
      %3938 = vst [vmem:[#allocation4 + $0x60] sm:$0xff] %v3914
      %3939 = vst [vmem:[#allocation4 + $0x68] sm:$0xff] %v3915
      %3940 = vst [vmem:[#allocation4 + $0x70] sm:$0xff] %v3916
      %3941 = vst [vmem:[#allocation4 + $0x78] sm:$0xff] %v3917
      %3942 = vst [vmem:[#allocation4 + $0x80] sm:$0xff] %v3918
      %3943 = vst [vmem:[#allocation4 + $0x88] sm:$0xff] %v3919
      %3944 = vst [vmem:[#allocation4 + $0x90] sm:$0xff] %v3920
      %3945 = vst [vmem:[#allocation4 + $0x98] sm:$0xff] %v3921
      %3946 = vst [vmem:[#allocation4 + $0xa0] sm:$0xff] %v3922
      %3947 = vst [vmem:[#allocation4 + $0xa8] sm:$0xff] %v3923
      %3948 = vst [vmem:[#allocation4 + $0xb0] sm:$0xff] %v3924
      %3949 = vst [vmem:[#allocation4 + $0xb8] sm:$0xff] %v3925
      %s3950 = scalar_lea.vmem %s3, 192
      %v3951 = vld [vmem:[%s3950] sm:$0xf]
      %v3952 = vld [vmem:[%s3950 + $0x4] sm:$0xf]
      %v3953 = vld [vmem:[%s3950 + $0x8] sm:$0xf]
      %v3954 = vld [vmem:[%s3950 + $0xc] sm:$0xf]
      %v3955 = vld [vmem:[%s3950 + $0x10] sm:$0xf]
      %v3956 = vld [vmem:[%s3950 + $0x14] sm:$0xf]
      %v3957 = vld [vmem:[%s3950 + $0x18] sm:$0xf]
      %v3958 = vld [vmem:[%s3950 + $0x1c] sm:$0xf]
      %v3959 = vld [vmem:[%s3950 + $0x20] sm:$0xf]
      %v3960 = vld [vmem:[%s3950 + $0x24] sm:$0xf]
      %v3961 = vld [vmem:[%s3950 + $0x28] sm:$0xf]
      %v3962 = vld [vmem:[%s3950 + $0x2c] sm:$0xf]
      %v3963 = vld [vmem:[%s3950 + $0x30] sm:$0xf]
      %v3964 = vld [vmem:[%s3950 + $0x34] sm:$0xf]
      %v3965 = vld [vmem:[%s3950 + $0x38] sm:$0xf]
      %v3966 = vld [vmem:[%s3950 + $0x3c] sm:$0xf]
      %v3968 = vunpack.c.l.b16 %v2973
      %v3969 = vpack.c.b16 %v3968, %v3284
      %v3987 = vunpack.c.l.b16 %v3951
      %v3988 = vunpack.c.l.b16 %v3952
      %v3989 = vunpack.c.l.b16 %v3953
      %v3990 = vunpack.c.l.b16 %v3954
      %v3991 = vunpack.c.l.b16 %v3955
      %v3992 = vunpack.c.l.b16 %v3956
      %v3993 = vunpack.c.l.b16 %v3957
      %v3994 = vunpack.c.l.b16 %v3958
      %v3995 = vunpack.c.l.b16 %v3959
      %v3996 = vunpack.c.l.b16 %v3960
      %v3997 = vunpack.c.l.b16 %v3961
      %v3998 = vunpack.c.l.b16 %v3962
      %v3999 = vunpack.c.l.b16 %v3963
      %v4000 = vunpack.c.l.b16 %v3964
      %v4001 = vunpack.c.l.b16 %v3965
      %v4002 = vunpack.c.l.b16 %v3966
      %v4003 = vpack.c.b16 %v3988, %v3987
      %v4004 = vpack.c.b16 %v3990, %v3989
      %v4005 = vpack.c.b16 %v3992, %v3991
      %v4006 = vpack.c.b16 %v3994, %v3993
      %v4007 = vpack.c.b16 %v3996, %v3995
      %v4008 = vpack.c.b16 %v3998, %v3997
      %v4009 = vpack.c.b16 %v4000, %v3999
      %v4010 = vpack.c.b16 %v4002, %v4001
      %4019 = vmatprep.subr.bf16.mxu0 0
      %4020 = vmatpush1.bf16.msra.mxu0 %v4010
      %4021 = vmatprep.subr.bf16.mxu0 0
      %4022 = vmatpush1.bf16.msra.mxu0 %v4009
      %4023 = vmatprep.subr.bf16.mxu0 0
      %4024 = vmatpush1.bf16.msra.mxu0 %v4008
      %4025 = vmatprep.subr.bf16.mxu0 0
      %4026 = vmatpush1.bf16.msra.mxu0 %v4007
      %4027 = vmatprep.subr.bf16.mxu0 0
      %4028 = vmatpush1.bf16.msra.mxu0 %v4006
      %4029 = vmatprep.subr.bf16.mxu0 0
      %4030 = vmatpush1.bf16.msra.mxu0 %v4005
      %4031 = vmatprep.subr.bf16.mxu0 0
      %4032 = vmatpush1.bf16.msra.mxu0 %v4004
      %4033 = vmatprep.subr.bf16.mxu0 0
      %4034 = vmatpush1.bf16.msra.mxu0 %v4003
      %4035 = vmatprep.subr.bf16.mxu0 0
      %4036 = vmatpush2.bf16.msra.mxu0 0
      %4037 = vmatprep.subr.bf16.mxu0 0
      %4038 = vmatpush2.bf16.msra.mxu0 0
      %4039 = vmatprep.subr.bf16.mxu0 0
      %4040 = vmatpush2.bf16.msra.mxu0 0
      %4041 = vmatprep.subr.bf16.mxu0 0
      %4042 = vmatpush2.bf16.msra.mxu0 0
      %4043 = vmatprep.subr.bf16.mxu0 0
      %4044 = vmatpush2.bf16.msra.mxu0 0
      %4045 = vmatprep.subr.bf16.mxu0 0
      %4046 = vmatpush2.bf16.msra.mxu0 0
      %4047 = vmatprep.subr.bf16.mxu0 0
      %4048 = vmatpush2.bf16.msra.mxu0 0
      %4049 = vmatprep.subr.bf16.mxu0 0
      %4050 = vmatpush2.bf16.msra.mxu0 0
      %4051 = vmatprep.mubr.bf16.mxu0 0
      %4052 = vmatmul.mubr.bf16.gmra.mxu0 %v3042
      %v4053 = vpop.f32.mrf.mxu0
      %v4054 = vadd.f32 0.0, %v4053
      %v4055 = vpop.f32.mrf.mxu0
      %v4056 = vpop.f32.mrf.mxu0
      %v4057 = vadd.f32 0.0, %v4056
      %v4058 = vpop.f32.mrf.mxu0
      %4059 = vmatprep.mubr.bf16.mxu0 0
      %4060 = vmatmul.mubr.bf16.gmra.mxu0 %v3043
      %v4061 = vpop.f32.mrf.mxu0
      %v4062 = vadd.f32 0.0, %v4061
      %v4063 = vpop.f32.mrf.mxu0
      %v4064 = vpop.f32.mrf.mxu0
      %v4065 = vadd.f32 0.0, %v4064
      %v4066 = vpop.f32.mrf.mxu0
      %4067 = vmatprep.mubr.bf16.mxu0 0
      %4068 = vmatmul.mubr.bf16.gmra.mxu0 %v3044
      %v4069 = vpop.f32.mrf.mxu0
      %v4070 = vadd.f32 0.0, %v4069
      %v4071 = vpop.f32.mrf.mxu0
      %v4072 = vpop.f32.mrf.mxu0
      %v4073 = vadd.f32 0.0, %v4072
      %v4074 = vpop.f32.mrf.mxu0
      %4075 = vmatprep.mubr.bf16.mxu0 0
      %4076 = vmatmul.mubr.bf16.gmra.mxu0 %v3045
      %v4077 = vpop.f32.mrf.mxu0
      %v4078 = vadd.f32 0.0, %v4077
      %v4079 = vpop.f32.mrf.mxu0
      %v4080 = vpop.f32.mrf.mxu0
      %v4081 = vadd.f32 0.0, %v4080
      %v4082 = vpop.f32.mrf.mxu0
      %4083 = vmatprep.mubr.bf16.mxu0 0
      %4084 = vmatmul.mubr.bf16.gmra.mxu0 %v3046
      %v4085 = vpop.f32.mrf.mxu0
      %v4086 = vadd.f32 0.0, %v4085
      %v4087 = vpop.f32.mrf.mxu0
      %v4088 = vpop.f32.mrf.mxu0
      %v4089 = vadd.f32 0.0, %v4088
      %v4090 = vpop.f32.mrf.mxu0
      %4091 = vmatprep.mubr.bf16.mxu0 0
      %4092 = vmatmul.mubr.bf16.gmra.mxu0 %v3047
      %v4093 = vpop.f32.mrf.mxu0
      %v4094 = vadd.f32 0.0, %v4093
      %v4095 = vpop.f32.mrf.mxu0
      %v4096 = vpop.f32.mrf.mxu0
      %v4097 = vadd.f32 0.0, %v4096
      %v4098 = vpop.f32.mrf.mxu0
      %4099 = vmatprep.mubr.bf16.mxu0 0
      %4100 = vmatmul.mubr.bf16.gmra.mxu0 %v3048
      %v4101 = vpop.f32.mrf.mxu0
      %v4102 = vadd.f32 0.0, %v4101
      %v4103 = vpop.f32.mrf.mxu0
      %v4104 = vpop.f32.mrf.mxu0
      %v4105 = vadd.f32 0.0, %v4104
      %v4106 = vpop.f32.mrf.mxu0
      %4107 = vmatprep.mubr.bf16.mxu0 0
      %4108 = vmatmul.mubr.bf16.gmra.mxu0 %v3049
      %v4109 = vpop.f32.mrf.mxu0
      %v4110 = vadd.f32 0.0, %v4109
      %v4111 = vpop.f32.mrf.mxu0
      %v4112 = vpop.f32.mrf.mxu0
      %v4113 = vadd.f32 0.0, %v4112
      %v4114 = vpop.f32.mrf.mxu0
      %4115 = vmatprep.mubr.bf16.mxu0 0
      %4116 = vmatmul.mubr.bf16.gmra.mxu0 %v3050
      %v4117 = vpop.f32.mrf.mxu0
      %v4118 = vadd.f32 0.0, %v4117
      %v4119 = vpop.f32.mrf.mxu0
      %v4120 = vpop.f32.mrf.mxu0
      %v4121 = vadd.f32 0.0, %v4120
      %v4122 = vpop.f32.mrf.mxu0
      %4123 = vmatprep.mubr.bf16.mxu0 0
      %4124 = vmatmul.mubr.bf16.gmra.mxu0 %v3051
      %v4125 = vpop.f32.mrf.mxu0
      %v4126 = vadd.f32 0.0, %v4125
      %v4127 = vpop.f32.mrf.mxu0
      %v4128 = vpop.f32.mrf.mxu0
      %v4129 = vadd.f32 0.0, %v4128
      %v4130 = vpop.f32.mrf.mxu0
      %4131 = vmatprep.mubr.bf16.mxu0 0
      %4132 = vmatmul.mubr.bf16.gmra.mxu0 %v3052
      %v4133 = vpop.f32.mrf.mxu0
      %v4134 = vadd.f32 0.0, %v4133
      %v4135 = vpop.f32.mrf.mxu0
      %v4136 = vpop.f32.mrf.mxu0
      %v4137 = vadd.f32 0.0, %v4136
      %v4138 = vpop.f32.mrf.mxu0
      %4139 = vmatprep.mubr.bf16.mxu0 0
      %4140 = vmatmul.mubr.bf16.gmra.mxu0 %v3969
      %v4141 = vpop.f32.mrf.mxu0
      %v4142 = vadd.f32 0.0, %v4141
      %v4143 = vpop.f32.mrf.mxu0
      %v4144 = vpop.f32.mrf.mxu0
      %v4145 = vadd.f32 0.0, %v4144
      %v4146 = vpop.f32.mrf.mxu0
      %4147 = vdwg.mxu0
      %v4148 = vld [vmem:[#allocation4] sm:$0xff]
      %v4149 = vld [vmem:[#allocation4 + $0x8] sm:$0xff]
      %v4150 = vld [vmem:[#allocation4 + $0x10] sm:$0xff]
      %v4151 = vld [vmem:[#allocation4 + $0x18] sm:$0xff]
      %v4152 = vld [vmem:[#allocation4 + $0x20] sm:$0xff]
      %v4153 = vld [vmem:[#allocation4 + $0x28] sm:$0xff]
      %v4154 = vld [vmem:[#allocation4 + $0x30] sm:$0xff]
      %v4155 = vld [vmem:[#allocation4 + $0x38] sm:$0xff]
      %v4156 = vld [vmem:[#allocation4 + $0x40] sm:$0xff]
      %v4157 = vld [vmem:[#allocation4 + $0x48] sm:$0xff]
      %v4158 = vld [vmem:[#allocation4 + $0x50] sm:$0xff]
      %v4159 = vld [vmem:[#allocation4 + $0x58] sm:$0xff]
      %v4160 = vld [vmem:[#allocation4 + $0x60] sm:$0xff]
      %v4161 = vld [vmem:[#allocation4 + $0x68] sm:$0xff]
      %v4162 = vld [vmem:[#allocation4 + $0x70] sm:$0xff]
      %v4163 = vld [vmem:[#allocation4 + $0x78] sm:$0xff]
      %v4164 = vld [vmem:[#allocation4 + $0x80] sm:$0xff]
      %v4165 = vld [vmem:[#allocation4 + $0x88] sm:$0xff]
      %v4166 = vld [vmem:[#allocation4 + $0x90] sm:$0xff]
      %v4167 = vld [vmem:[#allocation4 + $0x98] sm:$0xff]
      %v4168 = vld [vmem:[#allocation4 + $0xa0] sm:$0xff]
      %v4169 = vld [vmem:[#allocation4 + $0xa8] sm:$0xff]
      %v4170 = vld [vmem:[#allocation4 + $0xb0] sm:$0xff]
      %v4171 = vld [vmem:[#allocation4 + $0xb8] sm:$0xff]
      %v4172 = vadd.f32 %v4148, %v4054
      %v4173 = vadd.f32 %v4149, %v4057
      %v4174 = vadd.f32 %v4150, %v4062
      %v4175 = vadd.f32 %v4151, %v4065
      %v4176 = vadd.f32 %v4152, %v4070
      %v4177 = vadd.f32 %v4153, %v4073
      %v4178 = vadd.f32 %v4154, %v4078
      %v4179 = vadd.f32 %v4155, %v4081
      %v4180 = vadd.f32 %v4156, %v4086
      %v4181 = vadd.f32 %v4157, %v4089
      %v4182 = vadd.f32 %v4158, %v4094
      %v4183 = vadd.f32 %v4159, %v4097
      %v4184 = vadd.f32 %v4160, %v4102
      %v4185 = vadd.f32 %v4161, %v4105
      %v4186 = vadd.f32 %v4162, %v4110
      %v4187 = vadd.f32 %v4163, %v4113
      %v4188 = vadd.f32 %v4164, %v4118
      %v4189 = vadd.f32 %v4165, %v4121
      %v4190 = vadd.f32 %v4166, %v4126
      %v4191 = vadd.f32 %v4167, %v4129
      %v4192 = vadd.f32 %v4168, %v4134
      %v4193 = vadd.f32 %v4169, %v4137
      %v4194 = vadd.f32 %v4170, %v4142
      %v4195 = vadd.f32 %v4171, %v4145
      %4196 = vst [vmem:[#allocation4] sm:$0xff] %v4172
      %4197 = vst [vmem:[#allocation4 + $0x8] sm:$0xff] %v4173
      %4198 = vst [vmem:[#allocation4 + $0x10] sm:$0xff] %v4174
      %4199 = vst [vmem:[#allocation4 + $0x18] sm:$0xff] %v4175
      %4200 = vst [vmem:[#allocation4 + $0x20] sm:$0xff] %v4176
      %4201 = vst [vmem:[#allocation4 + $0x28] sm:$0xff] %v4177
      %4202 = vst [vmem:[#allocation4 + $0x30] sm:$0xff] %v4178
      %4203 = vst [vmem:[#allocation4 + $0x38] sm:$0xff] %v4179
      %4204 = vst [vmem:[#allocation4 + $0x40] sm:$0xff] %v4180
      %4205 = vst [vmem:[#allocation4 + $0x48] sm:$0xff] %v4181
      %4206 = vst [vmem:[#allocation4 + $0x50] sm:$0xff] %v4182
      %4207 = vst [vmem:[#allocation4 + $0x58] sm:$0xff] %v4183
      %4208 = vst [vmem:[#allocation4 + $0x60] sm:$0xff] %v4184
      %4209 = vst [vmem:[#allocation4 + $0x68] sm:$0xff] %v4185
      %4210 = vst [vmem:[#allocation4 + $0x70] sm:$0xff] %v4186
      %4211 = vst [vmem:[#allocation4 + $0x78] sm:$0xff] %v4187
      %4212 = vst [vmem:[#allocation4 + $0x80] sm:$0xff] %v4188
      %4213 = vst [vmem:[#allocation4 + $0x88] sm:$0xff] %v4189
      %4214 = vst [vmem:[#allocation4 + $0x90] sm:$0xff] %v4190
      %4215 = vst [vmem:[#allocation4 + $0x98] sm:$0xff] %v4191
      %4216 = vst [vmem:[#allocation4 + $0xa0] sm:$0xff] %v4192
      %4217 = vst [vmem:[#allocation4 + $0xa8] sm:$0xff] %v4193
      %4218 = vst [vmem:[#allocation4 + $0xb0] sm:$0xff] %v4194
      %4219 = vst [vmem:[#allocation4 + $0xb8] sm:$0xff] %v4195
      %s4220 = scalar_lea.vmem %s3, 256
      %v4221 = vld [vmem:[%s4220] sm:$0xf]
      %v4222 = vld [vmem:[%s4220 + $0x4] sm:$0xf]
      %v4223 = vld [vmem:[%s4220 + $0x8] sm:$0xf]
      %v4224 = vld [vmem:[%s4220 + $0xc] sm:$0xf]
      %v4225 = vld [vmem:[%s4220 + $0x10] sm:$0xf]
      %v4226 = vld [vmem:[%s4220 + $0x14] sm:$0xf]
      %v4227 = vld [vmem:[%s4220 + $0x18] sm:$0xf]
      %v4228 = vld [vmem:[%s4220 + $0x1c] sm:$0xf]
      %v4229 = vld [vmem:[%s4220 + $0x20] sm:$0xf]
      %v4230 = vld [vmem:[%s4220 + $0x24] sm:$0xf]
      %v4231 = vld [vmem:[%s4220 + $0x28] sm:$0xf]
      %v4232 = vld [vmem:[%s4220 + $0x2c] sm:$0xf]
      %v4233 = vld [vmem:[%s4220 + $0x30] sm:$0xf]
      %v4234 = vld [vmem:[%s4220 + $0x34] sm:$0xf]
      %v4235 = vld [vmem:[%s4220 + $0x38] sm:$0xf]
      %v4236 = vld [vmem:[%s4220 + $0x3c] sm:$0xf]
      %v4238 = vunpack.c.l.b16 %v2974
      %v4239 = vpack.c.b16 %v4238, %v4238
      %v4241 = vshll.u32 %v3969, 16
      %v4243 = vrot.slane %v4241, 1
      %v4244 = vsel %vm556, %v3380, %v4243
      %v4245 = vshrl.u32 %v3969, 16
      %v4247 = vor.u32 %v4245, %v4243
      %v4249 = vshll.u32 %v4239, 16
      %v4251 = vrot.slane %v4249, 1
      %v4252 = vsel %vm556, %v4247, %v4251
      %v4271 = vunpack.c.l.b16 %v4221
      %v4272 = vunpack.c.l.b16 %v4222
      %v4273 = vunpack.c.l.b16 %v4223
      %v4274 = vunpack.c.l.b16 %v4224
      %v4275 = vunpack.c.l.b16 %v4225
      %v4276 = vunpack.c.l.b16 %v4226
      %v4277 = vunpack.c.l.b16 %v4227
      %v4278 = vunpack.c.l.b16 %v4228
      %v4279 = vunpack.c.l.b16 %v4229
      %v4280 = vunpack.c.l.b16 %v4230
      %v4281 = vunpack.c.l.b16 %v4231
      %v4282 = vunpack.c.l.b16 %v4232
      %v4283 = vunpack.c.l.b16 %v4233
      %v4284 = vunpack.c.l.b16 %v4234
      %v4285 = vunpack.c.l.b16 %v4235
      %v4286 = vunpack.c.l.b16 %v4236
      %v4287 = vpack.c.b16 %v4272, %v4271
      %v4288 = vpack.c.b16 %v4274, %v4273
      %v4289 = vpack.c.b16 %v4276, %v4275
      %v4290 = vpack.c.b16 %v4278, %v4277
      %v4291 = vpack.c.b16 %v4280, %v4279
      %v4292 = vpack.c.b16 %v4282, %v4281
      %v4293 = vpack.c.b16 %v4284, %v4283
      %v4294 = vpack.c.b16 %v4286, %v4285
      %4303 = vmatprep.subr.bf16.mxu0 0
      %4304 = vmatpush1.bf16.msra.mxu0 %v4294
      %4305 = vmatprep.subr.bf16.mxu0 0
      %4306 = vmatpush1.bf16.msra.mxu0 %v4293
      %4307 = vmatprep.subr.bf16.mxu0 0
      %4308 = vmatpush1.bf16.msra.mxu0 %v4292
      %4309 = vmatprep.subr.bf16.mxu0 0
      %4310 = vmatpush1.bf16.msra.mxu0 %v4291
      %4311 = vmatprep.subr.bf16.mxu0 0
      %4312 = vmatpush1.bf16.msra.mxu0 %v4290
      %4313 = vmatprep.subr.bf16.mxu0 0
      %4314 = vmatpush1.bf16.msra.mxu0 %v4289
      %4315 = vmatprep.subr.bf16.mxu0 0
      %4316 = vmatpush1.bf16.msra.mxu0 %v4288
      %4317 = vmatprep.subr.bf16.mxu0 0
      %4318 = vmatpush1.bf16.msra.mxu0 %v4287
      %4319 = vmatprep.subr.bf16.mxu0 0
      %4320 = vmatpush2.bf16.msra.mxu0 0
      %4321 = vmatprep.subr.bf16.mxu0 0
      %4322 = vmatpush2.bf16.msra.mxu0 0
      %4323 = vmatprep.subr.bf16.mxu0 0
      %4324 = vmatpush2.bf16.msra.mxu0 0
      %4325 = vmatprep.subr.bf16.mxu0 0
      %4326 = vmatpush2.bf16.msra.mxu0 0
      %4327 = vmatprep.subr.bf16.mxu0 0
      %4328 = vmatpush2.bf16.msra.mxu0 0
      %4329 = vmatprep.subr.bf16.mxu0 0
      %4330 = vmatpush2.bf16.msra.mxu0 0
      %4331 = vmatprep.subr.bf16.mxu0 0
      %4332 = vmatpush2.bf16.msra.mxu0 0
      %4333 = vmatprep.subr.bf16.mxu0 0
      %4334 = vmatpush2.bf16.msra.mxu0 0
      %4335 = vmatprep.mubr.bf16.mxu0 0
      %4336 = vmatmul.mubr.bf16.gmra.mxu0 %v3305
      %v4337 = vpop.f32.mrf.mxu0
      %v4338 = vadd.f32 0.0, %v4337
      %v4339 = vpop.f32.mrf.mxu0
      %v4340 = vpop.f32.mrf.mxu0
      %v4341 = vadd.f32 0.0, %v4340
      %v4342 = vpop.f32.mrf.mxu0
      %4343 = vmatprep.mubr.bf16.mxu0 0
      %4344 = vmatmul.mubr.bf16.gmra.mxu0 %v3313
      %v4345 = vpop.f32.mrf.mxu0
      %v4346 = vadd.f32 0.0, %v4345
      %v4347 = vpop.f32.mrf.mxu0
      %v4348 = vpop.f32.mrf.mxu0
      %v4349 = vadd.f32 0.0, %v4348
      %v4350 = vpop.f32.mrf.mxu0
      %4351 = vmatprep.mubr.bf16.mxu0 0
      %4352 = vmatmul.mubr.bf16.gmra.mxu0 %v3321
      %v4353 = vpop.f32.mrf.mxu0
      %v4354 = vadd.f32 0.0, %v4353
      %v4355 = vpop.f32.mrf.mxu0
      %v4356 = vpop.f32.mrf.mxu0
      %v4357 = vadd.f32 0.0, %v4356
      %v4358 = vpop.f32.mrf.mxu0
      %4359 = vmatprep.mubr.bf16.mxu0 0
      %4360 = vmatmul.mubr.bf16.gmra.mxu0 %v3329
      %v4361 = vpop.f32.mrf.mxu0
      %v4362 = vadd.f32 0.0, %v4361
      %v4363 = vpop.f32.mrf.mxu0
      %v4364 = vpop.f32.mrf.mxu0
      %v4365 = vadd.f32 0.0, %v4364
      %v4366 = vpop.f32.mrf.mxu0
      %4367 = vmatprep.mubr.bf16.mxu0 0
      %4368 = vmatmul.mubr.bf16.gmra.mxu0 %v3337
      %v4369 = vpop.f32.mrf.mxu0
      %v4370 = vadd.f32 0.0, %v4369
      %v4371 = vpop.f32.mrf.mxu0
      %v4372 = vpop.f32.mrf.mxu0
      %v4373 = vadd.f32 0.0, %v4372
      %v4374 = vpop.f32.mrf.mxu0
      %4375 = vmatprep.mubr.bf16.mxu0 0
      %4376 = vmatmul.mubr.bf16.gmra.mxu0 %v3345
      %v4377 = vpop.f32.mrf.mxu0
      %v4378 = vadd.f32 0.0, %v4377
      %v4379 = vpop.f32.mrf.mxu0
      %v4380 = vpop.f32.mrf.mxu0
      %v4381 = vadd.f32 0.0, %v4380
      %v4382 = vpop.f32.mrf.mxu0
      %4383 = vmatprep.mubr.bf16.mxu0 0
      %4384 = vmatmul.mubr.bf16.gmra.mxu0 %v3353
      %v4385 = vpop.f32.mrf.mxu0
      %v4386 = vadd.f32 0.0, %v4385
      %v4387 = vpop.f32.mrf.mxu0
      %v4388 = vpop.f32.mrf.mxu0
      %v4389 = vadd.f32 0.0, %v4388
      %v4390 = vpop.f32.mrf.mxu0
      %4391 = vmatprep.mubr.bf16.mxu0 0
      %4392 = vmatmul.mubr.bf16.gmra.mxu0 %v3361
      %v4393 = vpop.f32.mrf.mxu0
      %v4394 = vadd.f32 0.0, %v4393
      %v4395 = vpop.f32.mrf.mxu0
      %v4396 = vpop.f32.mrf.mxu0
      %v4397 = vadd.f32 0.0, %v4396
      %v4398 = vpop.f32.mrf.mxu0
      %4399 = vmatprep.mubr.bf16.mxu0 0
      %4400 = vmatmul.mubr.bf16.gmra.mxu0 %v3369
      %v4401 = vpop.f32.mrf.mxu0
      %v4402 = vadd.f32 0.0, %v4401
      %v4403 = vpop.f32.mrf.mxu0
      %v4404 = vpop.f32.mrf.mxu0
      %v4405 = vadd.f32 0.0, %v4404
      %v4406 = vpop.f32.mrf.mxu0
      %4407 = vmatprep.mubr.bf16.mxu0 0
      %4408 = vmatmul.mubr.bf16.gmra.mxu0 %v3377
      %v4409 = vpop.f32.mrf.mxu0
      %v4410 = vadd.f32 0.0, %v4409
      %v4411 = vpop.f32.mrf.mxu0
      %v4412 = vpop.f32.mrf.mxu0
      %v4413 = vadd.f32 0.0, %v4412
      %v4414 = vpop.f32.mrf.mxu0
      %4415 = vmatprep.mubr.bf16.mxu0 0
      %4416 = vmatmul.mubr.bf16.gmra.mxu0 %v4244
      %v4417 = vpop.f32.mrf.mxu0
      %v4418 = vadd.f32 0.0, %v4417
      %v4419 = vpop.f32.mrf.mxu0
      %v4420 = vpop.f32.mrf.mxu0
      %v4421 = vadd.f32 0.0, %v4420
      %v4422 = vpop.f32.mrf.mxu0
      %4423 = vmatprep.mubr.bf16.mxu0 0
      %4424 = vmatmul.mubr.bf16.gmra.mxu0 %v4252
      %v4425 = vpop.f32.mrf.mxu0
      %v4426 = vadd.f32 0.0, %v4425
      %v4427 = vpop.f32.mrf.mxu0
      %v4428 = vpop.f32.mrf.mxu0
      %v4429 = vadd.f32 0.0, %v4428
      %v4430 = vpop.f32.mrf.mxu0
      %4431 = vdwg.mxu0
      %v4432 = vld [vmem:[#allocation4] sm:$0xff]
      %v4433 = vld [vmem:[#allocation4 + $0x8] sm:$0xff]
      %v4434 = vld [vmem:[#allocation4 + $0x10] sm:$0xff]
      %v4435 = vld [vmem:[#allocation4 + $0x18] sm:$0xff]
      %v4436 = vld [vmem:[#allocation4 + $0x20] sm:$0xff]
      %v4437 = vld [vmem:[#allocation4 + $0x28] sm:$0xff]
      %v4438 = vld [vmem:[#allocation4 + $0x30] sm:$0xff]
      %v4439 = vld [vmem:[#allocation4 + $0x38] sm:$0xff]
      %v4440 = vld [vmem:[#allocation4 + $0x40] sm:$0xff]
      %v4441 = vld [vmem:[#allocation4 + $0x48] sm:$0xff]
      %v4442 = vld [vmem:[#allocation4 + $0x50] sm:$0xff]
      %v4443 = vld [vmem:[#allocation4 + $0x58] sm:$0xff]
      %v4444 = vld [vmem:[#allocation4 + $0x60] sm:$0xff]
      %v4445 = vld [vmem:[#allocation4 + $0x68] sm:$0xff]
      %v4446 = vld [vmem:[#allocation4 + $0x70] sm:$0xff]
      %v4447 = vld [vmem:[#allocation4 + $0x78] sm:$0xff]
      %v4448 = vld [vmem:[#allocation4 + $0x80] sm:$0xff]
      %v4449 = vld [vmem:[#allocation4 + $0x88] sm:$0xff]
      %v4450 = vld [vmem:[#allocation4 + $0x90] sm:$0xff]
      %v4451 = vld [vmem:[#allocation4 + $0x98] sm:$0xff]
      %v4452 = vld [vmem:[#allocation4 + $0xa0] sm:$0xff]
      %v4453 = vld [vmem:[#allocation4 + $0xa8] sm:$0xff]
      %v4454 = vld [vmem:[#allocation4 + $0xb0] sm:$0xff]
      %v4455 = vld [vmem:[#allocation4 + $0xb8] sm:$0xff]
      %v4456 = vadd.f32 %v4432, %v4338
      %v4457 = vadd.f32 %v4433, %v4341
      %v4458 = vadd.f32 %v4434, %v4346
      %v4459 = vadd.f32 %v4435, %v4349
      %v4460 = vadd.f32 %v4436, %v4354
      %v4461 = vadd.f32 %v4437, %v4357
      %v4462 = vadd.f32 %v4438, %v4362
      %v4463 = vadd.f32 %v4439, %v4365
      %v4464 = vadd.f32 %v4440, %v4370
      %v4465 = vadd.f32 %v4441, %v4373
      %v4466 = vadd.f32 %v4442, %v4378
      %v4467 = vadd.f32 %v4443, %v4381
      %v4468 = vadd.f32 %v4444, %v4386
      %v4469 = vadd.f32 %v4445, %v4389
      %v4470 = vadd.f32 %v4446, %v4394
      %v4471 = vadd.f32 %v4447, %v4397
      %v4472 = vadd.f32 %v4448, %v4402
      %v4473 = vadd.f32 %v4449, %v4405
      %v4474 = vadd.f32 %v4450, %v4410
      %v4475 = vadd.f32 %v4451, %v4413
      %v4476 = vadd.f32 %v4452, %v4418
      %v4477 = vadd.f32 %v4453, %v4421
      %v4478 = vadd.f32 %v4454, %v4426
      %v4479 = vadd.f32 %v4455, %v4429
      %4480 = vst [vmem:[#allocation4] sm:$0xff] %v4456
      %4481 = vst [vmem:[#allocation4 + $0x8] sm:$0xff] %v4457
      %4482 = vst [vmem:[#allocation4 + $0x10] sm:$0xff] %v4458
      %4483 = vst [vmem:[#allocation4 + $0x18] sm:$0xff] %v4459
      %4484 = vst [vmem:[#allocation4 + $0x20] sm:$0xff] %v4460
      %4485 = vst [vmem:[#allocation4 + $0x28] sm:$0xff] %v4461
      %4486 = vst [vmem:[#allocation4 + $0x30] sm:$0xff] %v4462
      %4487 = vst [vmem:[#allocation4 + $0x38] sm:$0xff] %v4463
      %4488 = vst [vmem:[#allocation4 + $0x40] sm:$0xff] %v4464
      %4489 = vst [vmem:[#allocation4 + $0x48] sm:$0xff] %v4465
      %4490 = vst [vmem:[#allocation4 + $0x50] sm:$0xff] %v4466
      %4491 = vst [vmem:[#allocation4 + $0x58] sm:$0xff] %v4467
      %4492 = vst [vmem:[#allocation4 + $0x60] sm:$0xff] %v4468
      %4493 = vst [vmem:[#allocation4 + $0x68] sm:$0xff] %v4469
      %4494 = vst [vmem:[#allocation4 + $0x70] sm:$0xff] %v4470
      %4495 = vst [vmem:[#allocation4 + $0x78] sm:$0xff] %v4471
      %4496 = vst [vmem:[#allocation4 + $0x80] sm:$0xff] %v4472
      %4497 = vst [vmem:[#allocation4 + $0x88] sm:$0xff] %v4473
      %4498 = vst [vmem:[#allocation4 + $0x90] sm:$0xff] %v4474
      %4499 = vst [vmem:[#allocation4 + $0x98] sm:$0xff] %v4475
      %4500 = vst [vmem:[#allocation4 + $0xa0] sm:$0xff] %v4476
      %4501 = vst [vmem:[#allocation4 + $0xa8] sm:$0xff] %v4477
      %4502 = vst [vmem:[#allocation4 + $0xb0] sm:$0xff] %v4478
      %4503 = vst [vmem:[#allocation4 + $0xb8] sm:$0xff] %v4479
      %s4504 = scalar_lea.vmem %s3, 320
      %v4505 = vld [vmem:[%s4504] sm:$0xf]
      %v4506 = vld [vmem:[%s4504 + $0x4] sm:$0xf]
      %v4507 = vld [vmem:[%s4504 + $0x8] sm:$0xf]
      %v4508 = vld [vmem:[%s4504 + $0xc] sm:$0xf]
      %v4509 = vld [vmem:[%s4504 + $0x10] sm:$0xf]
      %v4510 = vld [vmem:[%s4504 + $0x14] sm:$0xf]
      %v4511 = vld [vmem:[%s4504 + $0x18] sm:$0xf]
      %v4512 = vld [vmem:[%s4504 + $0x1c] sm:$0xf]
      %v4513 = vld [vmem:[%s4504 + $0x20] sm:$0xf]
      %v4514 = vld [vmem:[%s4504 + $0x24] sm:$0xf]
      %v4515 = vld [vmem:[%s4504 + $0x28] sm:$0xf]
      %v4516 = vld [vmem:[%s4504 + $0x2c] sm:$0xf]
      %v4517 = vld [vmem:[%s4504 + $0x30] sm:$0xf]
      %v4518 = vld [vmem:[%s4504 + $0x34] sm:$0xf]
      %v4519 = vld [vmem:[%s4504 + $0x38] sm:$0xf]
      %v4520 = vld [vmem:[%s4504 + $0x3c] sm:$0xf]
      %v4521 = vrot.slane %v3969, 1
      %v4522 = vsel %vm935, %v3685, %v4521
      %v4523 = vrot.slane %v4239, 1
      %v4524 = vsel %vm935, %v4521, %v4523
      %v4543 = vunpack.c.l.b16 %v4505
      %v4544 = vunpack.c.l.b16 %v4506
      %v4545 = vunpack.c.l.b16 %v4507
      %v4546 = vunpack.c.l.b16 %v4508
      %v4547 = vunpack.c.l.b16 %v4509
      %v4548 = vunpack.c.l.b16 %v4510
      %v4549 = vunpack.c.l.b16 %v4511
      %v4550 = vunpack.c.l.b16 %v4512
      %v4551 = vunpack.c.l.b16 %v4513
      %v4552 = vunpack.c.l.b16 %v4514
      %v4553 = vunpack.c.l.b16 %v4515
      %v4554 = vunpack.c.l.b16 %v4516
      %v4555 = vunpack.c.l.b16 %v4517
      %v4556 = vunpack.c.l.b16 %v4518
      %v4557 = vunpack.c.l.b16 %v4519
      %v4558 = vunpack.c.l.b16 %v4520
      %v4559 = vpack.c.b16 %v4544, %v4543
      %v4560 = vpack.c.b16 %v4546, %v4545
      %v4561 = vpack.c.b16 %v4548, %v4547
      %v4562 = vpack.c.b16 %v4550, %v4549
      %v4563 = vpack.c.b16 %v4552, %v4551
      %v4564 = vpack.c.b16 %v4554, %v4553
      %v4565 = vpack.c.b16 %v4556, %v4555
      %v4566 = vpack.c.b16 %v4558, %v4557
      %4575 = vmatprep.subr.bf16.mxu0 0
      %4576 = vmatpush1.bf16.msra.mxu0 %v4566
      %4577 = vmatprep.subr.bf16.mxu0 0
      %4578 = vmatpush1.bf16.msra.mxu0 %v4565
      %4579 = vmatprep.subr.bf16.mxu0 0
      %4580 = vmatpush1.bf16.msra.mxu0 %v4564
      %4581 = vmatprep.subr.bf16.mxu0 0
      %4582 = vmatpush1.bf16.msra.mxu0 %v4563
      %4583 = vmatprep.subr.bf16.mxu0 0
      %4584 = vmatpush1.bf16.msra.mxu0 %v4562
      %4585 = vmatprep.subr.bf16.mxu0 0
      %4586 = vmatpush1.bf16.msra.mxu0 %v4561
      %4587 = vmatprep.subr.bf16.mxu0 0
      %4588 = vmatpush1.bf16.msra.mxu0 %v4560
      %4589 = vmatprep.subr.bf16.mxu0 0
      %4590 = vmatpush1.bf16.msra.mxu0 %v4559
      %4591 = vmatprep.subr.bf16.mxu0 0
      %4592 = vmatpush2.bf16.msra.mxu0 0
      %4593 = vmatprep.subr.bf16.mxu0 0
      %4594 = vmatpush2.bf16.msra.mxu0 0
      %4595 = vmatprep.subr.bf16.mxu0 0
      %4596 = vmatpush2.bf16.msra.mxu0 0
      %4597 = vmatprep.subr.bf16.mxu0 0
      %4598 = vmatpush2.bf16.msra.mxu0 0
      %4599 = vmatprep.subr.bf16.mxu0 0
      %4600 = vmatpush2.bf16.msra.mxu0 0
      %4601 = vmatprep.subr.bf16.mxu0 0
      %4602 = vmatpush2.bf16.msra.mxu0 0
      %4603 = vmatprep.subr.bf16.mxu0 0
      %4604 = vmatpush2.bf16.msra.mxu0 0
      %4605 = vmatprep.subr.bf16.mxu0 0
      %4606 = vmatpush2.bf16.msra.mxu0 0
      %4607 = vmatprep.mubr.bf16.mxu0 0
      %4608 = vmatmul.mubr.bf16.gmra.mxu0 %v3668
      %v4609 = vpop.f32.mrf.mxu0
      %v4610 = vadd.f32 0.0, %v4609
      %v4611 = vpop.f32.mrf.mxu0
      %v4612 = vpop.f32.mrf.mxu0
      %v4613 = vadd.f32 0.0, %v4612
      %v4614 = vpop.f32.mrf.mxu0
      %4615 = vmatprep.mubr.bf16.mxu0 0
      %4616 = vmatmul.mubr.bf16.gmra.mxu0 %v3670
      %v4617 = vpop.f32.mrf.mxu0
      %v4618 = vadd.f32 0.0, %v4617
      %v4619 = vpop.f32.mrf.mxu0
      %v4620 = vpop.f32.mrf.mxu0
      %v4621 = vadd.f32 0.0, %v4620
      %v4622 = vpop.f32.mrf.mxu0
      %4623 = vmatprep.mubr.bf16.mxu0 0
      %4624 = vmatmul.mubr.bf16.gmra.mxu0 %v3672
      %v4625 = vpop.f32.mrf.mxu0
      %v4626 = vadd.f32 0.0, %v4625
      %v4627 = vpop.f32.mrf.mxu0
      %v4628 = vpop.f32.mrf.mxu0
      %v4629 = vadd.f32 0.0, %v4628
      %v4630 = vpop.f32.mrf.mxu0
      %4631 = vmatprep.mubr.bf16.mxu0 0
      %4632 = vmatmul.mubr.bf16.gmra.mxu0 %v3674
      %v4633 = vpop.f32.mrf.mxu0
      %v4634 = vadd.f32 0.0, %v4633
      %v4635 = vpop.f32.mrf.mxu0
      %v4636 = vpop.f32.mrf.mxu0
      %v4637 = vadd.f32 0.0, %v4636
      %v4638 = vpop.f32.mrf.mxu0
      %4639 = vmatprep.mubr.bf16.mxu0 0
      %4640 = vmatmul.mubr.bf16.gmra.mxu0 %v3676
      %v4641 = vpop.f32.mrf.mxu0
      %v4642 = vadd.f32 0.0, %v4641
      %v4643 = vpop.f32.mrf.mxu0
      %v4644 = vpop.f32.mrf.mxu0
      %v4645 = vadd.f32 0.0, %v4644
      %v4646 = vpop.f32.mrf.mxu0
      %4647 = vmatprep.mubr.bf16.mxu0 0
      %4648 = vmatmul.mubr.bf16.gmra.mxu0 %v3678
      %v4649 = vpop.f32.mrf.mxu0
      %v4650 = vadd.f32 0.0, %v4649
      %v4651 = vpop.f32.mrf.mxu0
      %v4652 = vpop.f32.mrf.mxu0
      %v4653 = vadd.f32 0.0, %v4652
      %v4654 = vpop.f32.mrf.mxu0
      %4655 = vmatprep.mubr.bf16.mxu0 0
      %4656 = vmatmul.mubr.bf16.gmra.mxu0 %v3680
      %v4657 = vpop.f32.mrf.mxu0
      %v4658 = vadd.f32 0.0, %v4657
      %v4659 = vpop.f32.mrf.mxu0
      %v4660 = vpop.f32.mrf.mxu0
      %v4661 = vadd.f32 0.0, %v4660
      %v4662 = vpop.f32.mrf.mxu0
      %4663 = vmatprep.mubr.bf16.mxu0 0
      %4664 = vmatmul.mubr.bf16.gmra.mxu0 %v3682
      %v4665 = vpop.f32.mrf.mxu0
      %v4666 = vadd.f32 0.0, %v4665
      %v4667 = vpop.f32.mrf.mxu0
      %v4668 = vpop.f32.mrf.mxu0
      %v4669 = vadd.f32 0.0, %v4668
      %v4670 = vpop.f32.mrf.mxu0
      %4671 = vmatprep.mubr.bf16.mxu0 0
      %4672 = vmatmul.mubr.bf16.gmra.mxu0 %v3684
      %v4673 = vpop.f32.mrf.mxu0
      %v4674 = vadd.f32 0.0, %v4673
      %v4675 = vpop.f32.mrf.mxu0
      %v4676 = vpop.f32.mrf.mxu0
      %v4677 = vadd.f32 0.0, %v4676
      %v4678 = vpop.f32.mrf.mxu0
      %4679 = vmatprep.mubr.bf16.mxu0 0
      %4680 = vmatmul.mubr.bf16.gmra.mxu0 %v3686
      %v4681 = vpop.f32.mrf.mxu0
      %v4682 = vadd.f32 0.0, %v4681
      %v4683 = vpop.f32.mrf.mxu0
      %v4684 = vpop.f32.mrf.mxu0
      %v4685 = vadd.f32 0.0, %v4684
      %v4686 = vpop.f32.mrf.mxu0
      %4687 = vmatprep.mubr.bf16.mxu0 0
      %4688 = vmatmul.mubr.bf16.gmra.mxu0 %v4522
      %v4689 = vpop.f32.mrf.mxu0
      %v4690 = vadd.f32 0.0, %v4689
      %v4691 = vpop.f32.mrf.mxu0
      %v4692 = vpop.f32.mrf.mxu0
      %v4693 = vadd.f32 0.0, %v4692
      %v4694 = vpop.f32.mrf.mxu0
      %4695 = vmatprep.mubr.bf16.mxu0 0
      %4696 = vmatmul.mubr.bf16.gmra.mxu0 %v4524
      %v4697 = vpop.f32.mrf.mxu0
      %v4698 = vadd.f32 0.0, %v4697
      %v4699 = vpop.f32.mrf.mxu0
      %v4700 = vpop.f32.mrf.mxu0
      %v4701 = vadd.f32 0.0, %v4700
      %v4702 = vpop.f32.mrf.mxu0
      %4703 = vdwg.mxu0
      %v4704 = vld [vmem:[#allocation4] sm:$0xff]
      %v4705 = vld [vmem:[#allocation4 + $0x8] sm:$0xff]
      %v4706 = vld [vmem:[#allocation4 + $0x10] sm:$0xff]
      %v4707 = vld [vmem:[#allocation4 + $0x18] sm:$0xff]
      %v4708 = vld [vmem:[#allocation4 + $0x20] sm:$0xff]
      %v4709 = vld [vmem:[#allocation4 + $0x28] sm:$0xff]
      %v4710 = vld [vmem:[#allocation4 + $0x30] sm:$0xff]
      %v4711 = vld [vmem:[#allocation4 + $0x38] sm:$0xff]
      %v4712 = vld [vmem:[#allocation4 + $0x40] sm:$0xff]
      %v4713 = vld [vmem:[#allocation4 + $0x48] sm:$0xff]
      %v4714 = vld [vmem:[#allocation4 + $0x50] sm:$0xff]
      %v4715 = vld [vmem:[#allocation4 + $0x58] sm:$0xff]
      %v4716 = vld [vmem:[#allocation4 + $0x60] sm:$0xff]
      %v4717 = vld [vmem:[#allocation4 + $0x68] sm:$0xff]
      %v4718 = vld [vmem:[#allocation4 + $0x70] sm:$0xff]
      %v4719 = vld [vmem:[#allocation4 + $0x78] sm:$0xff]
      %v4720 = vld [vmem:[#allocation4 + $0x80] sm:$0xff]
      %v4721 = vld [vmem:[#allocation4 + $0x88] sm:$0xff]
      %v4722 = vld [vmem:[#allocation4 + $0x90] sm:$0xff]
      %v4723 = vld [vmem:[#allocation4 + $0x98] sm:$0xff]
      %v4724 = vld [vmem:[#allocation4 + $0xa0] sm:$0xff]
      %v4725 = vld [vmem:[#allocation4 + $0xa8] sm:$0xff]
      %v4726 = vld [vmem:[#allocation4 + $0xb0] sm:$0xff]
      %v4727 = vld [vmem:[#allocation4 + $0xb8] sm:$0xff]
      %v4728 = vadd.f32 %v4704, %v4610
      %v4729 = vadd.f32 %v4705, %v4613
      %v4730 = vadd.f32 %v4706, %v4618
      %v4731 = vadd.f32 %v4707, %v4621
      %v4732 = vadd.f32 %v4708, %v4626
      %v4733 = vadd.f32 %v4709, %v4629
      %v4734 = vadd.f32 %v4710, %v4634
      %v4735 = vadd.f32 %v4711, %v4637
      %v4736 = vadd.f32 %v4712, %v4642
      %v4737 = vadd.f32 %v4713, %v4645
      %v4738 = vadd.f32 %v4714, %v4650
      %v4739 = vadd.f32 %v4715, %v4653
      %v4740 = vadd.f32 %v4716, %v4658
      %v4741 = vadd.f32 %v4717, %v4661
      %v4742 = vadd.f32 %v4718, %v4666
      %v4743 = vadd.f32 %v4719, %v4669
      %v4744 = vadd.f32 %v4720, %v4674
      %v4745 = vadd.f32 %v4721, %v4677
      %v4746 = vadd.f32 %v4722, %v4682
      %v4747 = vadd.f32 %v4723, %v4685
      %v4748 = vadd.f32 %v4724, %v4690
      %v4749 = vadd.f32 %v4725, %v4693
      %v4750 = vadd.f32 %v4726, %v4698
      %v4751 = vadd.f32 %v4727, %v4701
      %4752 = vst [vmem:[#allocation4] sm:$0xff] %v4728
      %4753 = vst [vmem:[#allocation4 + $0x8] sm:$0xff] %v4729
      %4754 = vst [vmem:[#allocation4 + $0x10] sm:$0xff] %v4730
      %4755 = vst [vmem:[#allocation4 + $0x18] sm:$0xff] %v4731
      %4756 = vst [vmem:[#allocation4 + $0x20] sm:$0xff] %v4732
      %4757 = vst [vmem:[#allocation4 + $0x28] sm:$0xff] %v4733
      %4758 = vst [vmem:[#allocation4 + $0x30] sm:$0xff] %v4734
      %4759 = vst [vmem:[#allocation4 + $0x38] sm:$0xff] %v4735
      %4760 = vst [vmem:[#allocation4 + $0x40] sm:$0xff] %v4736
      %4761 = vst [vmem:[#allocation4 + $0x48] sm:$0xff] %v4737
      %4762 = vst [vmem:[#allocation4 + $0x50] sm:$0xff] %v4738
      %4763 = vst [vmem:[#allocation4 + $0x58] sm:$0xff] %v4739
      %4764 = vst [vmem:[#allocation4 + $0x60] sm:$0xff] %v4740
      %4765 = vst [vmem:[#allocation4 + $0x68] sm:$0xff] %v4741
      %4766 = vst [vmem:[#allocation4 + $0x70] sm:$0xff] %v4742
      %4767 = vst [vmem:[#allocation4 + $0x78] sm:$0xff] %v4743
      %4768 = vst [vmem:[#allocation4 + $0x80] sm:$0xff] %v4744
      %4769 = vst [vmem:[#allocation4 + $0x88] sm:$0xff] %v4745
      %4770 = vst [vmem:[#allocation4 + $0x90] sm:$0xff] %v4746
      %4771 = vst [vmem:[#allocation4 + $0x98] sm:$0xff] %v4747
      %4772 = vst [vmem:[#allocation4 + $0xa0] sm:$0xff] %v4748
      %4773 = vst [vmem:[#allocation4 + $0xa8] sm:$0xff] %v4749
      %4774 = vst [vmem:[#allocation4 + $0xb0] sm:$0xff] %v4750
      %4775 = vst [vmem:[#allocation4 + $0xb8] sm:$0xff] %v4751
      %s4776 = scalar_lea.vmem %s3, 384
      %v4777 = vld [vmem:[%s4776] sm:$0xf]
      %v4778 = vld [vmem:[%s4776 + $0x4] sm:$0xf]
      %v4779 = vld [vmem:[%s4776 + $0x8] sm:$0xf]
      %v4780 = vld [vmem:[%s4776 + $0xc] sm:$0xf]
      %v4781 = vld [vmem:[%s4776 + $0x10] sm:$0xf]
      %v4782 = vld [vmem:[%s4776 + $0x14] sm:$0xf]
      %v4783 = vld [vmem:[%s4776 + $0x18] sm:$0xf]
      %v4784 = vld [vmem:[%s4776 + $0x1c] sm:$0xf]
      %v4785 = vld [vmem:[%s4776 + $0x20] sm:$0xf]
      %v4786 = vld [vmem:[%s4776 + $0x24] sm:$0xf]
      %v4787 = vld [vmem:[%s4776 + $0x28] sm:$0xf]
      %v4788 = vld [vmem:[%s4776 + $0x2c] sm:$0xf]
      %v4789 = vld [vmem:[%s4776 + $0x30] sm:$0xf]
      %v4790 = vld [vmem:[%s4776 + $0x34] sm:$0xf]
      %v4791 = vld [vmem:[%s4776 + $0x38] sm:$0xf]
      %v4792 = vld [vmem:[%s4776 + $0x3c] sm:$0xf]
      %v4794 = vunpack.c.l.b16 %v2975
      %v4795 = vpack.c.b16 %v4794, %v4238
      %v4813 = vunpack.c.l.b16 %v4777
      %v4814 = vunpack.c.l.b16 %v4778
      %v4815 = vunpack.c.l.b16 %v4779
      %v4816 = vunpack.c.l.b16 %v4780
      %v4817 = vunpack.c.l.b16 %v4781
      %v4818 = vunpack.c.l.b16 %v4782
      %v4819 = vunpack.c.l.b16 %v4783
      %v4820 = vunpack.c.l.b16 %v4784
      %v4821 = vunpack.c.l.b16 %v4785
      %v4822 = vunpack.c.l.b16 %v4786
      %v4823 = vunpack.c.l.b16 %v4787
      %v4824 = vunpack.c.l.b16 %v4788
      %v4825 = vunpack.c.l.b16 %v4789
      %v4826 = vunpack.c.l.b16 %v4790
      %v4827 = vunpack.c.l.b16 %v4791
      %v4828 = vunpack.c.l.b16 %v4792
      %v4829 = vpack.c.b16 %v4814, %v4813
      %v4830 = vpack.c.b16 %v4816, %v4815
      %v4831 = vpack.c.b16 %v4818, %v4817
      %v4832 = vpack.c.b16 %v4820, %v4819
      %v4833 = vpack.c.b16 %v4822, %v4821
      %v4834 = vpack.c.b16 %v4824, %v4823
      %v4835 = vpack.c.b16 %v4826, %v4825
      %v4836 = vpack.c.b16 %v4828, %v4827
      %4845 = vmatprep.subr.bf16.mxu0 0
      %4846 = vmatpush1.bf16.msra.mxu0 %v4836
      %4847 = vmatprep.subr.bf16.mxu0 0
      %4848 = vmatpush1.bf16.msra.mxu0 %v4835
      %4849 = vmatprep.subr.bf16.mxu0 0
      %4850 = vmatpush1.bf16.msra.mxu0 %v4834
      %4851 = vmatprep.subr.bf16.mxu0 0
      %4852 = vmatpush1.bf16.msra.mxu0 %v4833
      %4853 = vmatprep.subr.bf16.mxu0 0
      %4854 = vmatpush1.bf16.msra.mxu0 %v4832
      %4855 = vmatprep.subr.bf16.mxu0 0
      %4856 = vmatpush1.bf16.msra.mxu0 %v4831
      %4857 = vmatprep.subr.bf16.mxu0 0
      %4858 = vmatpush1.bf16.msra.mxu0 %v4830
      %4859 = vmatprep.subr.bf16.mxu0 0
      %4860 = vmatpush1.bf16.msra.mxu0 %v4829
      %4861 = vmatprep.subr.bf16.mxu0 0
      %4862 = vmatpush2.bf16.msra.mxu0 0
      %4863 = vmatprep.subr.bf16.mxu0 0
      %4864 = vmatpush2.bf16.msra.mxu0 0
      %4865 = vmatprep.subr.bf16.mxu0 0
      %4866 = vmatpush2.bf16.msra.mxu0 0
      %4867 = vmatprep.subr.bf16.mxu0 0
      %4868 = vmatpush2.bf16.msra.mxu0 0
      %4869 = vmatprep.subr.bf16.mxu0 0
      %4870 = vmatpush2.bf16.msra.mxu0 0
      %4871 = vmatprep.subr.bf16.mxu0 0
      %4872 = vmatpush2.bf16.msra.mxu0 0
      %4873 = vmatprep.subr.bf16.mxu0 0
      %4874 = vmatpush2.bf16.msra.mxu0 0
      %4875 = vmatprep.subr.bf16.mxu0 0
      %4876 = vmatpush2.bf16.msra.mxu0 0
      %4877 = vmatprep.mubr.bf16.mxu0 0
      %4878 = vmatmul.mubr.bf16.gmra.mxu0 %v3043
      %v4879 = vpop.f32.mrf.mxu0
      %v4880 = vadd.f32 0.0, %v4879
      %v4881 = vpop.f32.mrf.mxu0
      %v4882 = vpop.f32.mrf.mxu0
      %v4883 = vadd.f32 0.0, %v4882
      %v4884 = vpop.f32.mrf.mxu0
      %4885 = vmatprep.mubr.bf16.mxu0 0
      %4886 = vmatmul.mubr.bf16.gmra.mxu0 %v3044
      %v4887 = vpop.f32.mrf.mxu0
      %v4888 = vadd.f32 0.0, %v4887
      %v4889 = vpop.f32.mrf.mxu0
      %v4890 = vpop.f32.mrf.mxu0
      %v4891 = vadd.f32 0.0, %v4890
      %v4892 = vpop.f32.mrf.mxu0
      %4893 = vmatprep.mubr.bf16.mxu0 0
      %4894 = vmatmul.mubr.bf16.gmra.mxu0 %v3045
      %v4895 = vpop.f32.mrf.mxu0
      %v4896 = vadd.f32 0.0, %v4895
      %v4897 = vpop.f32.mrf.mxu0
      %v4898 = vpop.f32.mrf.mxu0
      %v4899 = vadd.f32 0.0, %v4898
      %v4900 = vpop.f32.mrf.mxu0
      %4901 = vmatprep.mubr.bf16.mxu0 0
      %4902 = vmatmul.mubr.bf16.gmra.mxu0 %v3046
      %v4903 = vpop.f32.mrf.mxu0
      %v4904 = vadd.f32 0.0, %v4903
      %v4905 = vpop.f32.mrf.mxu0
      %v4906 = vpop.f32.mrf.mxu0
      %v4907 = vadd.f32 0.0, %v4906
      %v4908 = vpop.f32.mrf.mxu0
      %4909 = vmatprep.mubr.bf16.mxu0 0
      %4910 = vmatmul.mubr.bf16.gmra.mxu0 %v3047
      %v4911 = vpop.f32.mrf.mxu0
      %v4912 = vadd.f32 0.0, %v4911
      %v4913 = vpop.f32.mrf.mxu0
      %v4914 = vpop.f32.mrf.mxu0
      %v4915 = vadd.f32 0.0, %v4914
      %v4916 = vpop.f32.mrf.mxu0
      %4917 = vmatprep.mubr.bf16.mxu0 0
      %4918 = vmatmul.mubr.bf16.gmra.mxu0 %v3048
      %v4919 = vpop.f32.mrf.mxu0
      %v4920 = vadd.f32 0.0, %v4919
      %v4921 = vpop.f32.mrf.mxu0
      %v4922 = vpop.f32.mrf.mxu0
      %v4923 = vadd.f32 0.0, %v4922
      %v4924 = vpop.f32.mrf.mxu0
      %4925 = vmatprep.mubr.bf16.mxu0 0
      %4926 = vmatmul.mubr.bf16.gmra.mxu0 %v3049
      %v4927 = vpop.f32.mrf.mxu0
      %v4928 = vadd.f32 0.0, %v4927
      %v4929 = vpop.f32.mrf.mxu0
      %v4930 = vpop.f32.mrf.mxu0
      %v4931 = vadd.f32 0.0, %v4930
      %v4932 = vpop.f32.mrf.mxu0
      %4933 = vmatprep.mubr.bf16.mxu0 0
      %4934 = vmatmul.mubr.bf16.gmra.mxu0 %v3050
      %v4935 = vpop.f32.mrf.mxu0
      %v4936 = vadd.f32 0.0, %v4935
      %v4937 = vpop.f32.mrf.mxu0
      %v4938 = vpop.f32.mrf.mxu0
      %v4939 = vadd.f32 0.0, %v4938
      %v4940 = vpop.f32.mrf.mxu0
      %4941 = vmatprep.mubr.bf16.mxu0 0
      %4942 = vmatmul.mubr.bf16.gmra.mxu0 %v3051
      %v4943 = vpop.f32.mrf.mxu0
      %v4944 = vadd.f32 0.0, %v4943
      %v4945 = vpop.f32.mrf.mxu0
      %v4946 = vpop.f32.mrf.mxu0
      %v4947 = vadd.f32 0.0, %v4946
      %v4948 = vpop.f32.mrf.mxu0
      %4949 = vmatprep.mubr.bf16.mxu0 0
      %4950 = vmatmul.mubr.bf16.gmra.mxu0 %v3052
      %v4951 = vpop.f32.mrf.mxu0
      %v4952 = vadd.f32 0.0, %v4951
      %v4953 = vpop.f32.mrf.mxu0
      %v4954 = vpop.f32.mrf.mxu0
      %v4955 = vadd.f32 0.0, %v4954
      %v4956 = vpop.f32.mrf.mxu0
      %4957 = vmatprep.mubr.bf16.mxu0 0
      %4958 = vmatmul.mubr.bf16.gmra.mxu0 %v3969
      %v4959 = vpop.f32.mrf.mxu0
      %v4960 = vadd.f32 0.0, %v4959
      %v4961 = vpop.f32.mrf.mxu0
      %v4962 = vpop.f32.mrf.mxu0
      %v4963 = vadd.f32 0.0, %v4962
      %v4964 = vpop.f32.mrf.mxu0
      %4965 = vmatprep.mubr.bf16.mxu0 0
      %4966 = vmatmul.mubr.bf16.gmra.mxu0 %v4795
      %v4967 = vpop.f32.mrf.mxu0
      %v4968 = vadd.f32 0.0, %v4967
      %v4969 = vpop.f32.mrf.mxu0
      %v4970 = vpop.f32.mrf.mxu0
      %v4971 = vadd.f32 0.0, %v4970
      %v4972 = vpop.f32.mrf.mxu0
      %4973 = vdwg.mxu0
      %v4974 = vld [vmem:[#allocation4] sm:$0xff]
      %v4975 = vld [vmem:[#allocation4 + $0x8] sm:$0xff]
      %v4976 = vld [vmem:[#allocation4 + $0x10] sm:$0xff]
      %v4977 = vld [vmem:[#allocation4 + $0x18] sm:$0xff]
      %v4978 = vld [vmem:[#allocation4 + $0x20] sm:$0xff]
      %v4979 = vld [vmem:[#allocation4 + $0x28] sm:$0xff]
      %v4980 = vld [vmem:[#allocation4 + $0x30] sm:$0xff]
      %v4981 = vld [vmem:[#allocation4 + $0x38] sm:$0xff]
      %v4982 = vld [vmem:[#allocation4 + $0x40] sm:$0xff]
      %v4983 = vld [vmem:[#allocation4 + $0x48] sm:$0xff]
      %v4984 = vld [vmem:[#allocation4 + $0x50] sm:$0xff]
      %v4985 = vld [vmem:[#allocation4 + $0x58] sm:$0xff]
      %v4986 = vld [vmem:[#allocation4 + $0x60] sm:$0xff]
      %v4987 = vld [vmem:[#allocation4 + $0x68] sm:$0xff]
      %v4988 = vld [vmem:[#allocation4 + $0x70] sm:$0xff]
      %v4989 = vld [vmem:[#allocation4 + $0x78] sm:$0xff]
      %v4990 = vld [vmem:[#allocation4 + $0x80] sm:$0xff]
      %v4991 = vld [vmem:[#allocation4 + $0x88] sm:$0xff]
      %v4992 = vld [vmem:[#allocation4 + $0x90] sm:$0xff]
      %v4993 = vld [vmem:[#allocation4 + $0x98] sm:$0xff]
      %v4994 = vld [vmem:[#allocation4 + $0xa0] sm:$0xff]
      %v4995 = vld [vmem:[#allocation4 + $0xa8] sm:$0xff]
      %v4996 = vld [vmem:[#allocation4 + $0xb0] sm:$0xff]
      %v4997 = vld [vmem:[#allocation4 + $0xb8] sm:$0xff]
      %v4998 = vadd.f32 %v4974, %v4880
      %v4999 = vadd.f32 %v4975, %v4883
      %v5000 = vadd.f32 %v4976, %v4888
      %v5001 = vadd.f32 %v4977, %v4891
      %v5002 = vadd.f32 %v4978, %v4896
      %v5003 = vadd.f32 %v4979, %v4899
      %v5004 = vadd.f32 %v4980, %v4904
      %v5005 = vadd.f32 %v4981, %v4907
      %v5006 = vadd.f32 %v4982, %v4912
      %v5007 = vadd.f32 %v4983, %v4915
      %v5008 = vadd.f32 %v4984, %v4920
      %v5009 = vadd.f32 %v4985, %v4923
      %v5010 = vadd.f32 %v4986, %v4928
      %v5011 = vadd.f32 %v4987, %v4931
      %v5012 = vadd.f32 %v4988, %v4936
      %v5013 = vadd.f32 %v4989, %v4939
      %v5014 = vadd.f32 %v4990, %v4944
      %v5015 = vadd.f32 %v4991, %v4947
      %v5016 = vadd.f32 %v4992, %v4952
      %v5017 = vadd.f32 %v4993, %v4955
      %v5018 = vadd.f32 %v4994, %v4960
      %v5019 = vadd.f32 %v4995, %v4963
      %v5020 = vadd.f32 %v4996, %v4968
      %v5021 = vadd.f32 %v4997, %v4971
      %5022 = vst [vmem:[#allocation4] sm:$0xff] %v4998
      %5023 = vst [vmem:[#allocation4 + $0x8] sm:$0xff] %v4999
      %5024 = vst [vmem:[#allocation4 + $0x10] sm:$0xff] %v5000
      %5025 = vst [vmem:[#allocation4 + $0x18] sm:$0xff] %v5001
      %5026 = vst [vmem:[#allocation4 + $0x20] sm:$0xff] %v5002
      %5027 = vst [vmem:[#allocation4 + $0x28] sm:$0xff] %v5003
      %5028 = vst [vmem:[#allocation4 + $0x30] sm:$0xff] %v5004
      %5029 = vst [vmem:[#allocation4 + $0x38] sm:$0xff] %v5005
      %5030 = vst [vmem:[#allocation4 + $0x40] sm:$0xff] %v5006
      %5031 = vst [vmem:[#allocation4 + $0x48] sm:$0xff] %v5007
      %5032 = vst [vmem:[#allocation4 + $0x50] sm:$0xff] %v5008
      %5033 = vst [vmem:[#allocation4 + $0x58] sm:$0xff] %v5009
      %5034 = vst [vmem:[#allocation4 + $0x60] sm:$0xff] %v5010
      %5035 = vst [vmem:[#allocation4 + $0x68] sm:$0xff] %v5011
      %5036 = vst [vmem:[#allocation4 + $0x70] sm:$0xff] %v5012
      %5037 = vst [vmem:[#allocation4 + $0x78] sm:$0xff] %v5013
      %5038 = vst [vmem:[#allocation4 + $0x80] sm:$0xff] %v5014
      %5039 = vst [vmem:[#allocation4 + $0x88] sm:$0xff] %v5015
      %5040 = vst [vmem:[#allocation4 + $0x90] sm:$0xff] %v5016
      %5041 = vst [vmem:[#allocation4 + $0x98] sm:$0xff] %v5017
      %5042 = vst [vmem:[#allocation4 + $0xa0] sm:$0xff] %v5018
      %5043 = vst [vmem:[#allocation4 + $0xa8] sm:$0xff] %v5019
      %5044 = vst [vmem:[#allocation4 + $0xb0] sm:$0xff] %v5020
      %5045 = vst [vmem:[#allocation4 + $0xb8] sm:$0xff] %v5021
      %s5046 = scalar_lea.vmem %s3, 448
      %v5047 = vld [vmem:[%s5046] sm:$0xf]
      %v5048 = vld [vmem:[%s5046 + $0x4] sm:$0xf]
      %v5049 = vld [vmem:[%s5046 + $0x8] sm:$0xf]
      %v5050 = vld [vmem:[%s5046 + $0xc] sm:$0xf]
      %v5051 = vld [vmem:[%s5046 + $0x10] sm:$0xf]
      %v5052 = vld [vmem:[%s5046 + $0x14] sm:$0xf]
      %v5053 = vld [vmem:[%s5046 + $0x18] sm:$0xf]
      %v5054 = vld [vmem:[%s5046 + $0x1c] sm:$0xf]
      %v5055 = vld [vmem:[%s5046 + $0x20] sm:$0xf]
      %v5056 = vld [vmem:[%s5046 + $0x24] sm:$0xf]
      %v5057 = vld [vmem:[%s5046 + $0x28] sm:$0xf]
      %v5058 = vld [vmem:[%s5046 + $0x2c] sm:$0xf]
      %v5059 = vld [vmem:[%s5046 + $0x30] sm:$0xf]
      %v5060 = vld [vmem:[%s5046 + $0x34] sm:$0xf]
      %v5061 = vld [vmem:[%s5046 + $0x38] sm:$0xf]
      %v5062 = vld [vmem:[%s5046 + $0x3c] sm:$0xf]
      %v5064 = vunpack.c.l.b16 %v2976
      %v5065 = vpack.c.b16 %v5064, %v5064
      %v5067 = vshll.u32 %v4795, 16
      %v5069 = vrot.slane %v5067, 1
      %v5070 = vsel %vm556, %v4247, %v5069
      %v5071 = vshrl.u32 %v4795, 16
      %v5073 = vor.u32 %v5071, %v5069
      %v5075 = vshll.u32 %v5065, 16
      %v5077 = vrot.slane %v5075, 1
      %v5078 = vsel %vm556, %v5073, %v5077
      %v5097 = vunpack.c.l.b16 %v5047
      %v5098 = vunpack.c.l.b16 %v5048
      %v5099 = vunpack.c.l.b16 %v5049
      %v5100 = vunpack.c.l.b16 %v5050
      %v5101 = vunpack.c.l.b16 %v5051
      %v5102 = vunpack.c.l.b16 %v5052
      %v5103 = vunpack.c.l.b16 %v5053
      %v5104 = vunpack.c.l.b16 %v5054
      %v5105 = vunpack.c.l.b16 %v5055
      %v5106 = vunpack.c.l.b16 %v5056
      %v5107 = vunpack.c.l.b16 %v5057
      %v5108 = vunpack.c.l.b16 %v5058
      %v5109 = vunpack.c.l.b16 %v5059
      %v5110 = vunpack.c.l.b16 %v5060
      %v5111 = vunpack.c.l.b16 %v5061
      %v5112 = vunpack.c.l.b16 %v5062
      %v5113 = vpack.c.b16 %v5098, %v5097
      %v5114 = vpack.c.b16 %v5100, %v5099
      %v5115 = vpack.c.b16 %v5102, %v5101
      %v5116 = vpack.c.b16 %v5104, %v5103
      %v5117 = vpack.c.b16 %v5106, %v5105
      %v5118 = vpack.c.b16 %v5108, %v5107
      %v5119 = vpack.c.b16 %v5110, %v5109
      %v5120 = vpack.c.b16 %v5112, %v5111
      %5129 = vmatprep.subr.bf16.mxu0 0
      %5130 = vmatpush1.bf16.msra.mxu0 %v5120
      %5131 = vmatprep.subr.bf16.mxu0 0
      %5132 = vmatpush1.bf16.msra.mxu0 %v5119
      %5133 = vmatprep.subr.bf16.mxu0 0
      %5134 = vmatpush1.bf16.msra.mxu0 %v5118
      %5135 = vmatprep.subr.bf16.mxu0 0
      %5136 = vmatpush1.bf16.msra.mxu0 %v5117
      %5137 = vmatprep.subr.bf16.mxu0 0
      %5138 = vmatpush1.bf16.msra.mxu0 %v5116
      %5139 = vmatprep.subr.bf16.mxu0 0
      %5140 = vmatpush1.bf16.msra.mxu0 %v5115
      %5141 = vmatprep.subr.bf16.mxu0 0
      %5142 = vmatpush1.bf16.msra.mxu0 %v5114
      %5143 = vmatprep.subr.bf16.mxu0 0
      %5144 = vmatpush1.bf16.msra.mxu0 %v5113
      %5145 = vmatprep.subr.bf16.mxu0 0
      %5146 = vmatpush2.bf16.msra.mxu0 0
      %5147 = vmatprep.subr.bf16.mxu0 0
      %5148 = vmatpush2.bf16.msra.mxu0 0
      %5149 = vmatprep.subr.bf16.mxu0 0
      %5150 = vmatpush2.bf16.msra.mxu0 0
      %5151 = vmatprep.subr.bf16.mxu0 0
      %5152 = vmatpush2.bf16.msra.mxu0 0
      %5153 = vmatprep.subr.bf16.mxu0 0
      %5154 = vmatpush2.bf16.msra.mxu0 0
      %5155 = vmatprep.subr.bf16.mxu0 0
      %5156 = vmatpush2.bf16.msra.mxu0 0
      %5157 = vmatprep.subr.bf16.mxu0 0
      %5158 = vmatpush2.bf16.msra.mxu0 0
      %5159 = vmatprep.subr.bf16.mxu0 0
      %5160 = vmatpush2.bf16.msra.mxu0 0
      %5161 = vmatprep.mubr.bf16.mxu0 0
      %5162 = vmatmul.mubr.bf16.gmra.mxu0 %v3313
      %v5163 = vpop.f32.mrf.mxu0
      %v5164 = vadd.f32 0.0, %v5163
      %v5165 = vpop.f32.mrf.mxu0
      %v5166 = vpop.f32.mrf.mxu0
      %v5167 = vadd.f32 0.0, %v5166
      %v5168 = vpop.f32.mrf.mxu0
      %5169 = vmatprep.mubr.bf16.mxu0 0
      %5170 = vmatmul.mubr.bf16.gmra.mxu0 %v3321
      %v5171 = vpop.f32.mrf.mxu0
      %v5172 = vadd.f32 0.0, %v5171
      %v5173 = vpop.f32.mrf.mxu0
      %v5174 = vpop.f32.mrf.mxu0
      %v5175 = vadd.f32 0.0, %v5174
      %v5176 = vpop.f32.mrf.mxu0
      %5177 = vmatprep.mubr.bf16.mxu0 0
      %5178 = vmatmul.mubr.bf16.gmra.mxu0 %v3329
      %v5179 = vpop.f32.mrf.mxu0
      %v5180 = vadd.f32 0.0, %v5179
      %v5181 = vpop.f32.mrf.mxu0
      %v5182 = vpop.f32.mrf.mxu0
      %v5183 = vadd.f32 0.0, %v5182
      %v5184 = vpop.f32.mrf.mxu0
      %5185 = vmatprep.mubr.bf16.mxu0 0
      %5186 = vmatmul.mubr.bf16.gmra.mxu0 %v3337
      %v5187 = vpop.f32.mrf.mxu0
      %v5188 = vadd.f32 0.0, %v5187
      %v5189 = vpop.f32.mrf.mxu0
      %v5190 = vpop.f32.mrf.mxu0
      %v5191 = vadd.f32 0.0, %v5190
      %v5192 = vpop.f32.mrf.mxu0
      %5193 = vmatprep.mubr.bf16.mxu0 0
      %5194 = vmatmul.mubr.bf16.gmra.mxu0 %v3345
      %v5195 = vpop.f32.mrf.mxu0
      %v5196 = vadd.f32 0.0, %v5195
      %v5197 = vpop.f32.mrf.mxu0
      %v5198 = vpop.f32.mrf.mxu0
      %v5199 = vadd.f32 0.0, %v5198
      %v5200 = vpop.f32.mrf.mxu0
      %5201 = vmatprep.mubr.bf16.mxu0 0
      %5202 = vmatmul.mubr.bf16.gmra.mxu0 %v3353
      %v5203 = vpop.f32.mrf.mxu0
      %v5204 = vadd.f32 0.0, %v5203
      %v5205 = vpop.f32.mrf.mxu0
      %v5206 = vpop.f32.mrf.mxu0
      %v5207 = vadd.f32 0.0, %v5206
      %v5208 = vpop.f32.mrf.mxu0
      %5209 = vmatprep.mubr.bf16.mxu0 0
      %5210 = vmatmul.mubr.bf16.gmra.mxu0 %v3361
      %v5211 = vpop.f32.mrf.mxu0
      %v5212 = vadd.f32 0.0, %v5211
      %v5213 = vpop.f32.mrf.mxu0
      %v5214 = vpop.f32.mrf.mxu0
      %v5215 = vadd.f32 0.0, %v5214
      %v5216 = vpop.f32.mrf.mxu0
      %5217 = vmatprep.mubr.bf16.mxu0 0
      %5218 = vmatmul.mubr.bf16.gmra.mxu0 %v3369
      %v5219 = vpop.f32.mrf.mxu0
      %v5220 = vadd.f32 0.0, %v5219
      %v5221 = vpop.f32.mrf.mxu0
      %v5222 = vpop.f32.mrf.mxu0
      %v5223 = vadd.f32 0.0, %v5222
      %v5224 = vpop.f32.mrf.mxu0
      %5225 = vmatprep.mubr.bf16.mxu0 0
      %5226 = vmatmul.mubr.bf16.gmra.mxu0 %v3377
      %v5227 = vpop.f32.mrf.mxu0
      %v5228 = vadd.f32 0.0, %v5227
      %v5229 = vpop.f32.mrf.mxu0
      %v5230 = vpop.f32.mrf.mxu0
      %v5231 = vadd.f32 0.0, %v5230
      %v5232 = vpop.f32.mrf.mxu0
      %5233 = vmatprep.mubr.bf16.mxu0 0
      %5234 = vmatmul.mubr.bf16.gmra.mxu0 %v4244
      %v5235 = vpop.f32.mrf.mxu0
      %v5236 = vadd.f32 0.0, %v5235
      %v5237 = vpop.f32.mrf.mxu0
      %v5238 = vpop.f32.mrf.mxu0
      %v5239 = vadd.f32 0.0, %v5238
      %v5240 = vpop.f32.mrf.mxu0
      %5241 = vmatprep.mubr.bf16.mxu0 0
      %5242 = vmatmul.mubr.bf16.gmra.mxu0 %v5070
      %v5243 = vpop.f32.mrf.mxu0
      %v5244 = vadd.f32 0.0, %v5243
      %v5245 = vpop.f32.mrf.mxu0
      %v5246 = vpop.f32.mrf.mxu0
      %v5247 = vadd.f32 0.0, %v5246
      %v5248 = vpop.f32.mrf.mxu0
      %5249 = vmatprep.mubr.bf16.mxu0 0
      %5250 = vmatmul.mubr.bf16.gmra.mxu0 %v5078
      %v5251 = vpop.f32.mrf.mxu0
      %v5252 = vadd.f32 0.0, %v5251
      %v5253 = vpop.f32.mrf.mxu0
      %v5254 = vpop.f32.mrf.mxu0
      %v5255 = vadd.f32 0.0, %v5254
      %v5256 = vpop.f32.mrf.mxu0
      %5257 = vdwg.mxu0
      %v5258 = vld [vmem:[#allocation4] sm:$0xff]
      %v5259 = vld [vmem:[#allocation4 + $0x8] sm:$0xff]
      %v5260 = vld [vmem:[#allocation4 + $0x10] sm:$0xff]
      %v5261 = vld [vmem:[#allocation4 + $0x18] sm:$0xff]
      %v5262 = vld [vmem:[#allocation4 + $0x20] sm:$0xff]
      %v5263 = vld [vmem:[#allocation4 + $0x28] sm:$0xff]
      %v5264 = vld [vmem:[#allocation4 + $0x30] sm:$0xff]
      %v5265 = vld [vmem:[#allocation4 + $0x38] sm:$0xff]
      %v5266 = vld [vmem:[#allocation4 + $0x40] sm:$0xff]
      %v5267 = vld [vmem:[#allocation4 + $0x48] sm:$0xff]
      %v5268 = vld [vmem:[#allocation4 + $0x50] sm:$0xff]
      %v5269 = vld [vmem:[#allocation4 + $0x58] sm:$0xff]
      %v5270 = vld [vmem:[#allocation4 + $0x60] sm:$0xff]
      %v5271 = vld [vmem:[#allocation4 + $0x68] sm:$0xff]
      %v5272 = vld [vmem:[#allocation4 + $0x70] sm:$0xff]
      %v5273 = vld [vmem:[#allocation4 + $0x78] sm:$0xff]
      %v5274 = vld [vmem:[#allocation4 + $0x80] sm:$0xff]
      %v5275 = vld [vmem:[#allocation4 + $0x88] sm:$0xff]
      %v5276 = vld [vmem:[#allocation4 + $0x90] sm:$0xff]
      %v5277 = vld [vmem:[#allocation4 + $0x98] sm:$0xff]
      %v5278 = vld [vmem:[#allocation4 + $0xa0] sm:$0xff]
      %v5279 = vld [vmem:[#allocation4 + $0xa8] sm:$0xff]
      %v5280 = vld [vmem:[#allocation4 + $0xb0] sm:$0xff]
      %v5281 = vld [vmem:[#allocation4 + $0xb8] sm:$0xff]
      %v5282 = vadd.f32 %v5258, %v5164
      %v5283 = vadd.f32 %v5259, %v5167
      %v5284 = vadd.f32 %v5260, %v5172
      %v5285 = vadd.f32 %v5261, %v5175
      %v5286 = vadd.f32 %v5262, %v5180
      %v5287 = vadd.f32 %v5263, %v5183
      %v5288 = vadd.f32 %v5264, %v5188
      %v5289 = vadd.f32 %v5265, %v5191
      %v5290 = vadd.f32 %v5266, %v5196
      %v5291 = vadd.f32 %v5267, %v5199
      %v5292 = vadd.f32 %v5268, %v5204
      %v5293 = vadd.f32 %v5269, %v5207
      %v5294 = vadd.f32 %v5270, %v5212
      %v5295 = vadd.f32 %v5271, %v5215
      %v5296 = vadd.f32 %v5272, %v5220
      %v5297 = vadd.f32 %v5273, %v5223
      %v5298 = vadd.f32 %v5274, %v5228
      %v5299 = vadd.f32 %v5275, %v5231
      %v5300 = vadd.f32 %v5276, %v5236
      %v5301 = vadd.f32 %v5277, %v5239
      %v5302 = vadd.f32 %v5278, %v5244
      %v5303 = vadd.f32 %v5279, %v5247
      %v5304 = vadd.f32 %v5280, %v5252
      %v5305 = vadd.f32 %v5281, %v5255
      %5306 = vst [vmem:[#allocation4] sm:$0xff] %v5282
      %5307 = vst [vmem:[#allocation4 + $0x8] sm:$0xff] %v5283
      %5308 = vst [vmem:[#allocation4 + $0x10] sm:$0xff] %v5284
      %5309 = vst [vmem:[#allocation4 + $0x18] sm:$0xff] %v5285
      %5310 = vst [vmem:[#allocation4 + $0x20] sm:$0xff] %v5286
      %5311 = vst [vmem:[#allocation4 + $0x28] sm:$0xff] %v5287
      %5312 = vst [vmem:[#allocation4 + $0x30] sm:$0xff] %v5288
      %5313 = vst [vmem:[#allocation4 + $0x38] sm:$0xff] %v5289
      %5314 = vst [vmem:[#allocation4 + $0x40] sm:$0xff] %v5290
      %5315 = vst [vmem:[#allocation4 + $0x48] sm:$0xff] %v5291
      %5316 = vst [vmem:[#allocation4 + $0x50] sm:$0xff] %v5292
      %5317 = vst [vmem:[#allocation4 + $0x58] sm:$0xff] %v5293
      %5318 = vst [vmem:[#allocation4 + $0x60] sm:$0xff] %v5294
      %5319 = vst [vmem:[#allocation4 + $0x68] sm:$0xff] %v5295
      %5320 = vst [vmem:[#allocation4 + $0x70] sm:$0xff] %v5296
      %5321 = vst [vmem:[#allocation4 + $0x78] sm:$0xff] %v5297
      %5322 = vst [vmem:[#allocation4 + $0x80] sm:$0xff] %v5298
      %5323 = vst [vmem:[#allocation4 + $0x88] sm:$0xff] %v5299
      %5324 = vst [vmem:[#allocation4 + $0x90] sm:$0xff] %v5300
      %5325 = vst [vmem:[#allocation4 + $0x98] sm:$0xff] %v5301
      %5326 = vst [vmem:[#allocation4 + $0xa0] sm:$0xff] %v5302
      %5327 = vst [vmem:[#allocation4 + $0xa8] sm:$0xff] %v5303
      %5328 = vst [vmem:[#allocation4 + $0xb0] sm:$0xff] %v5304
      %5329 = vst [vmem:[#allocation4 + $0xb8] sm:$0xff] %v5305
      %s5330 = scalar_lea.vmem %s3, 512
      %v5331 = vld [vmem:[%s5330] sm:$0xf]
      %v5332 = vld [vmem:[%s5330 + $0x4] sm:$0xf]
      %v5333 = vld [vmem:[%s5330 + $0x8] sm:$0xf]
      %v5334 = vld [vmem:[%s5330 + $0xc] sm:$0xf]
      %v5335 = vld [vmem:[%s5330 + $0x10] sm:$0xf]
      %v5336 = vld [vmem:[%s5330 + $0x14] sm:$0xf]
      %v5337 = vld [vmem:[%s5330 + $0x18] sm:$0xf]
      %v5338 = vld [vmem:[%s5330 + $0x1c] sm:$0xf]
      %v5339 = vld [vmem:[%s5330 + $0x20] sm:$0xf]
      %v5340 = vld [vmem:[%s5330 + $0x24] sm:$0xf]
      %v5341 = vld [vmem:[%s5330 + $0x28] sm:$0xf]
      %v5342 = vld [vmem:[%s5330 + $0x2c] sm:$0xf]
      %v5343 = vld [vmem:[%s5330 + $0x30] sm:$0xf]
      %v5344 = vld [vmem:[%s5330 + $0x34] sm:$0xf]
      %v5345 = vld [vmem:[%s5330 + $0x38] sm:$0xf]
      %v5346 = vld [vmem:[%s5330 + $0x3c] sm:$0xf]
      %v5347 = vrot.slane %v4795, 1
      %v5348 = vsel %vm935, %v4521, %v5347
      %v5349 = vrot.slane %v5065, 1
      %v5350 = vsel %vm935, %v5347, %v5349
      %v5369 = vunpack.c.l.b16 %v5331
      %v5370 = vunpack.c.l.b16 %v5332
      %v5371 = vunpack.c.l.b16 %v5333
      %v5372 = vunpack.c.l.b16 %v5334
      %v5373 = vunpack.c.l.b16 %v5335
      %v5374 = vunpack.c.l.b16 %v5336
      %v5375 = vunpack.c.l.b16 %v5337
      %v5376 = vunpack.c.l.b16 %v5338
      %v5377 = vunpack.c.l.b16 %v5339
      %v5378 = vunpack.c.l.b16 %v5340
      %v5379 = vunpack.c.l.b16 %v5341
      %v5380 = vunpack.c.l.b16 %v5342
      %v5381 = vunpack.c.l.b16 %v5343
      %v5382 = vunpack.c.l.b16 %v5344
      %v5383 = vunpack.c.l.b16 %v5345
      %v5384 = vunpack.c.l.b16 %v5346
      %v5385 = vpack.c.b16 %v5370, %v5369
      %v5386 = vpack.c.b16 %v5372, %v5371
      %v5387 = vpack.c.b16 %v5374, %v5373
      %v5388 = vpack.c.b16 %v5376, %v5375
      %v5389 = vpack.c.b16 %v5378, %v5377
      %v5390 = vpack.c.b16 %v5380, %v5379
      %v5391 = vpack.c.b16 %v5382, %v5381
      %v5392 = vpack.c.b16 %v5384, %v5383
      %5401 = vmatprep.subr.bf16.mxu0 0
      %5402 = vmatpush1.bf16.msra.mxu0 %v5392
      %5403 = vmatprep.subr.bf16.mxu0 0
      %5404 = vmatpush1.bf16.msra.mxu0 %v5391
      %5405 = vmatprep.subr.bf16.mxu0 0
      %5406 = vmatpush1.bf16.msra.mxu0 %v5390
      %5407 = vmatprep.subr.bf16.mxu0 0
      %5408 = vmatpush1.bf16.msra.mxu0 %v5389
      %5409 = vmatprep.subr.bf16.mxu0 0
      %5410 = vmatpush1.bf16.msra.mxu0 %v5388
      %5411 = vmatprep.subr.bf16.mxu0 0
      %5412 = vmatpush1.bf16.msra.mxu0 %v5387
      %5413 = vmatprep.subr.bf16.mxu0 0
      %5414 = vmatpush1.bf16.msra.mxu0 %v5386
      %5415 = vmatprep.subr.bf16.mxu0 0
      %5416 = vmatpush1.bf16.msra.mxu0 %v5385
      %5417 = vmatprep.subr.bf16.mxu0 0
      %5418 = vmatpush2.bf16.msra.mxu0 0
      %5419 = vmatprep.subr.bf16.mxu0 0
      %5420 = vmatpush2.bf16.msra.mxu0 0
      %5421 = vmatprep.subr.bf16.mxu0 0
      %5422 = vmatpush2.bf16.msra.mxu0 0
      %5423 = vmatprep.subr.bf16.mxu0 0
      %5424 = vmatpush2.bf16.msra.mxu0 0
      %5425 = vmatprep.subr.bf16.mxu0 0
      %5426 = vmatpush2.bf16.msra.mxu0 0
      %5427 = vmatprep.subr.bf16.mxu0 0
      %5428 = vmatpush2.bf16.msra.mxu0 0
      %5429 = vmatprep.subr.bf16.mxu0 0
      %5430 = vmatpush2.bf16.msra.mxu0 0
      %5431 = vmatprep.subr.bf16.mxu0 0
      %5432 = vmatpush2.bf16.msra.mxu0 0
      %5433 = vmatprep.mubr.bf16.mxu0 0
      %5434 = vmatmul.mubr.bf16.gmra.mxu0 %v3670
      %v5435 = vpop.f32.mrf.mxu0
      %v5436 = vadd.f32 0.0, %v5435
      %v5437 = vpop.f32.mrf.mxu0
      %v5438 = vpop.f32.mrf.mxu0
      %v5439 = vadd.f32 0.0, %v5438
      %v5440 = vpop.f32.mrf.mxu0
      %5441 = vmatprep.mubr.bf16.mxu0 0
      %5442 = vmatmul.mubr.bf16.gmra.mxu0 %v3672
      %v5443 = vpop.f32.mrf.mxu0
      %v5444 = vadd.f32 0.0, %v5443
      %v5445 = vpop.f32.mrf.mxu0
      %v5446 = vpop.f32.mrf.mxu0
      %v5447 = vadd.f32 0.0, %v5446
      %v5448 = vpop.f32.mrf.mxu0
      %5449 = vmatprep.mubr.bf16.mxu0 0
      %5450 = vmatmul.mubr.bf16.gmra.mxu0 %v3674
      %v5451 = vpop.f32.mrf.mxu0
      %v5452 = vadd.f32 0.0, %v5451
      %v5453 = vpop.f32.mrf.mxu0
      %v5454 = vpop.f32.mrf.mxu0
      %v5455 = vadd.f32 0.0, %v5454
      %v5456 = vpop.f32.mrf.mxu0
      %5457 = vmatprep.mubr.bf16.mxu0 0
      %5458 = vmatmul.mubr.bf16.gmra.mxu0 %v3676
      %v5459 = vpop.f32.mrf.mxu0
      %v5460 = vadd.f32 0.0, %v5459
      %v5461 = vpop.f32.mrf.mxu0
      %v5462 = vpop.f32.mrf.mxu0
      %v5463 = vadd.f32 0.0, %v5462
      %v5464 = vpop.f32.mrf.mxu0
      %5465 = vmatprep.mubr.bf16.mxu0 0
      %5466 = vmatmul.mubr.bf16.gmra.mxu0 %v3678
      %v5467 = vpop.f32.mrf.mxu0
      %v5468 = vadd.f32 0.0, %v5467
      %v5469 = vpop.f32.mrf.mxu0
      %v5470 = vpop.f32.mrf.mxu0
      %v5471 = vadd.f32 0.0, %v5470
      %v5472 = vpop.f32.mrf.mxu0
      %5473 = vmatprep.mubr.bf16.mxu0 0
      %5474 = vmatmul.mubr.bf16.gmra.mxu0 %v3680
      %v5475 = vpop.f32.mrf.mxu0
      %v5476 = vadd.f32 0.0, %v5475
      %v5477 = vpop.f32.mrf.mxu0
      %v5478 = vpop.f32.mrf.mxu0
      %v5479 = vadd.f32 0.0, %v5478
      %v5480 = vpop.f32.mrf.mxu0
      %5481 = vmatprep.mubr.bf16.mxu0 0
      %5482 = vmatmul.mubr.bf16.gmra.mxu0 %v3682
      %v5483 = vpop.f32.mrf.mxu0
      %v5484 = vadd.f32 0.0, %v5483
      %v5485 = vpop.f32.mrf.mxu0
      %v5486 = vpop.f32.mrf.mxu0
      %v5487 = vadd.f32 0.0, %v5486
      %v5488 = vpop.f32.mrf.mxu0
      %5489 = vmatprep.mubr.bf16.mxu0 0
      %5490 = vmatmul.mubr.bf16.gmra.mxu0 %v3684
      %v5491 = vpop.f32.mrf.mxu0
      %v5492 = vadd.f32 0.0, %v5491
      %v5493 = vpop.f32.mrf.mxu0
      %v5494 = vpop.f32.mrf.mxu0
      %v5495 = vadd.f32 0.0, %v5494
      %v5496 = vpop.f32.mrf.mxu0
      %5497 = vmatprep.mubr.bf16.mxu0 0
      %5498 = vmatmul.mubr.bf16.gmra.mxu0 %v3686
      %v5499 = vpop.f32.mrf.mxu0
      %v5500 = vadd.f32 0.0, %v5499
      %v5501 = vpop.f32.mrf.mxu0
      %v5502 = vpop.f32.mrf.mxu0
      %v5503 = vadd.f32 0.0, %v5502
      %v5504 = vpop.f32.mrf.mxu0
      %5505 = vmatprep.mubr.bf16.mxu0 0
      %5506 = vmatmul.mubr.bf16.gmra.mxu0 %v4522
      %v5507 = vpop.f32.mrf.mxu0
      %v5508 = vadd.f32 0.0, %v5507
      %v5509 = vpop.f32.mrf.mxu0
      %v5510 = vpop.f32.mrf.mxu0
      %v5511 = vadd.f32 0.0, %v5510
      %v5512 = vpop.f32.mrf.mxu0
      %5513 = vmatprep.mubr.bf16.mxu0 0
      %5514 = vmatmul.mubr.bf16.gmra.mxu0 %v5348
      %v5515 = vpop.f32.mrf.mxu0
      %v5516 = vadd.f32 0.0, %v5515
      %v5517 = vpop.f32.mrf.mxu0
      %v5518 = vpop.f32.mrf.mxu0
      %v5519 = vadd.f32 0.0, %v5518
      %v5520 = vpop.f32.mrf.mxu0
      %5521 = vmatprep.mubr.bf16.mxu0 0
      %5522 = vmatmul.mubr.bf16.gmra.mxu0 %v5350
      %v5523 = vpop.f32.mrf.mxu0
      %v5524 = vadd.f32 0.0, %v5523
      %v5525 = vpop.f32.mrf.mxu0
      %v5526 = vpop.f32.mrf.mxu0
      %v5527 = vadd.f32 0.0, %v5526
      %v5528 = vpop.f32.mrf.mxu0
      %5529 = vdwg.mxu0
      %v5530 = vld [vmem:[#allocation4] sm:$0xff]
      %v5531 = vld [vmem:[#allocation4 + $0x8] sm:$0xff]
      %v5532 = vld [vmem:[#allocation4 + $0x10] sm:$0xff]
      %v5533 = vld [vmem:[#allocation4 + $0x18] sm:$0xff]
      %v5534 = vld [vmem:[#allocation4 + $0x20] sm:$0xff]
      %v5535 = vld [vmem:[#allocation4 + $0x28] sm:$0xff]
      %v5536 = vld [vmem:[#allocation4 + $0x30] sm:$0xff]
      %v5537 = vld [vmem:[#allocation4 + $0x38] sm:$0xff]
      %v5538 = vld [vmem:[#allocation4 + $0x40] sm:$0xff]
      %v5539 = vld [vmem:[#allocation4 + $0x48] sm:$0xff]
      %v5540 = vld [vmem:[#allocation4 + $0x50] sm:$0xff]
      %v5541 = vld [vmem:[#allocation4 + $0x58] sm:$0xff]
      %v5542 = vld [vmem:[#allocation4 + $0x60] sm:$0xff]
      %v5543 = vld [vmem:[#allocation4 + $0x68] sm:$0xff]
      %v5544 = vld [vmem:[#allocation4 + $0x70] sm:$0xff]
      %v5545 = vld [vmem:[#allocation4 + $0x78] sm:$0xff]
      %v5546 = vld [vmem:[#allocation4 + $0x80] sm:$0xff]
      %v5547 = vld [vmem:[#allocation4 + $0x88] sm:$0xff]
      %v5548 = vld [vmem:[#allocation4 + $0x90] sm:$0xff]
      %v5549 = vld [vmem:[#allocation4 + $0x98] sm:$0xff]
      %v5550 = vld [vmem:[#allocation4 + $0xa0] sm:$0xff]
      %v5551 = vld [vmem:[#allocation4 + $0xa8] sm:$0xff]
      %v5552 = vld [vmem:[#allocation4 + $0xb0] sm:$0xff]
      %v5553 = vld [vmem:[#allocation4 + $0xb8] sm:$0xff]
      %v5554 = vadd.f32 %v5530, %v5436
      %v5555 = vadd.f32 %v5531, %v5439
      %v5556 = vadd.f32 %v5532, %v5444
      %v5557 = vadd.f32 %v5533, %v5447
      %v5558 = vadd.f32 %v5534, %v5452
      %v5559 = vadd.f32 %v5535, %v5455
      %v5560 = vadd.f32 %v5536, %v5460
      %v5561 = vadd.f32 %v5537, %v5463
      %v5562 = vadd.f32 %v5538, %v5468
      %v5563 = vadd.f32 %v5539, %v5471
      %v5564 = vadd.f32 %v5540, %v5476
      %v5565 = vadd.f32 %v5541, %v5479
      %v5566 = vadd.f32 %v5542, %v5484
      %v5567 = vadd.f32 %v5543, %v5487
      %v5568 = vadd.f32 %v5544, %v5492
      %v5569 = vadd.f32 %v5545, %v5495
      %v5570 = vadd.f32 %v5546, %v5500
      %v5571 = vadd.f32 %v5547, %v5503
      %v5572 = vadd.f32 %v5548, %v5508
      %v5573 = vadd.f32 %v5549, %v5511
      %v5574 = vadd.f32 %v5550, %v5516
      %v5575 = vadd.f32 %v5551, %v5519
      %v5576 = vadd.f32 %v5552, %v5524
      %v5577 = vadd.f32 %v5553, %v5527
      %5578 = vst [vmem:[#allocation4] sm:$0xff] %v5554
      %5579 = vst [vmem:[#allocation4 + $0x8] sm:$0xff] %v5555
      %5580 = vst [vmem:[#allocation4 + $0x10] sm:$0xff] %v5556
      %5581 = vst [vmem:[#allocation4 + $0x18] sm:$0xff] %v5557
      %5582 = vst [vmem:[#allocation4 + $0x20] sm:$0xff] %v5558
      %5583 = vst [vmem:[#allocation4 + $0x28] sm:$0xff] %v5559
      %5584 = vst [vmem:[#allocation4 + $0x30] sm:$0xff] %v5560
      %5585 = vst [vmem:[#allocation4 + $0x38] sm:$0xff] %v5561
      %5586 = vst [vmem:[#allocation4 + $0x40] sm:$0xff] %v5562
      %5587 = vst [vmem:[#allocation4 + $0x48] sm:$0xff] %v5563
      %5588 = vst [vmem:[#allocation4 + $0x50] sm:$0xff] %v5564
      %5589 = vst [vmem:[#allocation4 + $0x58] sm:$0xff] %v5565
      %5590 = vst [vmem:[#allocation4 + $0x60] sm:$0xff] %v5566
      %5591 = vst [vmem:[#allocation4 + $0x68] sm:$0xff] %v5567
      %5592 = vst [vmem:[#allocation4 + $0x70] sm:$0xff] %v5568
      %5593 = vst [vmem:[#allocation4 + $0x78] sm:$0xff] %v5569
      %5594 = vst [vmem:[#allocation4 + $0x80] sm:$0xff] %v5570
      %5595 = vst [vmem:[#allocation4 + $0x88] sm:$0xff] %v5571
      %5596 = vst [vmem:[#allocation4 + $0x90] sm:$0xff] %v5572
      %5597 = vst [vmem:[#allocation4 + $0x98] sm:$0xff] %v5573
      %5598 = vst [vmem:[#allocation4 + $0xa0] sm:$0xff] %v5574
      %5599 = vst [vmem:[#allocation4 + $0xa8] sm:$0xff] %v5575
      %5600 = vst [vmem:[#allocation4 + $0xb0] sm:$0xff] %v5576
      %5601 = vst [vmem:[#allocation4 + $0xb8] sm:$0xff] %v5577
      %v5602 = vld [vmem:[#allocation4] sm:$0xff]
      %v5603 = vld [vmem:[#allocation4 + $0x8] sm:$0xff]
      %v5604 = vld [vmem:[#allocation4 + $0x10] sm:$0xff]
      %v5605 = vld [vmem:[#allocation4 + $0x18] sm:$0xff]
      %v5606 = vld [vmem:[#allocation4 + $0x20] sm:$0xff]
      %v5607 = vld [vmem:[#allocation4 + $0x28] sm:$0xff]
      %v5608 = vld [vmem:[#allocation4 + $0x30] sm:$0xff]
      %v5609 = vld [vmem:[#allocation4 + $0x38] sm:$0xff]
      %v5610 = vld [vmem:[#allocation4 + $0x40] sm:$0xff]
      %v5611 = vld [vmem:[#allocation4 + $0x48] sm:$0xff]
      %v5612 = vld [vmem:[#allocation4 + $0x50] sm:$0xff]
      %v5613 = vld [vmem:[#allocation4 + $0x58] sm:$0xff]
      %v5614 = vld [vmem:[#allocation4 + $0x60] sm:$0xff]
      %v5615 = vld [vmem:[#allocation4 + $0x68] sm:$0xff]
      %v5616 = vld [vmem:[#allocation4 + $0x70] sm:$0xff]
      %v5617 = vld [vmem:[#allocation4 + $0x78] sm:$0xff]
      %v5618 = vld [vmem:[#allocation4 + $0x80] sm:$0xff]
      %v5619 = vld [vmem:[#allocation4 + $0x88] sm:$0xff]
      %v5620 = vld [vmem:[#allocation4 + $0x90] sm:$0xff]
      %v5621 = vld [vmem:[#allocation4 + $0x98] sm:$0xff]
      %v5622 = vld [vmem:[#allocation4 + $0xa0] sm:$0xff]
      %v5623 = vld [vmem:[#allocation4 + $0xa8] sm:$0xff]
      %v5624 = vld [vmem:[#allocation4 + $0xb0] sm:$0xff]
      %v5625 = vld [vmem:[#allocation4 + $0xb8] sm:$0xff]
      %v5626 = vld [vmem:[%s4] sm:$0x1]
      %v5628 = vlaneseq
      %v5629 = vshrl.u32 %v5628, 7
      %v5630 = vsub.s32 0, %v5629
      %v5631 = vrot.slane %v5626, %v5630
      %v5633 = vadd.f32 %v5602, %v5631
      %v5634 = vadd.f32 %v5603, %v5631
      %v5635 = vadd.f32 %v5604, %v5631
      %v5636 = vadd.f32 %v5605, %v5631
      %v5637 = vadd.f32 %v5606, %v5631
      %v5638 = vadd.f32 %v5607, %v5631
      %v5639 = vadd.f32 %v5608, %v5631
      %v5640 = vadd.f32 %v5609, %v5631
      %v5641 = vadd.f32 %v5610, %v5631
      %v5642 = vadd.f32 %v5611, %v5631
      %v5643 = vadd.f32 %v5612, %v5631
      %v5644 = vadd.f32 %v5613, %v5631
      %v5645 = vadd.f32 %v5614, %v5631
      %v5646 = vadd.f32 %v5615, %v5631
      %v5647 = vadd.f32 %v5616, %v5631
      %v5648 = vadd.f32 %v5617, %v5631
      %v5649 = vadd.f32 %v5618, %v5631
      %v5650 = vadd.f32 %v5619, %v5631
      %v5651 = vadd.f32 %v5620, %v5631
      %v5652 = vadd.f32 %v5621, %v5631
      %v5653 = vadd.f32 %v5622, %v5631
      %v5654 = vadd.f32 %v5623, %v5631
      %v5655 = vadd.f32 %v5624, %v5631
      %v5656 = vadd.f32 %v5625, %v5631
      %v5657 = vmax.f32 %v5633, 0.0
      %v5658 = vmax.f32 %v5634, 0.0
      %v5659 = vmax.f32 %v5635, 0.0
      %v5660 = vmax.f32 %v5636, 0.0
      %v5661 = vmax.f32 %v5637, 0.0
      %v5662 = vmax.f32 %v5638, 0.0
      %v5663 = vmax.f32 %v5639, 0.0
      %v5664 = vmax.f32 %v5640, 0.0
      %v5665 = vmax.f32 %v5641, 0.0
      %v5666 = vmax.f32 %v5642, 0.0
      %v5667 = vmax.f32 %v5643, 0.0
      %v5668 = vmax.f32 %v5644, 0.0
      %v5669 = vmax.f32 %v5645, 0.0
      %v5670 = vmax.f32 %v5646, 0.0
      %v5671 = vmax.f32 %v5647, 0.0
      %v5672 = vmax.f32 %v5648, 0.0
      %v5673 = vmax.f32 %v5649, 0.0
      %v5674 = vmax.f32 %v5650, 0.0
      %v5675 = vmax.f32 %v5651, 0.0
      %v5676 = vmax.f32 %v5652, 0.0
      %v5677 = vmax.f32 %v5653, 0.0
      %v5678 = vmax.f32 %v5654, 0.0
      %v5679 = vmax.f32 %v5655, 0.0
      %v5680 = vmax.f32 %v5656, 0.0
      %v5681 = vpack.c.bf16 %v5658, %v5657
      %v5682 = vpack.c.bf16 %v5660, %v5659
      %v5683 = vpack.c.bf16 %v5662, %v5661
      %v5684 = vpack.c.bf16 %v5664, %v5663
      %v5685 = vpack.c.bf16 %v5666, %v5665
      %v5686 = vpack.c.bf16 %v5668, %v5667
      %v5687 = vpack.c.bf16 %v5670, %v5669
      %v5688 = vpack.c.bf16 %v5672, %v5671
      %v5689 = vpack.c.bf16 %v5674, %v5673
      %v5690 = vpack.c.bf16 %v5676, %v5675
      %v5691 = vpack.c.bf16 %v5678, %v5677
      %v5692 = vpack.c.bf16 %v5680, %v5679
      %v5705 = vunpack.c.l.b16 %v5681
      %v5706 = vunpack.c.h.b16 %v5681
      %v5707 = vunpack.c.l.b16 %v5682
      %v5708 = vunpack.c.h.b16 %v5682
      %v5709 = vunpack.c.l.b16 %v5683
      %v5710 = vunpack.c.h.b16 %v5683
      %v5711 = vunpack.c.l.b16 %v5684
      %v5712 = vunpack.c.h.b16 %v5684
      %v5713 = vunpack.c.l.b16 %v5685
      %v5714 = vunpack.c.h.b16 %v5685
      %v5715 = vunpack.c.l.b16 %v5686
      %v5716 = vunpack.c.h.b16 %v5686
      %v5717 = vunpack.c.l.b16 %v5687
      %v5718 = vunpack.c.h.b16 %v5687
      %v5719 = vunpack.c.l.b16 %v5688
      %v5720 = vunpack.c.h.b16 %v5688
      %v5721 = vunpack.c.l.b16 %v5689
      %v5722 = vunpack.c.h.b16 %v5689
      %v5723 = vunpack.c.l.b16 %v5690
      %v5724 = vunpack.c.h.b16 %v5690
      %v5725 = vunpack.c.l.b16 %v5691
      %v5726 = vunpack.c.h.b16 %v5691
      %v5727 = vunpack.c.l.b16 %v5692
      %v5728 = vunpack.c.h.b16 %v5692
      %v5729 = vpack.c.b16 %v5705, %v5705
      %v5730 = vpack.c.b16 %v5706, %v5706
      %v5731 = vpack.c.b16 %v5707, %v5707
      %v5732 = vpack.c.b16 %v5708, %v5708
      %v5733 = vpack.c.b16 %v5709, %v5709
      %v5734 = vpack.c.b16 %v5710, %v5710
      %v5735 = vpack.c.b16 %v5711, %v5711
      %v5736 = vpack.c.b16 %v5712, %v5712
      %v5737 = vpack.c.b16 %v5713, %v5713
      %v5738 = vpack.c.b16 %v5714, %v5714
      %v5739 = vpack.c.b16 %v5715, %v5715
      %v5740 = vpack.c.b16 %v5716, %v5716
      %v5741 = vpack.c.b16 %v5717, %v5717
      %v5742 = vpack.c.b16 %v5718, %v5718
      %v5743 = vpack.c.b16 %v5719, %v5719
      %v5744 = vpack.c.b16 %v5720, %v5720
      %v5745 = vpack.c.b16 %v5721, %v5721
      %v5746 = vpack.c.b16 %v5722, %v5722
      %v5747 = vpack.c.b16 %v5723, %v5723
      %v5748 = vpack.c.b16 %v5724, %v5724
      %v5749 = vpack.c.b16 %v5725, %v5725
      %v5750 = vpack.c.b16 %v5726, %v5726
      %v5751 = vpack.c.b16 %v5727, %v5727
      %v5752 = vpack.c.b16 %v5728, %v5728
      %5777 = vst [vmem:[%s224] sm:$0xf] %v5729
      %5778 = vst [vmem:[%s224 + $0x4] sm:$0xf] %v5730
      %5779 = vst [vmem:[%s224 + $0x8] sm:$0xf] %v5731
      %5780 = vst [vmem:[%s224 + $0xc] sm:$0xf] %v5732
      %5781 = vst [vmem:[%s224 + $0x10] sm:$0xf] %v5733
      %5782 = vst [vmem:[%s224 + $0x14] sm:$0xf] %v5734
      %5783 = vst [vmem:[%s224 + $0x18] sm:$0xf] %v5735
      %5784 = vst [vmem:[%s224 + $0x1c] sm:$0xf] %v5736
      %5785 = vst [vmem:[%s224 + $0x20] sm:$0xf] %v5737
      %5786 = vst [vmem:[%s224 + $0x24] sm:$0xf] %v5738
      %5787 = vst [vmem:[%s224 + $0x28] sm:$0xf] %v5739
      %5788 = vst [vmem:[%s224 + $0x2c] sm:$0xf] %v5740
      %5789 = vst [vmem:[%s224 + $0x30] sm:$0xf] %v5741
      %5790 = vst [vmem:[%s224 + $0x34] sm:$0xf] %v5742
      %5791 = vst [vmem:[%s224 + $0x38] sm:$0xf] %v5743
      %5792 = vst [vmem:[%s224 + $0x3c] sm:$0xf] %v5744
      %5793 = vst [vmem:[%s224 + $0x40] sm:$0xf] %v5745
      %5794 = vst [vmem:[%s224 + $0x44] sm:$0xf] %v5746
      %5795 = vst [vmem:[%s224 + $0x48] sm:$0xf] %v5747
      %5796 = vst [vmem:[%s224 + $0x4c] sm:$0xf] %v5748
      %5797 = vst [vmem:[%s224 + $0x50] sm:$0xf] %v5749
      %5798 = vst [vmem:[%s224 + $0x54] sm:$0xf] %v5750
      %5799 = vst [vmem:[%s224 + $0x58] sm:$0xf] %v5751
      %5800 = vst [vmem:[%s224 + $0x5c] sm:$0xf] %v5752
      %p5801 = scmp.lt.s32.totalorder %s16, 1
      %s5802 = scalar_select %p5801, %s16, 1
      %s5803 = smul.addr %s5802, 24
      %s5804 = smul.addr %s5803, 4
      %s5805 = scalar_lea.vmem %s5, %s5804
      // Predicated region
      $region41: #{block_forward.1} parent=39 // pred_check
        %p5806 = pneg %p144
      $region42: #{block_forward.1} parent=39 // pred_check_branch
        %5808 = sbr.rel (%p5806) target = $region44
      $region43: #{block_forward.1} parent=39 // pred_region
        _
      $region44: #{block_forward.1} parent=39 // pred_fallthru
        _
    $region40: #{block_forward.1} parent=5 // pred_fallthru
      _
    %p5809 = scmp.le.s32.totalorder 2, %s11
    // Predicated region
    $region45: #{block_forward.1} parent=5 // pred_check
      %p5810 = pneg %p5809
    $region46: #{block_forward.1} parent=5 // pred_check_branch
      %5812 = sbr.rel (%p5810) target = $region48
    $region47: #{block_forward.1} parent=5 // pred_region
      %s5813 = ssub.s32 %s11, 2
      // Predicated region
      $region49: #{block_forward.1} parent=47 // pred_check
        %p5814 = pneg %p150
      $region50: #{block_forward.1} parent=47 // pred_check_branch
        %5816 = sbr.rel (%p5814) target = $region52
      $region51: #{block_forward.1} parent=47 // pred_region
        %p5817 = scmp.lt.s32.totalorder %s17, 1
        %s5818 = scalar_select %p5817, %s17, 1
        %s5819 = smul.addr %s5818, 24
        %s5820 = smul.addr %s5819, 4
        %s5821 = scalar_lea.vmem %s5, %s5820
      $region52: #{block_forward.1} parent=47 // pred_fallthru
        _
    $region48: #{block_forward.1} parent=5 // pred_fallthru
      _
  $region6: #{block_forward.1} parent=0 // loop_footer
    %s15 = sadd.s32 1, %s11
  $region7: #{block_forward.1} parent=0 // loop_footer_branch
    %10 = sbr.rel target = $region3
  $region8: #{block_forward.1} parent=0 // loop_exit
    _

</llo_original>
